<compile_context>
chip_gen: v5e
topology: v5e:2x2
jax: 0.10.0
libtpu: 0.0.40
codegen_flags: <defaults>
</compile_context>

<pallas_src>
import functools

import jax
import jax.numpy as jnp
from jax import lax
from jax.experimental import pallas as pl
from jax.experimental.pallas import tpu as pltpu

EPS = 1e-5
LANE = 128


def _round_up(x, m):
    return (x + m - 1) // m * m


def _vmem_limit_bytes():
    # ~3/4 of physical VMEM, capped at 96 MiB: ~48 MiB on v7x (64 MiB VMEM),
    # ~96 MiB on v5e / v6e (128 MiB VMEM).
    cap = 128 * 1024 * 1024
    try:
        cap = int(getattr(pltpu.get_tpu_info(), "vmem_capacity_bytes", cap))
    except Exception:
        pass
    return min(cap * 3 // 4, 96 * 1024 * 1024)


def _pick_tm(M, Cin, Cmid_p):
    # Target a few-MiB block per side (amortizes ~0.35us/grid-step overhead) while
    # staying far below the VMEM budget even with double buffering.
    bytes_per_row = max(Cin, Cmid_p) * 2            # bf16
    tm = (4 << 20) // bytes_per_row
    tm = max(512, min(tm, 4096))
    tm = min(tm, _round_up(M, 8))
    return _round_up(tm, 8)


def _pick_th(H, W, target_rows=128):
    # Largest divisor of H with th*W <= target_rows so the per-chunk f32 matmul
    # accumulator stays around one (128, 128) tile (vreg-friendly on v5e/v6e).
    best = 1
    for t in range(1, H + 1):
        if H % t == 0 and t * W <= target_rows:
            best = t
    return best


# --------------------------------------------------------------------------- #
# Kernel 1: fused BN1 + ReLU + 1x1 conv (matmul over channels)
#           + per-block BN2 batch statistics (sum, sum of squares)
# --------------------------------------------------------------------------- #
def _bn_relu_conv1x1_kernel(x_ref, scale_ref, shift_ref, w_ref,
                            y_ref, stats_ref, *, tm, m_valid, need_mask):
    # x_ref: (tm, Cin) bf16        scale/shift: (1, Cin) f32
    # w_ref: (Cin, Cmid_p) bf16    y_ref: (tm, Cmid_p) bf16
    # stats_ref: (1, 8, Cmid_p) f32 per-block partials (row 0 = sum, row 1 = sumsq)
    a = jnp.maximum(x_ref[...].astype(jnp.float32) * scale_ref[...] + shift_ref[...],
                    0.0)
    if need_mask:  # zero rows past the real M (partial tail block) -> exact stats/out
        row = pl.program_id(0) * tm + lax.broadcasted_iota(jnp.int32, (tm, 1), 0)
        a = jnp.where(row < m_valid, a, 0.0)

    y = jnp.dot(a.astype(jnp.bfloat16), w_ref[...],
                preferred_element_type=jnp.float32)          # (tm, Cmid_p) f32
    y_ref[...] = y.astype(y_ref.dtype)

    # BN2 partial statistics from the f32 accumulator (before the bf16 store).
    cmid = y.shape[1]
    srow = jnp.sum(y, axis=0, keepdims=True)
    qrow = jnp.sum(y * y, axis=0, keepdims=True)
    stats_ref[0] = jnp.concatenate(
        [srow, qrow, jnp.zeros((6, cmid), jnp.float32)], axis=0)


def bn_relu_conv1x1(x_flat, scale, shift, w_bf16, *, tm, vmem_limit):
    M, Cin = x_flat.shape
    Cmid_p = w_bf16.shape[1]
    G = pl.cdiv(M, tm)
    kern = functools.partial(_bn_relu_conv1x1_kernel, tm=tm, m_valid=M,
                             need_mask=(M % tm != 0))
    cost = pl.CostEstimate(
        flops=2 * M * Cin * Cmid_p,
        transcendentals=0,
        bytes_accessed=(M * Cin * 2 + M * Cmid_p * 2 + Cin * Cmid_p * 2
                        + G * 8 * Cmid_p * 4 + 2 * Cin * 4))
    return pl.pallas_call(
        kern,
        out_shape=(
            jax.ShapeDtypeStruct((M, Cmid_p), jnp.bfloat16),      # bottleneck
            jax.ShapeDtypeStruct((G, 8, Cmid_p), jnp.float32),    # per-block stats
        ),
        grid=(G,),
        in_specs=[
            pl.BlockSpec((tm, Cin), lambda i: (i, 0)),
            pl.BlockSpec((1, Cin), lambda i: (0, 0)),
            pl.BlockSpec((1, Cin), lambda i: (0, 0)),
            pl.BlockSpec((Cin, Cmid_p), lambda i: (0, 0)),
        ],
        out_specs=(
            pl.BlockSpec((tm, Cmid_p), lambda i: (i, 0)),
            pl.BlockSpec((1, 8, Cmid_p), lambda i: (i, 0, 0)),
        ),
        compiler_params=pltpu.CompilerParams(
            dimension_semantics=("parallel",),   # disjoint outputs -> megacore-safe
            vmem_limit_bytes=vmem_limit),
        cost_estimate=cost,
    )(x_flat, scale, shift, w_bf16)


# --------------------------------------------------------------------------- #
# Kernel 2: fused BN2 + ReLU + 3x3 conv (padding=1), one image per grid step.
#   * kw taps folded into the matmul K dimension (K = 3*Cmid_p)
#   * kh taps are free leading-axis slices of the (H+2)-row VMEM scratch
#   * fori_loop over row chunks bounds the f32 accumulator / vreg pressure
# --------------------------------------------------------------------------- #
def _bn_relu_conv3x3_kernel(x_ref, scale_ref, shift_ref, w_ref, o_ref, b_ref,
                            *, H, W, Cmid_p, Cout_p, th):
    # x_ref: (1, H, W, Cmid_p) bf16   scale/shift: (1, Cmid_p) f32
    # w_ref: (3, 3*Cmid_p, Cout_p) bf16   o_ref: (1, H, W, Cout_p) bf16
    # b_ref (scratch): (H+2, W, 3*Cmid_p) bf16
    scale = scale_ref[...].reshape(1, 1, Cmid_p)
    shift = shift_ref[...].reshape(1, 1, Cmid_p)

    # Zero only the two halo rows (interior is fully overwritten below).
    zrow = jnp.zeros((W, 3 * Cmid_p), jnp.bfloat16)
    b_ref[0] = zrow
    b_ref[H + 1] = zrow

    n_chunks = H // th

    # Stage 1: BN2 + ReLU (f32), then build the kw-concatenated block in bf16:
    #   b[r+1, w, kw*C:(kw+1)*C] = a[r, w+kw-1]   (zero outside the W border)
    def build(c, carry):
        r0 = c * th
        a = jnp.maximum(
            x_ref[0, pl.ds(r0, th), :, :].astype(jnp.float32) * scale + shift,
            0.0).astype(jnp.bfloat16)
        zcol = jnp.zeros((th, 1, Cmid_p), jnp.bfloat16)
        b_ref[pl.ds(r0 + 1, th), :, 0:Cmid_p] = jnp.concatenate(
            [zcol, a[:, :W - 1, :]], axis=1)                        # tap kw = 0
        b_ref[pl.ds(r0 + 1, th), :, Cmid_p:2 * Cmid_p] = a          # tap kw = 1
        b_ref[pl.ds(r0 + 1, th), :, 2 * Cmid_p:3 * Cmid_p] = jnp.concatenate(
            [a[:, 1:, :], zcol], axis=1)                            # tap kw = 2
        return carry

    lax.fori_loop(0, n_chunks, build, 0, unroll=(n_chunks <= 4))

    # Stage 2: 3 fat matmuls per row chunk (kh shift = leading-axis slice of b_ref).
    # NOTE(v5e): a 128-deep MXU gains nothing from K=3*Cmid_p; a per-kw (K=Cmid_p)
    # variant with a center-only scratch is ~3x lighter on VMEM there.
    def mm(c, carry):
        r0 = c * th
        acc = jnp.zeros((th * W, Cout_p), jnp.float32)
        for kh in range(3):
            b = b_ref[pl.ds(r0 + kh, th), :, :].reshape(th * W, 3 * Cmid_p)
            acc = acc + jnp.dot(b, w_ref[kh], preferred_element_type=jnp.float32)
        o_ref[0, pl.ds(r0, th), :, :] = acc.reshape(th, W, Cout_p).astype(o_ref.dtype)
        return carry

    lax.fori_loop(0, n_chunks, mm, 0, unroll=(n_chunks <= 4))


def bn_relu_conv3x3(x_nhwc, scale, shift, w_k, *, th, vmem_limit):
    N, H, W, Cmid_p = x_nhwc.shape
    Cout_p = w_k.shape[2]
    footprint = (2 * H * W * Cmid_p * 2            # x double buffer (bf16)
                 + 2 * H * W * Cout_p * 2          # o double buffer (bf16)
                 + (H + 2) * W * 3 * Cmid_p * 2    # kw-expanded scratch
                 + 2 * 3 * 3 * Cmid_p * Cout_p * 2)
    if footprint > vmem_limit - (4 << 20):
        # TODO(synk): row-chunked grid=(N, H//th) variant with 2-row halos (manual
        # DMA) for feature maps too large for a whole-image VMEM block (v7x 64 MiB).
        raise NotImplementedError("whole-image block exceeds the VMEM budget")
    kern = functools.partial(_bn_relu_conv3x3_kernel, H=H, W=W,
                             Cmid_p=Cmid_p, Cout_p=Cout_p, th=th)
    cost = pl.CostEstimate(
        flops=2 * N * H * W * 9 * Cmid_p * Cout_p,
        transcendentals=0,
        bytes_accessed=N * H * W * (Cmid_p + Cout_p) * 2 + 9 * Cmid_p * Cout_p * 2)
    return pl.pallas_call(
        kern,
        out_shape=jax.ShapeDtypeStruct((N, H, W, Cout_p), jnp.bfloat16),
        grid=(N,),
        in_specs=[
            pl.BlockSpec((1, H, W, Cmid_p), lambda n: (n, 0, 0, 0)),
            pl.BlockSpec((1, Cmid_p), lambda n: (0, 0)),
            pl.BlockSpec((1, Cmid_p), lambda n: (0, 0)),
            pl.BlockSpec((3, 3 * Cmid_p, Cout_p), lambda n: (0, 0, 0)),
        ],
        out_specs=pl.BlockSpec((1, H, W, Cout_p), lambda n: (n, 0, 0, 0)),
        scratch_shapes=[pltpu.VMEM((H + 2, W, 3 * Cmid_p), jnp.bfloat16)],
        compiler_params=pltpu.CompilerParams(
            dimension_semantics=("parallel",),
            vmem_limit_bytes=vmem_limit),
        cost_estimate=cost,
    )(x_nhwc, scale, shift, w_k)


# --------------------------------------------------------------------------- #
# _DenseLayer forward (glue: layout transform, BN batch-statistics folding)
# --------------------------------------------------------------------------- #
@functools.partial(jax.jit, static_argnames=("cout",))
def dense_layer_forward(x_nchw, params, *, cout):
    x_nchw = x_nchw.astype(jnp.float32)
    N, Cin, H, W = x_nchw.shape
    M = N * H * W
    Cmid_p = params["w1"].shape[1]
    vmem_limit = _vmem_limit_bytes()

    # BN1 training-mode batch stats in f32, computed directly on the NCHW input
    # (single reduction pass), folded into per-channel scale/shift.
    s1 = jnp.sum(x_nchw, axis=(0, 2, 3))
    s2 = jnp.sum(x_nchw * x_nchw, axis=(0, 2, 3))
    mean1 = s1 / M
    var1 = jnp.maximum(s2 / M - mean1 * mean1, 0.0)
    scale1 = params["gamma1"] * lax.rsqrt(var1 + EPS)
    shift1 = params["beta1"] - mean1 * scale1

    # NCHW -> NHWC and f32 -> bf16 in one pass; kernel 1 reads the half-width stream.
    x_flat = (jnp.transpose(x_nchw, (0, 2, 3, 1))
              .astype(jnp.bfloat16).reshape(M, Cin))

    # ---- kernel 1: BN1 + ReLU + conv1x1 (+ per-block BN2 partial stats) --------
    tm = _pick_tm(M, Cin, Cmid_p)
    y, stats = bn_relu_conv1x1(x_flat, scale1[None, :], shift1[None, :],
                               params["w1"], tm=tm, vmem_limit=vmem_limit)
    bott = y.reshape(N, H, W, Cmid_p)        # metadata-only (no pad/slice copies)

    # BN2 batch statistics from the per-block partials (tiny wrapper reduction).
    # NOTE: stats come from the f32 accumulator while the stored bottleneck is bf16;
    # the tiny systematic mismatch is covered by the test tolerance.
    ssum = jnp.sum(stats[:, 0, :], axis=0)
    ssq = jnp.sum(stats[:, 1, :], axis=0)
    mean2 = ssum / M
    var2 = jnp.maximum(ssq / M - mean2 * mean2, 0.0)
    scale2 = params["gamma2_p"] * lax.rsqrt(var2 + EPS)
    shift2 = params["beta2_p"] - mean2 * scale2

    # ---- kernel 2: BN2 + ReLU + conv3x3 (padding=1) -----------------------------
    th = _pick_th(H, W)
    out_p = bn_relu_conv3x3(bott, scale2[None, :], shift2[None, :],
                            params["w2"], th=th, vmem_limit=vmem_limit)
    out = out_p[..., :cout]                                    # drop lane padding
    return jnp.transpose(out, (0, 3, 1, 2)).astype(jnp.float32)   # NHWC -> NCHW


# --------------------------------------------------------------------------- #
# Deterministic parameter init (shapes from nn.Module __init__) + JAX reference
# --------------------------------------------------------------------------- #
def init_params(key, num_input_features, growth_rate, bn_size):
    Cin, Cmid, Cout = num_input_features, bn_size * growth_rate, growth_rate
    Cmid_p, Cout_p = _round_up(Cmid, LANE), _round_up(Cout, LANE)
    k = jax.random.split(key, 6)
    w1_oihw = 0.1 * jax.random.normal(k[0], (Cmid, Cin, 1, 1), jnp.float32)   # conv1
    w2_oihw = 0.1 * jax.random.normal(k[1], (Cout, Cmid, 3, 3), jnp.float32)  # conv2
    gamma1 = 1.0 + 0.1 * jax.random.normal(k[2], (Cin,), jnp.float32)
    beta1 = 0.1 * jax.random.normal(k[3], (Cin,), jnp.float32)
    gamma2 = 1.0 + 0.1 * jax.random.normal(k[4], (Cmid,), jnp.float32)
    beta2 = 0.1 * jax.random.normal(k[5], (Cmid,), jnp.float32)

    # Kernel-ready layouts: bf16 weights, output channels padded to 128 lanes.
    w1 = jnp.transpose(w1_oihw[:, :, 0, 0], (1, 0))                       # (Cin, Cmid)
    w1_p = jnp.pad(w1, ((0, 0), (0, Cmid_p - Cmid))).astype(jnp.bfloat16)
    w2_t = jnp.transpose(w2_oihw, (2, 3, 1, 0))                           # (3,3,Cmid,Cout)
    w2_t = jnp.pad(w2_t, ((0, 0), (0, 0), (0, Cmid_p - Cmid), (0, Cout_p - Cout)))
    w2_k = w2_t.reshape(3, 3 * Cmid_p, Cout_p).astype(jnp.bfloat16)       # per-kh, K=3*Cmid_p

    params = dict(
        gamma1=gamma1, beta1=beta1,
        gamma2_p=jnp.pad(gamma2, (0, Cmid_p - Cmid)),
        beta2_p=jnp.pad(beta2, (0, Cmid_p - Cmid)),
        w1=w1_p, w2=w2_k)
    torch_layout = dict(w1=w1_oihw, w2=w2_oihw, gamma1=gamma1, beta1=beta1,
                        gamma2=gamma2, beta2=beta2)
    return params, torch_layout


def ref_forward(x, tw):
    def bn_train(h, gamma, beta):
        mean = jnp.mean(h, axis=(0, 2, 3), keepdims=True)
        var = jnp.mean(jnp.square(h - mean), axis=(0, 2, 3), keepdims=True)
        return (gamma[None, :, None, None] * (h - mean) / jnp.sqrt(var + EPS)
                + beta[None, :, None, None])

    dn = ("NCHW", "OIHW", "NCHW")
    h = jax.nn.relu(bn_train(x, tw["gamma1"], tw["beta1"]))
    h = lax.conv_general_dilated(h, tw["w1"], (1, 1), "VALID",
                                 dimension_numbers=dn, precision=lax.Precision.HIGHEST)
    h = jax.nn.relu(bn_train(h, tw["gamma2"], tw["beta2"]))
    h = lax.conv_general_dilated(h, tw["w2"], (1, 1), ((1, 1), (1, 1)),
                                 dimension_numbers=dn, precision=lax.Precision.HIGHEST)
    return h


if __name__ == "__main__":
    num_input_features, growth_rate, bn_size = 8, 8, 2
    key = jax.random.PRNGKey(0)
    pkey, xkey = jax.random.split(key)
    params, torch_layout = init_params(pkey, num_input_features, growth_rate, bn_size)
    x = jax.random.normal(xkey, (2, num_input_features, 16, 16), jnp.float32)  # NCHW

    out = jax.block_until_ready(dense_layer_forward(x, params, cout=growth_rate))
    ref = ref_forward(x, torch_layout)

    assert out.shape == (2, growth_rate, 16, 16), out.shape
    err = float(jnp.max(jnp.abs(out - ref)))
    # bf16 inputs / weights / intermediate and output stores vs. an f32
    # HIGHEST-precision reference => deliberately relaxed tolerance (a structural
    # bug in the conv/BN would produce O(1) errors and still be caught).
    assert err < 1.5e-1, f"max abs error {err}"
    print("KERNEL_OK")
</pallas_src>

<mosaic_0001>
module attributes {stable_mosaic.version = 11 : i64} {
  func.func @_bn_relu_conv1x1_kernel(%arg0: i32, %arg1: memref<512x8xbf16, #tpu.memory_space<vmem>>, %arg2: memref<1x8xf32, #tpu.memory_space<vmem>>, %arg3: memref<1x8xf32, #tpu.memory_space<vmem>>, %arg4: memref<8x128xbf16, #tpu.memory_space<vmem>>, %arg5: memref<512x128xbf16, #tpu.memory_space<vmem>>, %arg6: memref<1x8x128xf32, #tpu.memory_space<vmem>>) attributes {dimension_semantics = [#tpu.dimension_semantics<parallel>], iteration_bounds = array<i64: 1>, scalar_prefetch = 0 : i64, scratch_operands = 0 : i64, tpu.core_type = #tpu.core_type<tc>, window_params = [{transform_indices = @transform_0, window_bounds = array<i64: 512, 8>}, {pipeline_mode = #tpu.pipeline_mode<synchronous>, transform_indices = @transform_1, window_bounds = array<i64: 1, 8>}, {pipeline_mode = #tpu.pipeline_mode<synchronous>, transform_indices = @transform_2, window_bounds = array<i64: 1, 8>}, {pipeline_mode = #tpu.pipeline_mode<synchronous>, transform_indices = @transform_3, window_bounds = array<i64: 8, 128>}, {transform_indices = @transform_4, window_bounds = array<i64: 512, 128>}, {transform_indices = @transform_5, window_bounds = array<i64: 1, 8, 128>}]} {
    %c0 = arith.constant 0 : index
    %c0_0 = arith.constant 0 : index
    %0 = vector.load %arg1[%c0, %c0_0] : memref<512x8xbf16, #tpu.memory_space<vmem>>, vector<512x8xbf16>
    %1 = arith.extf %0 : vector<512x8xbf16> to vector<512x8xf32>
    %c0_1 = arith.constant 0 : index
    %c0_2 = arith.constant 0 : index
    %2 = vector.load %arg2[%c0_1, %c0_2] : memref<1x8xf32, #tpu.memory_space<vmem>>, vector<1x8xf32>
    %3 = vector.broadcast %2 : vector<1x8xf32> to vector<512x8xf32>
    %4 = arith.mulf %1, %3 : vector<512x8xf32>
    %c0_3 = arith.constant 0 : index
    %c0_4 = arith.constant 0 : index
    %5 = vector.load %arg3[%c0_3, %c0_4] : memref<1x8xf32, #tpu.memory_space<vmem>>, vector<1x8xf32>
    %6 = vector.broadcast %5 : vector<1x8xf32> to vector<512x8xf32>
    %7 = arith.addf %4, %6 : vector<512x8xf32>
    %cst = arith.constant 0.000000e+00 : f32
    %8 = vector.broadcast %cst : f32 to vector<512x8xf32>
    %9 = arith.maximumf %7, %8 : vector<512x8xf32>
    %10 = arith.truncf %9 : vector<512x8xf32> to vector<512x8xbf16>
    %c0_5 = arith.constant 0 : index
    %c0_6 = arith.constant 0 : index
    %11 = vector.load %arg4[%c0_5, %c0_6] : memref<8x128xbf16, #tpu.memory_space<vmem>>, vector<8x128xbf16>
    %cst_7 = arith.constant dense<0.000000e+00> : vector<512x128xf32>
    %12 = tpu.matmul %10, %11, %cst_7 {dimension_numbers = #tpu.dot_dimension_numbers<[1], [0], [0], [1], [0, 0, 1, 1], [], []>} : vector<512x8xbf16>, vector<8x128xbf16>, vector<512x128xf32> -> vector<512x128xf32>
    %13 = arith.truncf %12 : vector<512x128xf32> to vector<512x128xbf16>
    %c0_8 = arith.constant 0 : index
    %c0_9 = arith.constant 0 : index
    %14 = vector.load %arg5[%c0_8, %c0_9] : memref<512x128xbf16, #tpu.memory_space<vmem>>, vector<512x128xbf16>
    tpu.vector_store %arg5[%c0_8, %c0_9], %13 {strides = array<i32>} : memref<512x128xbf16, #tpu.memory_space<vmem>>, vector<512x128xbf16>,
    %cst_10 = arith.constant dense<0.000000e+00> : vector<128xf32>
    %15 = vector.multi_reduction <add>, %12, %cst_10 [0] : vector<512x128xf32> to vector<128xf32>
    %16 = vector.shape_cast %15 : vector<128xf32> to vector<1x128xf32>
    %17 = arith.mulf %12, %12 : vector<512x128xf32>
    %cst_11 = arith.constant dense<0.000000e+00> : vector<128xf32>
    %18 = vector.multi_reduction <add>, %17, %cst_11 [0] : vector<512x128xf32> to vector<128xf32>
    %19 = vector.shape_cast %18 : vector<128xf32> to vector<1x128xf32>
    %cst_12 = arith.constant 0.000000e+00 : f32
    %20 = vector.broadcast %cst_12 : f32 to vector<6x128xf32>
    %21 = tpu.concatenate %16, %19, %20 in 0 : vector<1x128xf32>, vector<1x128xf32>, vector<6x128xf32> -> vector<8x128xf32>
    %c0_13 = arith.constant 0 : index
    %c0_14 = arith.constant 0 : index
    %c0_15 = arith.constant 0 : index
    %22 = vector.load %arg6[%c0_13, %c0_14, %c0_15] : memref<1x8x128xf32, #tpu.memory_space<vmem>>, vector<1x8x128xf32>
    %23 = vector.shape_cast %22 : vector<1x8x128xf32> to vector<8x128xf32>
    %24 = vector.shape_cast %21 : vector<8x128xf32> to vector<1x8x128xf32>
    tpu.vector_store %arg6[%c0_13, %c0_14, %c0_15], %24 {strides = array<i32>} : memref<1x8x128xf32, #tpu.memory_space<vmem>>, vector<1x8x128xf32>,
    return
  }
  func.func @transform_0(%arg0: i32) -> (i32, i32) {
    %c0_i32 = arith.constant 0 : i32
    %c0_i32_0 = arith.constant 0 : i32
    return %arg0, %c0_i32 : i32, i32
  }
  func.func @transform_1(%arg0: i32) -> (i32, i32) {
    %c0_i32 = arith.constant 0 : i32
    %c0_i32_0 = arith.constant 0 : i32
    %c0_i32_1 = arith.constant 0 : i32
    return %c0_i32, %c0_i32_0 : i32, i32
  }
  func.func @transform_2(%arg0: i32) -> (i32, i32) {
    %c0_i32 = arith.constant 0 : i32
    %c0_i32_0 = arith.constant 0 : i32
    %c0_i32_1 = arith.constant 0 : i32
    return %c0_i32, %c0_i32_0 : i32, i32
  }
  func.func @transform_3(%arg0: i32) -> (i32, i32) {
    %c0_i32 = arith.constant 0 : i32
    %c0_i32_0 = arith.constant 0 : i32
    %c0_i32_1 = arith.constant 0 : i32
    return %c0_i32, %c0_i32_0 : i32, i32
  }
  func.func @transform_4(%arg0: i32) -> (i32, i32) {
    %c0_i32 = arith.constant 0 : i32
    %c0_i32_0 = arith.constant 0 : i32
    return %arg0, %c0_i32 : i32, i32
  }
  func.func @transform_5(%arg0: i32) -> (i32, i32, i32) {
    %c0_i32 = arith.constant 0 : i32
    %c0_i32_0 = arith.constant 0 : i32
    %c0_i32_1 = arith.constant 0 : i32
    return %arg0, %c0_i32, %c0_i32_0 : i32, i32, i32
  }
}

module attributes {stable_mosaic.version = 11 : i64} {
  func.func @_bn_relu_conv3x3_kernel(%arg0: i32, %arg1: memref<1x16x16x128xbf16, #tpu.memory_space<vmem>>, %arg2: memref<1x128xf32, #tpu.memory_space<vmem>>, %arg3: memref<1x128xf32, #tpu.memory_space<vmem>>, %arg4: memref<3x384x128xbf16, #tpu.memory_space<vmem>>, %arg5: memref<1x16x16x128xbf16, #tpu.memory_space<vmem>>, %arg6: memref<18x16x384xbf16, #tpu.memory_space<vmem>>) attributes {dimension_semantics = [#tpu.dimension_semantics<parallel>], iteration_bounds = array<i64: 2>, scalar_prefetch = 0 : i64, scratch_operands = 1 : i64, tpu.core_type = #tpu.core_type<tc>, window_params = [{transform_indices = @transform_0, window_bounds = array<i64: 1, 16, 16, 128>}, {pipeline_mode = #tpu.pipeline_mode<synchronous>, transform_indices = @transform_1, window_bounds = array<i64: 1, 128>}, {pipeline_mode = #tpu.pipeline_mode<synchronous>, transform_indices = @transform_2, window_bounds = array<i64: 1, 128>}, {pipeline_mode = #tpu.pipeline_mode<synchronous>, transform_indices = @transform_3, window_bounds = array<i64: 3, 384, 128>}, {transform_indices = @transform_4, window_bounds = array<i64: 1, 16, 16, 128>}]} {
    %c0 = arith.constant 0 : index
    %c0_0 = arith.constant 0 : index
    %0 = vector.load %arg2[%c0, %c0_0] : memref<1x128xf32, #tpu.memory_space<vmem>>, vector<1x128xf32>
    %1 = vector.shape_cast %0 : vector<1x128xf32> to vector<1x1x128xf32>
    %c0_1 = arith.constant 0 : index
    %c0_2 = arith.constant 0 : index
    %2 = vector.load %arg3[%c0_1, %c0_2] : memref<1x128xf32, #tpu.memory_space<vmem>>, vector<1x128xf32>
    %3 = vector.shape_cast %2 : vector<1x128xf32> to vector<1x1x128xf32>
    %cst = arith.constant 0.000000e+00 : bf16
    %4 = vector.broadcast %cst : bf16 to vector<16x384xbf16>
    %c0_3 = arith.constant 0 : index
    %c0_4 = arith.constant 0 : index
    %c0_5 = arith.constant 0 : index
    %5 = vector.load %arg6[%c0_3, %c0_4, %c0_5] : memref<18x16x384xbf16, #tpu.memory_space<vmem>>, vector<1x16x384xbf16>
    %6 = vector.shape_cast %5 : vector<1x16x384xbf16> to vector<16x384xbf16>
    %7 = vector.shape_cast %4 : vector<16x384xbf16> to vector<1x16x384xbf16>
    tpu.vector_store %arg6[%c0_3, %c0_4, %c0_5], %7 {strides = array<i32>} : memref<18x16x384xbf16, #tpu.memory_space<vmem>>, vector<1x16x384xbf16>,
    %c17 = arith.constant 17 : index
    %c0_6 = arith.constant 0 : index
    %c0_7 = arith.constant 0 : index
    %8 = vector.load %arg6[%c17, %c0_6, %c0_7] : memref<18x16x384xbf16, #tpu.memory_space<vmem>>, vector<1x16x384xbf16>
    %9 = vector.shape_cast %8 : vector<1x16x384xbf16> to vector<16x384xbf16>
    %10 = vector.shape_cast %4 : vector<16x384xbf16> to vector<1x16x384xbf16>
    tpu.vector_store %arg6[%c17, %c0_6, %c0_7], %10 {strides = array<i32>} : memref<18x16x384xbf16, #tpu.memory_space<vmem>>, vector<1x16x384xbf16>,
    %c0_i32 = arith.constant 0 : i32
    %c8_i32 = arith.constant 8 : i32
    %11 = arith.muli %c0_i32, %c8_i32 : i32
    %c0_8 = arith.constant 0 : index
    %12 = arith.index_cast %11 : i32 to index
    %c0_9 = arith.constant 0 : index
    %c0_10 = arith.constant 0 : index
    %13 = vector.load %arg1[%c0_8, %12, %c0_9, %c0_10] : memref<1x16x16x128xbf16, #tpu.memory_space<vmem>>, vector<1x8x16x128xbf16>
    %14 = vector.shape_cast %13 : vector<1x8x16x128xbf16> to vector<8x16x128xbf16>
    %15 = arith.extf %14 : vector<8x16x128xbf16> to vector<8x16x128xf32>
    %16 = vector.broadcast %1 : vector<1x1x128xf32> to vector<8x16x128xf32>
    %17 = arith.mulf %15, %16 : vector<8x16x128xf32>
    %18 = vector.broadcast %3 : vector<1x1x128xf32> to vector<8x16x128xf32>
    %19 = arith.addf %17, %18 : vector<8x16x128xf32>
    %cst_11 = arith.constant 0.000000e+00 : f32
    %20 = vector.broadcast %cst_11 : f32 to vector<8x16x128xf32>
    %21 = arith.maximumf %19, %20 : vector<8x16x128xf32>
    %22 = arith.truncf %21 : vector<8x16x128xf32> to vector<8x16x128xbf16>
    %cst_12 = arith.constant 0.000000e+00 : bf16
    %23 = vector.broadcast %cst_12 : bf16 to vector<8x1x128xbf16>
    %24 = vector.extract_strided_slice %22 {offsets = [0, 0, 0], sizes = [8, 15, 128], strides = [1, 1, 1]} : vector<8x16x128xbf16> to vector<8x15x128xbf16>
    %25 = tpu.concatenate %23, %24 in 1 : vector<8x1x128xbf16>, vector<8x15x128xbf16> -> vector<8x16x128xbf16>
    %c1_i32 = arith.constant 1 : i32
    %26 = arith.addi %11, %c1_i32 : i32
    %27 = arith.index_cast %26 : i32 to index
    %c0_13 = arith.constant 0 : index
    %c0_14 = arith.constant 0 : index
    %28 = vector.load %arg6[%27, %c0_13, %c0_14] : memref<18x16x384xbf16, #tpu.memory_space<vmem>>, vector<8x16x128xbf16>
    tpu.vector_store %arg6[%27, %c0_13, %c0_14], %25 {strides = array<i32>} : memref<18x16x384xbf16, #tpu.memory_space<vmem>>, vector<8x16x128xbf16>,
    %c1_i32_15 = arith.constant 1 : i32
    %29 = arith.addi %11, %c1_i32_15 : i32
    %30 = arith.index_cast %29 : i32 to index
    %c0_16 = arith.constant 0 : index
    %c128 = arith.constant 128 : index
    %31 = vector.load %arg6[%30, %c0_16, %c128] : memref<18x16x384xbf16, #tpu.memory_space<vmem>>, vector<8x16x128xbf16>
    tpu.vector_store %arg6[%30, %c0_16, %c128], %22 {strides = array<i32>} : memref<18x16x384xbf16, #tpu.memory_space<vmem>>, vector<8x16x128xbf16>,
    %32 = vector.extract_strided_slice %22 {offsets = [0, 1, 0], sizes = [8, 15, 128], strides = [1, 1, 1]} : vector<8x16x128xbf16> to vector<8x15x128xbf16>
    %33 = tpu.concatenate %32, %23 in 1 : vector<8x15x128xbf16>, vector<8x1x128xbf16> -> vector<8x16x128xbf16>
    %c1_i32_17 = arith.constant 1 : i32
    %34 = arith.addi %11, %c1_i32_17 : i32
    %35 = arith.index_cast %34 : i32 to index
    %c0_18 = arith.constant 0 : index
    %c256 = arith.constant 256 : index
    %36 = vector.load %arg6[%35, %c0_18, %c256] : memref<18x16x384xbf16, #tpu.memory_space<vmem>>, vector<8x16x128xbf16>
    tpu.vector_store %arg6[%35, %c0_18, %c256], %33 {strides = array<i32>} : memref<18x16x384xbf16, #tpu.memory_space<vmem>>, vector<8x16x128xbf16>,
    %c1_i32_19 = arith.constant 1 : i32
    %c8_i32_20 = arith.constant 8 : i32
    %37 = arith.muli %c1_i32_19, %c8_i32_20 : i32
    %c0_21 = arith.constant 0 : index
    %38 = arith.index_cast %37 : i32 to index
    %c0_22 = arith.constant 0 : index
    %c0_23 = arith.constant 0 : index
    %39 = vector.load %arg1[%c0_21, %38, %c0_22, %c0_23] : memref<1x16x16x128xbf16, #tpu.memory_space<vmem>>, vector<1x8x16x128xbf16>
    %40 = vector.shape_cast %39 : vector<1x8x16x128xbf16> to vector<8x16x128xbf16>
    %41 = arith.extf %40 : vector<8x16x128xbf16> to vector<8x16x128xf32>
    %42 = vector.broadcast %1 : vector<1x1x128xf32> to vector<8x16x128xf32>
    %43 = arith.mulf %41, %42 : vector<8x16x128xf32>
    %44 = vector.broadcast %3 : vector<1x1x128xf32> to vector<8x16x128xf32>
    %45 = arith.addf %43, %44 : vector<8x16x128xf32>
    %cst_24 = arith.constant 0.000000e+00 : f32
    %46 = vector.broadcast %cst_24 : f32 to vector<8x16x128xf32>
    %47 = arith.maximumf %45, %46 : vector<8x16x128xf32>
    %48 = arith.truncf %47 : vector<8x16x128xf32> to vector<8x16x128xbf16>
    %cst_25 = arith.constant 0.000000e+00 : bf16
    %49 = vector.broadcast %cst_25 : bf16 to vector<8x1x128xbf16>
    %50 = vector.extract_strided_slice %48 {offsets = [0, 0, 0], sizes = [8, 15, 128], strides = [1, 1, 1]} : vector<8x16x128xbf16> to vector<8x15x128xbf16>
    %51 = tpu.concatenate %49, %50 in 1 : vector<8x1x128xbf16>, vector<8x15x128xbf16> -> vector<8x16x128xbf16>
    %c1_i32_26 = arith.constant 1 : i32
    %52 = arith.addi %37, %c1_i32_26 : i32
    %53 = arith.index_cast %52 : i32 to index
    %c0_27 = arith.constant 0 : index
    %c0_28 = arith.constant 0 : index
    %54 = vector.load %arg6[%53, %c0_27, %c0_28] : memref<18x16x384xbf16, #tpu.memory_space<vmem>>, vector<8x16x128xbf16>
    tpu.vector_store %arg6[%53, %c0_27, %c0_28], %51 {strides = array<i32>} : memref<18x16x384xbf16, #tpu.memory_space<vmem>>, vector<8x16x128xbf16>,
    %c1_i32_29 = arith.constant 1 : i32
    %55 = arith.addi %37, %c1_i32_29 : i32
    %56 = arith.index_cast %55 : i32 to index
    %c0_30 = arith.constant 0 : index
    %c128_31 = arith.constant 128 : index
    %57 = vector.load %arg6[%56, %c0_30, %c128_31] : memref<18x16x384xbf16, #tpu.memory_space<vmem>>, vector<8x16x128xbf16>
    tpu.vector_store %arg6[%56, %c0_30, %c128_31], %48 {strides = array<i32>} : memref<18x16x384xbf16, #tpu.memory_space<vmem>>, vector<8x16x128xbf16>,
    %58 = vector.extract_strided_slice %48 {offsets = [0, 1, 0], sizes = [8, 15, 128], strides = [1, 1, 1]} : vector<8x16x128xbf16> to vector<8x15x128xbf16>
    %59 = tpu.concatenate %58, %49 in 1 : vector<8x15x128xbf16>, vector<8x1x128xbf16> -> vector<8x16x128xbf16>
    %c1_i32_32 = arith.constant 1 : i32
    %60 = arith.addi %37, %c1_i32_32 : i32
    %61 = arith.index_cast %60 : i32 to index
    %c0_33 = arith.constant 0 : index
    %c256_34 = arith.constant 256 : index
    %62 = vector.load %arg6[%61, %c0_33, %c256_34] : memref<18x16x384xbf16, #tpu.memory_space<vmem>>, vector<8x16x128xbf16>
    tpu.vector_store %arg6[%61, %c0_33, %c256_34], %59 {strides = array<i32>} : memref<18x16x384xbf16, #tpu.memory_space<vmem>>, vector<8x16x128xbf16>,
    %c2_i32 = arith.constant 2 : i32
    %c0_i32_35 = arith.constant 0 : i32
    %c8_i32_36 = arith.constant 8 : i32
    %63 = arith.muli %c0_i32_35, %c8_i32_36 : i32
    %cst_37 = arith.constant 0.000000e+00 : f32
    %64 = vector.broadcast %cst_37 : f32 to vector<128x128xf32>
    %c0_i32_38 = arith.constant 0 : i32
    %65 = arith.addi %63, %c0_i32_38 : i32
    %66 = arith.index_cast %65 : i32 to index
    %c0_39 = arith.constant 0 : index
    %c0_40 = arith.constant 0 : index
    %67 = vector.load %arg6[%66, %c0_39, %c0_40] : memref<18x16x384xbf16, #tpu.memory_space<vmem>>, vector<8x16x384xbf16>
    %68 = vector.shape_cast %67 : vector<8x16x384xbf16> to vector<128x384xbf16>
    %c0_41 = arith.constant 0 : index
    %c0_42 = arith.constant 0 : index
    %c0_43 = arith.constant 0 : index
    %69 = vector.load %arg4[%c0_41, %c0_42, %c0_43] : memref<3x384x128xbf16, #tpu.memory_space<vmem>>, vector<1x384x128xbf16>
    %70 = vector.shape_cast %69 : vector<1x384x128xbf16> to vector<384x128xbf16>
    %cst_44 = arith.constant dense<0.000000e+00> : vector<128x128xf32>
    %71 = tpu.matmul %68, %70, %cst_44 {dimension_numbers = #tpu.dot_dimension_numbers<[1], [0], [0], [1], [0, 0, 1, 1], [], []>} : vector<128x384xbf16>, vector<384x128xbf16>, vector<128x128xf32> -> vector<128x128xf32>
    %72 = arith.addf %64, %71 : vector<128x128xf32>
    %c1_i32_45 = arith.constant 1 : i32
    %73 = arith.addi %63, %c1_i32_45 : i32
    %74 = arith.index_cast %73 : i32 to index
    %c0_46 = arith.constant 0 : index
    %c0_47 = arith.constant 0 : index
    %75 = vector.load %arg6[%74, %c0_46, %c0_47] : memref<18x16x384xbf16, #tpu.memory_space<vmem>>, vector<8x16x384xbf16>
    %76 = vector.shape_cast %75 : vector<8x16x384xbf16> to vector<128x384xbf16>
    %c1 = arith.constant 1 : index
    %c0_48 = arith.constant 0 : index
    %c0_49 = arith.constant 0 : index
    %77 = vector.load %arg4[%c1, %c0_48, %c0_49] : memref<3x384x128xbf16, #tpu.memory_space<vmem>>, vector<1x384x128xbf16>
    %78 = vector.shape_cast %77 : vector<1x384x128xbf16> to vector<384x128xbf16>
    %cst_50 = arith.constant dense<0.000000e+00> : vector<128x128xf32>
    %79 = tpu.matmul %76, %78, %cst_50 {dimension_numbers = #tpu.dot_dimension_numbers<[1], [0], [0], [1], [0, 0, 1, 1], [], []>} : vector<128x384xbf16>, vector<384x128xbf16>, vector<128x128xf32> -> vector<128x128xf32>
    %80 = arith.addf %72, %79 : vector<128x128xf32>
    %c2_i32_51 = arith.constant 2 : i32
    %81 = arith.addi %63, %c2_i32_51 : i32
    %82 = arith.index_cast %81 : i32 to index
    %c0_52 = arith.constant 0 : index
    %c0_53 = arith.constant 0 : index
    %83 = vector.load %arg6[%82, %c0_52, %c0_53] : memref<18x16x384xbf16, #tpu.memory_space<vmem>>, vector<8x16x384xbf16>
    %84 = vector.shape_cast %83 : vector<8x16x384xbf16> to vector<128x384xbf16>
    %c2 = arith.constant 2 : index
    %c0_54 = arith.constant 0 : index
    %c0_55 = arith.constant 0 : index
    %85 = vector.load %arg4[%c2, %c0_54, %c0_55] : memref<3x384x128xbf16, #tpu.memory_space<vmem>>, vector<1x384x128xbf16>
    %86 = vector.shape_cast %85 : vector<1x384x128xbf16> to vector<384x128xbf16>
    %cst_56 = arith.constant dense<0.000000e+00> : vector<128x128xf32>
    %87 = tpu.matmul %84, %86, %cst_56 {dimension_numbers = #tpu.dot_dimension_numbers<[1], [0], [0], [1], [0, 0, 1, 1], [], []>} : vector<128x384xbf16>, vector<384x128xbf16>, vector<128x128xf32> -> vector<128x128xf32>
    %88 = arith.addf %80, %87 : vector<128x128xf32>
    %89 = vector.shape_cast %88 : vector<128x128xf32> to vector<8x16x128xf32>
    %90 = arith.truncf %89 : vector<8x16x128xf32> to vector<8x16x128xbf16>
    %c0_57 = arith.constant 0 : index
    %91 = arith.index_cast %63 : i32 to index
    %c0_58 = arith.constant 0 : index
    %c0_59 = arith.constant 0 : index
    %92 = vector.load %arg5[%c0_57, %91, %c0_58, %c0_59] : memref<1x16x16x128xbf16, #tpu.memory_space<vmem>>, vector<1x8x16x128xbf16>
    %93 = vector.shape_cast %92 : vector<1x8x16x128xbf16> to vector<8x16x128xbf16>
    %94 = vector.shape_cast %90 : vector<8x16x128xbf16> to vector<1x8x16x128xbf16>
    tpu.vector_store %arg5[%c0_57, %91, %c0_58, %c0_59], %94 {strides = array<i32>} : memref<1x16x16x128xbf16, #tpu.memory_space<vmem>>, vector<1x8x16x128xbf16>,
    %c1_i32_60 = arith.constant 1 : i32
    %c8_i32_61 = arith.constant 8 : i32
    %95 = arith.muli %c1_i32_60, %c8_i32_61 : i32
    %cst_62 = arith.constant 0.000000e+00 : f32
    %96 = vector.broadcast %cst_62 : f32 to vector<128x128xf32>
    %c0_i32_63 = arith.constant 0 : i32
    %97 = arith.addi %95, %c0_i32_63 : i32
    %98 = arith.index_cast %97 : i32 to index
    %c0_64 = arith.constant 0 : index
    %c0_65 = arith.constant 0 : index
    %99 = vector.load %arg6[%98, %c0_64, %c0_65] : memref<18x16x384xbf16, #tpu.memory_space<vmem>>, vector<8x16x384xbf16>
    %100 = vector.shape_cast %99 : vector<8x16x384xbf16> to vector<128x384xbf16>
    %c0_66 = arith.constant 0 : index
    %c0_67 = arith.constant 0 : index
    %c0_68 = arith.constant 0 : index
    %101 = vector.load %arg4[%c0_66, %c0_67, %c0_68] : memref<3x384x128xbf16, #tpu.memory_space<vmem>>, vector<1x384x128xbf16>
    %102 = vector.shape_cast %101 : vector<1x384x128xbf16> to vector<384x128xbf16>
    %cst_69 = arith.constant dense<0.000000e+00> : vector<128x128xf32>
    %103 = tpu.matmul %100, %102, %cst_69 {dimension_numbers = #tpu.dot_dimension_numbers<[1], [0], [0], [1], [0, 0, 1, 1], [], []>} : vector<128x384xbf16>, vector<384x128xbf16>, vector<128x128xf32> -> vector<128x128xf32>
    %104 = arith.addf %96, %103 : vector<128x128xf32>
    %c1_i32_70 = arith.constant 1 : i32
    %105 = arith.addi %95, %c1_i32_70 : i32
    %106 = arith.index_cast %105 : i32 to index
    %c0_71 = arith.constant 0 : index
    %c0_72 = arith.constant 0 : index
    %107 = vector.load %arg6[%106, %c0_71, %c0_72] : memref<18x16x384xbf16, #tpu.memory_space<vmem>>, vector<8x16x384xbf16>
    %108 = vector.shape_cast %107 : vector<8x16x384xbf16> to vector<128x384xbf16>
    %c1_73 = arith.constant 1 : index
    %c0_74 = arith.constant 0 : index
    %c0_75 = arith.constant 0 : index
    %109 = vector.load %arg4[%c1_73, %c0_74, %c0_75] : memref<3x384x128xbf16, #tpu.memory_space<vmem>>, vector<1x384x128xbf16>
    %110 = vector.shape_cast %109 : vector<1x384x128xbf16> to vector<384x128xbf16>
    %cst_76 = arith.constant dense<0.000000e+00> : vector<128x128xf32>
    %111 = tpu.matmul %108, %110, %cst_76 {dimension_numbers = #tpu.dot_dimension_numbers<[1], [0], [0], [1], [0, 0, 1, 1], [], []>} : vector<128x384xbf16>, vector<384x128xbf16>, vector<128x128xf32> -> vector<128x128xf32>
    %112 = arith.addf %104, %111 : vector<128x128xf32>
    %c2_i32_77 = arith.constant 2 : i32
    %113 = arith.addi %95, %c2_i32_77 : i32
    %114 = arith.index_cast %113 : i32 to index
    %c0_78 = arith.constant 0 : index
    %c0_79 = arith.constant 0 : index
    %115 = vector.load %arg6[%114, %c0_78, %c0_79] : memref<18x16x384xbf16, #tpu.memory_space<vmem>>, vector<8x16x384xbf16>
    %116 = vector.shape_cast %115 : vector<8x16x384xbf16> to vector<128x384xbf16>
    %c2_80 = arith.constant 2 : index
    %c0_81 = arith.constant 0 : index
    %c0_82 = arith.constant 0 : index
    %117 = vector.load %arg4[%c2_80, %c0_81, %c0_82] : memref<3x384x128xbf16, #tpu.memory_space<vmem>>, vector<1x384x128xbf16>
    %118 = vector.shape_cast %117 : vector<1x384x128xbf16> to vector<384x128xbf16>
    %cst_83 = arith.constant dense<0.000000e+00> : vector<128x128xf32>
    %119 = tpu.matmul %116, %118, %cst_83 {dimension_numbers = #tpu.dot_dimension_numbers<[1], [0], [0], [1], [0, 0, 1, 1], [], []>} : vector<128x384xbf16>, vector<384x128xbf16>, vector<128x128xf32> -> vector<128x128xf32>
    %120 = arith.addf %112, %119 : vector<128x128xf32>
    %121 = vector.shape_cast %120 : vector<128x128xf32> to vector<8x16x128xf32>
    %122 = arith.truncf %121 : vector<8x16x128xf32> to vector<8x16x128xbf16>
    %c0_84 = arith.constant 0 : index
    %123 = arith.index_cast %95 : i32 to index
    %c0_85 = arith.constant 0 : index
    %c0_86 = arith.constant 0 : index
    %124 = vector.load %arg5[%c0_84, %123, %c0_85, %c0_86] : memref<1x16x16x128xbf16, #tpu.memory_space<vmem>>, vector<1x8x16x128xbf16>
    %125 = vector.shape_cast %124 : vector<1x8x16x128xbf16> to vector<8x16x128xbf16>
    %126 = vector.shape_cast %122 : vector<8x16x128xbf16> to vector<1x8x16x128xbf16>
    tpu.vector_store %arg5[%c0_84, %123, %c0_85, %c0_86], %126 {strides = array<i32>} : memref<1x16x16x128xbf16, #tpu.memory_space<vmem>>, vector<1x8x16x128xbf16>,
    %c2_i32_87 = arith.constant 2 : i32
    return
  }
  func.func @transform_0(%arg0: i32) -> (i32, i32, i32, i32) {
    %c0_i32 = arith.constant 0 : i32
    %c0_i32_0 = arith.constant 0 : i32
    %c0_i32_1 = arith.constant 0 : i32
    %c0_i32_2 = arith.constant 0 : i32
    return %arg0, %c0_i32, %c0_i32_0, %c0_i32_1 : i32, i32, i32, i32
  }
  func.func @transform_1(%arg0: i32) -> (i32, i32) {
    %c0_i32 = arith.constant 0 : i32
    %c0_i32_0 = arith.constant 0 : i32
    %c0_i32_1 = arith.constant 0 : i32
    return %c0_i32, %c0_i32_0 : i32, i32
  }
  func.func @transform_2(%arg0: i32) -> (i32, i32) {
    %c0_i32 = arith.constant 0 : i32
    %c0_i32_0 = arith.constant 0 : i32
    %c0_i32_1 = arith.constant 0 : i32
    return %c0_i32, %c0_i32_0 : i32, i32
  }
  func.func @transform_3(%arg0: i32) -> (i32, i32, i32) {
    %c0_i32 = arith.constant 0 : i32
    %c0_i32_0 = arith.constant 0 : i32
    %c0_i32_1 = arith.constant 0 : i32
    %c0_i32_2 = arith.constant 0 : i32
    return %c0_i32, %c0_i32_0, %c0_i32_1 : i32, i32, i32
  }
  func.func @transform_4(%arg0: i32) -> (i32, i32, i32, i32) {
    %c0_i32 = arith.constant 0 : i32
    %c0_i32_0 = arith.constant 0 : i32
    %c0_i32_1 = arith.constant 0 : i32
    %c0_i32_2 = arith.constant 0 : i32
    return %arg0, %c0_i32, %c0_i32_0, %c0_i32_1 : i32, i32, i32, i32
  }
}

</mosaic_0001>

<llo_original>
// kernel: dense_layer_forward.2
$region0: #{dense_layer_forward.2}
  #allocation0 [shape = 'u32[]', space=smem, size = 0x4, offset = 0x4, fixed_abs, tag = 'smem constant byte address 0x4 - core index']
  #allocation1 [shape = 'u32[72,128]{1,0:T(1,128)}', space=vmem, size = 0x9000, scoped, tag = 'internal scratch']
  %s0 = inlined_call_operand.vmem [shape: bf16[512,8], index: 0, kind: input, shape index: {}]
  %s1 = inlined_call_operand.vmem [shape: f32[1,8], index: 1, kind: input, shape index: {}]
  %s2 = inlined_call_operand.vmem [shape: f32[1,8], index: 2, kind: input, shape index: {}]
  %s3 = inlined_call_operand.vmem [shape: bf16[8,128], index: 3, kind: input, shape index: {}]
  %s4 = inlined_call_operand.vmem [shape: bf16[512,128], index: 4, kind: output, shape index: {0}]
  %s5 = inlined_call_operand.vmem [shape: f32[1,8,128], index: 5, kind: output, shape index: {1}]
  %6 = xla_tuple %s4, %s5
  %s7 = sld [smem:[#allocation0]]
  $region34: #{dense_layer_forward.2} parent=0
    _
  %s9 = ssub.s32 1, %s7
  %s10 = scalar_select 0, %s9, %s7
  // Predicated region
  $region2: #{dense_layer_forward.2} parent=0 // pred_check
    _
  $region3: #{dense_layer_forward.2} parent=0 // pred_check_branch
    %12 = sbr.rel (0) target = $region5
  $region4: #{dense_layer_forward.2} parent=0 // pred_region
    _
  $region5: #{dense_layer_forward.2} parent=0 // pred_fallthru
    _
  // Predicated region
  $region6: #{dense_layer_forward.2} parent=0 // pred_check
    _
  $region7: #{dense_layer_forward.2} parent=0 // pred_check_branch
    %14 = sbr.rel (0) target = $region9
  $region8: #{dense_layer_forward.2} parent=0 // pred_region
    _
  $region9: #{dense_layer_forward.2} parent=0 // pred_fallthru
    _
  // Predicated region
  $region10: #{dense_layer_forward.2} parent=0 // pred_check
    _
  $region11: #{dense_layer_forward.2} parent=0 // pred_check_branch
    %16 = sbr.rel (0) target = $region13
  $region12: #{dense_layer_forward.2} parent=0 // pred_region
    _
  $region13: #{dense_layer_forward.2} parent=0 // pred_fallthru
    _
  // Predicated region
  $region14: #{dense_layer_forward.2} parent=0 // pred_check
    _
  $region15: #{dense_layer_forward.2} parent=0 // pred_check_branch
    %18 = sbr.rel (0) target = $region17
  $region16: #{dense_layer_forward.2} parent=0 // pred_region
    _
  $region17: #{dense_layer_forward.2} parent=0 // pred_fallthru
    _
  %v20 = vld [vmem:[%s0] sm:$0xf]
  %v21 = vld [vmem:[%s0 + $0x4] sm:$0xf]
  %v22 = vld [vmem:[%s0 + $0x8] sm:$0xf]
  %v23 = vld [vmem:[%s0 + $0xc] sm:$0xf]
  %v24 = vld [vmem:[%s0 + $0x10] sm:$0xf]
  %v25 = vld [vmem:[%s0 + $0x14] sm:$0xf]
  %v26 = vld [vmem:[%s0 + $0x18] sm:$0xf]
  %v27 = vld [vmem:[%s0 + $0x1c] sm:$0xf]
  %v28 = vld [vmem:[%s0 + $0x20] sm:$0xf]
  %v29 = vld [vmem:[%s0 + $0x24] sm:$0xf]
  %v30 = vld [vmem:[%s0 + $0x28] sm:$0xf]
  %v31 = vld [vmem:[%s0 + $0x2c] sm:$0xf]
  %v32 = vld [vmem:[%s0 + $0x30] sm:$0xf]
  %v33 = vld [vmem:[%s0 + $0x34] sm:$0xf]
  %v34 = vld [vmem:[%s0 + $0x38] sm:$0xf]
  %v35 = vld [vmem:[%s0 + $0x3c] sm:$0xf]
  %v36 = vld [vmem:[%s0 + $0x40] sm:$0xf]
  %v37 = vld [vmem:[%s0 + $0x44] sm:$0xf]
  %v38 = vld [vmem:[%s0 + $0x48] sm:$0xf]
  %v39 = vld [vmem:[%s0 + $0x4c] sm:$0xf]
  %v40 = vld [vmem:[%s0 + $0x50] sm:$0xf]
  %v41 = vld [vmem:[%s0 + $0x54] sm:$0xf]
  %v42 = vld [vmem:[%s0 + $0x58] sm:$0xf]
  %v43 = vld [vmem:[%s0 + $0x5c] sm:$0xf]
  %v44 = vld [vmem:[%s0 + $0x60] sm:$0xf]
  %v45 = vld [vmem:[%s0 + $0x64] sm:$0xf]
  %v46 = vld [vmem:[%s0 + $0x68] sm:$0xf]
  %v47 = vld [vmem:[%s0 + $0x6c] sm:$0xf]
  %v48 = vld [vmem:[%s0 + $0x70] sm:$0xf]
  %v49 = vld [vmem:[%s0 + $0x74] sm:$0xf]
  %v50 = vld [vmem:[%s0 + $0x78] sm:$0xf]
  %v51 = vld [vmem:[%s0 + $0x7c] sm:$0xf]
  %v52 = vld [vmem:[%s0 + $0x80] sm:$0xf]
  %v53 = vld [vmem:[%s0 + $0x84] sm:$0xf]
  %v54 = vld [vmem:[%s0 + $0x88] sm:$0xf]
  %v55 = vld [vmem:[%s0 + $0x8c] sm:$0xf]
  %v56 = vld [vmem:[%s0 + $0x90] sm:$0xf]
  %v57 = vld [vmem:[%s0 + $0x94] sm:$0xf]
  %v58 = vld [vmem:[%s0 + $0x98] sm:$0xf]
  %v59 = vld [vmem:[%s0 + $0x9c] sm:$0xf]
  %v60 = vld [vmem:[%s0 + $0xa0] sm:$0xf]
  %v61 = vld [vmem:[%s0 + $0xa4] sm:$0xf]
  %v62 = vld [vmem:[%s0 + $0xa8] sm:$0xf]
  %v63 = vld [vmem:[%s0 + $0xac] sm:$0xf]
  %v64 = vld [vmem:[%s0 + $0xb0] sm:$0xf]
  %v65 = vld [vmem:[%s0 + $0xb4] sm:$0xf]
  %v66 = vld [vmem:[%s0 + $0xb8] sm:$0xf]
  %v67 = vld [vmem:[%s0 + $0xbc] sm:$0xf]
  %v68 = vld [vmem:[%s0 + $0xc0] sm:$0xf]
  %v69 = vld [vmem:[%s0 + $0xc4] sm:$0xf]
  %v70 = vld [vmem:[%s0 + $0xc8] sm:$0xf]
  %v71 = vld [vmem:[%s0 + $0xcc] sm:$0xf]
  %v72 = vld [vmem:[%s0 + $0xd0] sm:$0xf]
  %v73 = vld [vmem:[%s0 + $0xd4] sm:$0xf]
  %v74 = vld [vmem:[%s0 + $0xd8] sm:$0xf]
  %v75 = vld [vmem:[%s0 + $0xdc] sm:$0xf]
  %v76 = vld [vmem:[%s0 + $0xe0] sm:$0xf]
  %v77 = vld [vmem:[%s0 + $0xe4] sm:$0xf]
  %v78 = vld [vmem:[%s0 + $0xe8] sm:$0xf]
  %v79 = vld [vmem:[%s0 + $0xec] sm:$0xf]
  %v80 = vld [vmem:[%s0 + $0xf0] sm:$0xf]
  %v81 = vld [vmem:[%s0 + $0xf4] sm:$0xf]
  %v82 = vld [vmem:[%s0 + $0xf8] sm:$0xf]
  %v83 = vld [vmem:[%s0 + $0xfc] sm:$0xf]
  %v84 = vunpack.c.l.bf16 %v20
  %v85 = vunpack.c.l.bf16 %v21
  %v86 = vunpack.c.l.bf16 %v22
  %v87 = vunpack.c.l.bf16 %v23
  %v88 = vunpack.c.l.bf16 %v24
  %v89 = vunpack.c.l.bf16 %v25
  %v90 = vunpack.c.l.bf16 %v26
  %v91 = vunpack.c.l.bf16 %v27
  %v92 = vunpack.c.l.bf16 %v28
  %v93 = vunpack.c.l.bf16 %v29
  %v94 = vunpack.c.l.bf16 %v30
  %v95 = vunpack.c.l.bf16 %v31
  %v96 = vunpack.c.l.bf16 %v32
  %v97 = vunpack.c.l.bf16 %v33
  %v98 = vunpack.c.l.bf16 %v34
  %v99 = vunpack.c.l.bf16 %v35
  %v100 = vunpack.c.l.bf16 %v36
  %v101 = vunpack.c.l.bf16 %v37
  %v102 = vunpack.c.l.bf16 %v38
  %v103 = vunpack.c.l.bf16 %v39
  %v104 = vunpack.c.l.bf16 %v40
  %v105 = vunpack.c.l.bf16 %v41
  %v106 = vunpack.c.l.bf16 %v42
  %v107 = vunpack.c.l.bf16 %v43
  %v108 = vunpack.c.l.bf16 %v44
  %v109 = vunpack.c.l.bf16 %v45
  %v110 = vunpack.c.l.bf16 %v46
  %v111 = vunpack.c.l.bf16 %v47
  %v112 = vunpack.c.l.bf16 %v48
  %v113 = vunpack.c.l.bf16 %v49
  %v114 = vunpack.c.l.bf16 %v50
  %v115 = vunpack.c.l.bf16 %v51
  %v116 = vunpack.c.l.bf16 %v52
  %v117 = vunpack.c.l.bf16 %v53
  %v118 = vunpack.c.l.bf16 %v54
  %v119 = vunpack.c.l.bf16 %v55
  %v120 = vunpack.c.l.bf16 %v56
  %v121 = vunpack.c.l.bf16 %v57
  %v122 = vunpack.c.l.bf16 %v58
  %v123 = vunpack.c.l.bf16 %v59
  %v124 = vunpack.c.l.bf16 %v60
  %v125 = vunpack.c.l.bf16 %v61
  %v126 = vunpack.c.l.bf16 %v62
  %v127 = vunpack.c.l.bf16 %v63
  %v128 = vunpack.c.l.bf16 %v64
  %v129 = vunpack.c.l.bf16 %v65
  %v130 = vunpack.c.l.bf16 %v66
  %v131 = vunpack.c.l.bf16 %v67
  %v132 = vunpack.c.l.bf16 %v68
  %v133 = vunpack.c.l.bf16 %v69
  %v134 = vunpack.c.l.bf16 %v70
  %v135 = vunpack.c.l.bf16 %v71
  %v136 = vunpack.c.l.bf16 %v72
  %v137 = vunpack.c.l.bf16 %v73
  %v138 = vunpack.c.l.bf16 %v74
  %v139 = vunpack.c.l.bf16 %v75
  %v140 = vunpack.c.l.bf16 %v76
  %v141 = vunpack.c.l.bf16 %v77
  %v142 = vunpack.c.l.bf16 %v78
  %v143 = vunpack.c.l.bf16 %v79
  %v144 = vunpack.c.l.bf16 %v80
  %v145 = vunpack.c.l.bf16 %v81
  %v146 = vunpack.c.l.bf16 %v82
  %v147 = vunpack.c.l.bf16 %v83
  %v148 = vld [vmem:[%s1] sm:$0x1]
  %v150 = vperm.slane %v148, 0
  %v152 = vmul.f32 %v84, %v150
  %v153 = vmul.f32 %v85, %v150
  %v154 = vmul.f32 %v86, %v150
  %v155 = vmul.f32 %v87, %v150
  %v156 = vmul.f32 %v88, %v150
  %v157 = vmul.f32 %v89, %v150
  %v158 = vmul.f32 %v90, %v150
  %v159 = vmul.f32 %v91, %v150
  %v160 = vmul.f32 %v92, %v150
  %v161 = vmul.f32 %v93, %v150
  %v162 = vmul.f32 %v94, %v150
  %v163 = vmul.f32 %v95, %v150
  %v164 = vmul.f32 %v96, %v150
  %v165 = vmul.f32 %v97, %v150
  %v166 = vmul.f32 %v98, %v150
  %v167 = vmul.f32 %v99, %v150
  %v168 = vmul.f32 %v100, %v150
  %v169 = vmul.f32 %v101, %v150
  %v170 = vmul.f32 %v102, %v150
  %v171 = vmul.f32 %v103, %v150
  %v172 = vmul.f32 %v104, %v150
  %v173 = vmul.f32 %v105, %v150
  %v174 = vmul.f32 %v106, %v150
  %v175 = vmul.f32 %v107, %v150
  %v176 = vmul.f32 %v108, %v150
  %v177 = vmul.f32 %v109, %v150
  %v178 = vmul.f32 %v110, %v150
  %v179 = vmul.f32 %v111, %v150
  %v180 = vmul.f32 %v112, %v150
  %v181 = vmul.f32 %v113, %v150
  %v182 = vmul.f32 %v114, %v150
  %v183 = vmul.f32 %v115, %v150
  %v184 = vmul.f32 %v116, %v150
  %v185 = vmul.f32 %v117, %v150
  %v186 = vmul.f32 %v118, %v150
  %v187 = vmul.f32 %v119, %v150
  %v188 = vmul.f32 %v120, %v150
  %v189 = vmul.f32 %v121, %v150
  %v190 = vmul.f32 %v122, %v150
  %v191 = vmul.f32 %v123, %v150
  %v192 = vmul.f32 %v124, %v150
  %v193 = vmul.f32 %v125, %v150
  %v194 = vmul.f32 %v126, %v150
  %v195 = vmul.f32 %v127, %v150
  %v196 = vmul.f32 %v128, %v150
  %v197 = vmul.f32 %v129, %v150
  %v198 = vmul.f32 %v130, %v150
  %v199 = vmul.f32 %v131, %v150
  %v200 = vmul.f32 %v132, %v150
  %v201 = vmul.f32 %v133, %v150
  %v202 = vmul.f32 %v134, %v150
  %v203 = vmul.f32 %v135, %v150
  %v204 = vmul.f32 %v136, %v150
  %v205 = vmul.f32 %v137, %v150
  %v206 = vmul.f32 %v138, %v150
  %v207 = vmul.f32 %v139, %v150
  %v208 = vmul.f32 %v140, %v150
  %v209 = vmul.f32 %v141, %v150
  %v210 = vmul.f32 %v142, %v150
  %v211 = vmul.f32 %v143, %v150
  %v212 = vmul.f32 %v144, %v150
  %v213 = vmul.f32 %v145, %v150
  %v214 = vmul.f32 %v146, %v150
  %v215 = vmul.f32 %v147, %v150
  %v216 = vld [vmem:[%s2] sm:$0x1]
  %v218 = vperm.slane %v216, 0
  %v220 = vadd.f32 %v152, %v218
  %v221 = vadd.f32 %v153, %v218
  %v222 = vadd.f32 %v154, %v218
  %v223 = vadd.f32 %v155, %v218
  %v224 = vadd.f32 %v156, %v218
  %v225 = vadd.f32 %v157, %v218
  %v226 = vadd.f32 %v158, %v218
  %v227 = vadd.f32 %v159, %v218
  %v228 = vadd.f32 %v160, %v218
  %v229 = vadd.f32 %v161, %v218
  %v230 = vadd.f32 %v162, %v218
  %v231 = vadd.f32 %v163, %v218
  %v232 = vadd.f32 %v164, %v218
  %v233 = vadd.f32 %v165, %v218
  %v234 = vadd.f32 %v166, %v218
  %v235 = vadd.f32 %v167, %v218
  %v236 = vadd.f32 %v168, %v218
  %v237 = vadd.f32 %v169, %v218
  %v238 = vadd.f32 %v170, %v218
  %v239 = vadd.f32 %v171, %v218
  %v240 = vadd.f32 %v172, %v218
  %v241 = vadd.f32 %v173, %v218
  %v242 = vadd.f32 %v174, %v218
  %v243 = vadd.f32 %v175, %v218
  %v244 = vadd.f32 %v176, %v218
  %v245 = vadd.f32 %v177, %v218
  %v246 = vadd.f32 %v178, %v218
  %v247 = vadd.f32 %v179, %v218
  %v248 = vadd.f32 %v180, %v218
  %v249 = vadd.f32 %v181, %v218
  %v250 = vadd.f32 %v182, %v218
  %v251 = vadd.f32 %v183, %v218
  %v252 = vadd.f32 %v184, %v218
  %v253 = vadd.f32 %v185, %v218
  %v254 = vadd.f32 %v186, %v218
  %v255 = vadd.f32 %v187, %v218
  %v256 = vadd.f32 %v188, %v218
  %v257 = vadd.f32 %v189, %v218
  %v258 = vadd.f32 %v190, %v218
  %v259 = vadd.f32 %v191, %v218
  %v260 = vadd.f32 %v192, %v218
  %v261 = vadd.f32 %v193, %v218
  %v262 = vadd.f32 %v194, %v218
  %v263 = vadd.f32 %v195, %v218
  %v264 = vadd.f32 %v196, %v218
  %v265 = vadd.f32 %v197, %v218
  %v266 = vadd.f32 %v198, %v218
  %v267 = vadd.f32 %v199, %v218
  %v268 = vadd.f32 %v200, %v218
  %v269 = vadd.f32 %v201, %v218
  %v270 = vadd.f32 %v202, %v218
  %v271 = vadd.f32 %v203, %v218
  %v272 = vadd.f32 %v204, %v218
  %v273 = vadd.f32 %v205, %v218
  %v274 = vadd.f32 %v206, %v218
  %v275 = vadd.f32 %v207, %v218
  %v276 = vadd.f32 %v208, %v218
  %v277 = vadd.f32 %v209, %v218
  %v278 = vadd.f32 %v210, %v218
  %v279 = vadd.f32 %v211, %v218
  %v280 = vadd.f32 %v212, %v218
  %v281 = vadd.f32 %v213, %v218
  %v282 = vadd.f32 %v214, %v218
  %v283 = vadd.f32 %v215, %v218
  %v284 = vmax.f32 %v220, 0.0
  %v285 = vmax.f32 %v221, 0.0
  %v286 = vmax.f32 %v222, 0.0
  %v287 = vmax.f32 %v223, 0.0
  %v288 = vmax.f32 %v224, 0.0
  %v289 = vmax.f32 %v225, 0.0
  %v290 = vmax.f32 %v226, 0.0
  %v291 = vmax.f32 %v227, 0.0
  %v292 = vmax.f32 %v228, 0.0
  %v293 = vmax.f32 %v229, 0.0
  %v294 = vmax.f32 %v230, 0.0
  %v295 = vmax.f32 %v231, 0.0
  %v296 = vmax.f32 %v232, 0.0
  %v297 = vmax.f32 %v233, 0.0
  %v298 = vmax.f32 %v234, 0.0
  %v299 = vmax.f32 %v235, 0.0
  %v300 = vmax.f32 %v236, 0.0
  %v301 = vmax.f32 %v237, 0.0
  %v302 = vmax.f32 %v238, 0.0
  %v303 = vmax.f32 %v239, 0.0
  %v304 = vmax.f32 %v240, 0.0
  %v305 = vmax.f32 %v241, 0.0
  %v306 = vmax.f32 %v242, 0.0
  %v307 = vmax.f32 %v243, 0.0
  %v308 = vmax.f32 %v244, 0.0
  %v309 = vmax.f32 %v245, 0.0
  %v310 = vmax.f32 %v246, 0.0
  %v311 = vmax.f32 %v247, 0.0
  %v312 = vmax.f32 %v248, 0.0
  %v313 = vmax.f32 %v249, 0.0
  %v314 = vmax.f32 %v250, 0.0
  %v315 = vmax.f32 %v251, 0.0
  %v316 = vmax.f32 %v252, 0.0
  %v317 = vmax.f32 %v253, 0.0
  %v318 = vmax.f32 %v254, 0.0
  %v319 = vmax.f32 %v255, 0.0
  %v320 = vmax.f32 %v256, 0.0
  %v321 = vmax.f32 %v257, 0.0
  %v322 = vmax.f32 %v258, 0.0
  %v323 = vmax.f32 %v259, 0.0
  %v324 = vmax.f32 %v260, 0.0
  %v325 = vmax.f32 %v261, 0.0
  %v326 = vmax.f32 %v262, 0.0
  %v327 = vmax.f32 %v263, 0.0
  %v328 = vmax.f32 %v264, 0.0
  %v329 = vmax.f32 %v265, 0.0
  %v330 = vmax.f32 %v266, 0.0
  %v331 = vmax.f32 %v267, 0.0
  %v332 = vmax.f32 %v268, 0.0
  %v333 = vmax.f32 %v269, 0.0
  %v334 = vmax.f32 %v270, 0.0
  %v335 = vmax.f32 %v271, 0.0
  %v336 = vmax.f32 %v272, 0.0
  %v337 = vmax.f32 %v273, 0.0
  %v338 = vmax.f32 %v274, 0.0
  %v339 = vmax.f32 %v275, 0.0
  %v340 = vmax.f32 %v276, 0.0
  %v341 = vmax.f32 %v277, 0.0
  %v342 = vmax.f32 %v278, 0.0
  %v343 = vmax.f32 %v279, 0.0
  %v344 = vmax.f32 %v280, 0.0
  %v345 = vmax.f32 %v281, 0.0
  %v346 = vmax.f32 %v282, 0.0
  %v347 = vmax.f32 %v283, 0.0
  %v348 = vpack.c.bf16 %v285, %v284
  %v349 = vpack.c.bf16 %v287, %v286
  %v350 = vpack.c.bf16 %v289, %v288
  %v351 = vpack.c.bf16 %v291, %v290
  %v352 = vpack.c.bf16 %v293, %v292
  %v353 = vpack.c.bf16 %v295, %v294
  %v354 = vpack.c.bf16 %v297, %v296
  %v355 = vpack.c.bf16 %v299, %v298
  %v356 = vpack.c.bf16 %v301, %v300
  %v357 = vpack.c.bf16 %v303, %v302
  %v358 = vpack.c.bf16 %v305, %v304
  %v359 = vpack.c.bf16 %v307, %v306
  %v360 = vpack.c.bf16 %v309, %v308
  %v361 = vpack.c.bf16 %v311, %v310
  %v362 = vpack.c.bf16 %v313, %v312
  %v363 = vpack.c.bf16 %v315, %v314
  %v364 = vpack.c.bf16 %v317, %v316
  %v365 = vpack.c.bf16 %v319, %v318
  %v366 = vpack.c.bf16 %v321, %v320
  %v367 = vpack.c.bf16 %v323, %v322
  %v368 = vpack.c.bf16 %v325, %v324
  %v369 = vpack.c.bf16 %v327, %v326
  %v370 = vpack.c.bf16 %v329, %v328
  %v371 = vpack.c.bf16 %v331, %v330
  %v372 = vpack.c.bf16 %v333, %v332
  %v373 = vpack.c.bf16 %v335, %v334
  %v374 = vpack.c.bf16 %v337, %v336
  %v375 = vpack.c.bf16 %v339, %v338
  %v376 = vpack.c.bf16 %v341, %v340
  %v377 = vpack.c.bf16 %v343, %v342
  %v378 = vpack.c.bf16 %v345, %v344
  %v379 = vpack.c.bf16 %v347, %v346
  %v380 = vld [vmem:[%s3] sm:$0xf]
  %vm381 = vcmask 64512
  %v383 = vsel %vm381, %v348, 0
  %v386 = vsel %vm381, %v349, 0
  %v389 = vsel %vm381, %v350, 0
  %v392 = vsel %vm381, %v351, 0
  %v395 = vsel %vm381, %v352, 0
  %v398 = vsel %vm381, %v353, 0
  %v401 = vsel %vm381, %v354, 0
  %v404 = vsel %vm381, %v355, 0
  %v407 = vsel %vm381, %v356, 0
  %v410 = vsel %vm381, %v357, 0
  %v413 = vsel %vm381, %v358, 0
  %v416 = vsel %vm381, %v359, 0
  %v419 = vsel %vm381, %v360, 0
  %v422 = vsel %vm381, %v361, 0
  %v425 = vsel %vm381, %v362, 0
  %v428 = vsel %vm381, %v363, 0
  %v431 = vsel %vm381, %v364, 0
  %v434 = vsel %vm381, %v365, 0
  %v437 = vsel %vm381, %v366, 0
  %v440 = vsel %vm381, %v367, 0
  %v443 = vsel %vm381, %v368, 0
  %v446 = vsel %vm381, %v369, 0
  %v449 = vsel %vm381, %v370, 0
  %v452 = vsel %vm381, %v371, 0
  %v455 = vsel %vm381, %v372, 0
  %v458 = vsel %vm381, %v373, 0
  %v461 = vsel %vm381, %v374, 0
  %v464 = vsel %vm381, %v375, 0
  %v467 = vsel %vm381, %v376, 0
  %v470 = vsel %vm381, %v377, 0
  %v473 = vsel %vm381, %v378, 0
  %v476 = vsel %vm381, %v379, 0
  %vm478 = vcmask 1043456
  %v480 = vsel %vm478, %v380, 0
  %482 = vmatpush.bf16.msra.mxu0 0
  %483 = vmatpush.bf16.msra.mxu0 0
  %484 = vmatpush.bf16.msra.mxu0 0
  %485 = vmatpush.bf16.msra.mxu0 0
  %486 = vmatpush.bf16.msra.mxu0 0
  %487 = vmatpush.bf16.msra.mxu0 0
  %488 = vmatpush.bf16.msra.mxu0 0
  %489 = vmatpush.bf16.msra.mxu0 %v480
  %490 = vmatmul.bf16.gmra.mxu0 %v383
  %v491 = vpop.f32.mrf.mxu0
  %v492 = vadd.f32 0.0, %v491
  %v493 = vpop.f32.mrf.mxu0
  %v494 = vadd.f32 0.0, %v493
  %495 = vmatmul.bf16.gmra.mxu0 %v386
  %v496 = vpop.f32.mrf.mxu0
  %v497 = vadd.f32 0.0, %v496
  %v498 = vpop.f32.mrf.mxu0
  %v499 = vadd.f32 0.0, %v498
  %500 = vmatmul.bf16.gmra.mxu0 %v389
  %v501 = vpop.f32.mrf.mxu0
  %v502 = vadd.f32 0.0, %v501
  %v503 = vpop.f32.mrf.mxu0
  %v504 = vadd.f32 0.0, %v503
  %505 = vmatmul.bf16.gmra.mxu0 %v392
  %v506 = vpop.f32.mrf.mxu0
  %v507 = vadd.f32 0.0, %v506
  %v508 = vpop.f32.mrf.mxu0
  %v509 = vadd.f32 0.0, %v508
  %510 = vmatmul.bf16.gmra.mxu0 %v395
  %v511 = vpop.f32.mrf.mxu0
  %v512 = vadd.f32 0.0, %v511
  %v513 = vpop.f32.mrf.mxu0
  %v514 = vadd.f32 0.0, %v513
  %515 = vmatmul.bf16.gmra.mxu0 %v398
  %v516 = vpop.f32.mrf.mxu0
  %v517 = vadd.f32 0.0, %v516
  %v518 = vpop.f32.mrf.mxu0
  %v519 = vadd.f32 0.0, %v518
  %520 = vmatmul.bf16.gmra.mxu0 %v401
  %v521 = vpop.f32.mrf.mxu0
  %v522 = vadd.f32 0.0, %v521
  %v523 = vpop.f32.mrf.mxu0
  %v524 = vadd.f32 0.0, %v523
  %525 = vmatmul.bf16.gmra.mxu0 %v404
  %v526 = vpop.f32.mrf.mxu0
  %v527 = vadd.f32 0.0, %v526
  %v528 = vpop.f32.mrf.mxu0
  %v529 = vadd.f32 0.0, %v528
  %530 = vmatmul.bf16.gmra.mxu0 %v407
  %v531 = vpop.f32.mrf.mxu0
  %v532 = vadd.f32 0.0, %v531
  %v533 = vpop.f32.mrf.mxu0
  %v534 = vadd.f32 0.0, %v533
  %535 = vmatmul.bf16.gmra.mxu0 %v410
  %v536 = vpop.f32.mrf.mxu0
  %v537 = vadd.f32 0.0, %v536
  %v538 = vpop.f32.mrf.mxu0
  %v539 = vadd.f32 0.0, %v538
  %540 = vmatmul.bf16.gmra.mxu0 %v413
  %v541 = vpop.f32.mrf.mxu0
  %v542 = vadd.f32 0.0, %v541
  %v543 = vpop.f32.mrf.mxu0
  %v544 = vadd.f32 0.0, %v543
  %545 = vmatmul.bf16.gmra.mxu0 %v416
  %v546 = vpop.f32.mrf.mxu0
  %v547 = vadd.f32 0.0, %v546
  %v548 = vpop.f32.mrf.mxu0
  %v549 = vadd.f32 0.0, %v548
  %550 = vmatmul.bf16.gmra.mxu0 %v419
  %v551 = vpop.f32.mrf.mxu0
  %v552 = vadd.f32 0.0, %v551
  %v553 = vpop.f32.mrf.mxu0
  %v554 = vadd.f32 0.0, %v553
  %555 = vmatmul.bf16.gmra.mxu0 %v422
  %v556 = vpop.f32.mrf.mxu0
  %v557 = vadd.f32 0.0, %v556
  %v558 = vpop.f32.mrf.mxu0
  %v559 = vadd.f32 0.0, %v558
  %560 = vmatmul.bf16.gmra.mxu0 %v425
  %v561 = vpop.f32.mrf.mxu0
  %v562 = vadd.f32 0.0, %v561
  %v563 = vpop.f32.mrf.mxu0
  %v564 = vadd.f32 0.0, %v563
  %565 = vmatmul.bf16.gmra.mxu0 %v428
  %v566 = vpop.f32.mrf.mxu0
  %v567 = vadd.f32 0.0, %v566
  %v568 = vpop.f32.mrf.mxu0
  %v569 = vadd.f32 0.0, %v568
  %570 = vmatmul.bf16.gmra.mxu0 %v431
  %v571 = vpop.f32.mrf.mxu0
  %v572 = vadd.f32 0.0, %v571
  %v573 = vpop.f32.mrf.mxu0
  %v574 = vadd.f32 0.0, %v573
  %575 = vmatmul.bf16.gmra.mxu0 %v434
  %v576 = vpop.f32.mrf.mxu0
  %v577 = vadd.f32 0.0, %v576
  %v578 = vpop.f32.mrf.mxu0
  %v579 = vadd.f32 0.0, %v578
  %580 = vmatmul.bf16.gmra.mxu0 %v437
  %v581 = vpop.f32.mrf.mxu0
  %v582 = vadd.f32 0.0, %v581
  %v583 = vpop.f32.mrf.mxu0
  %v584 = vadd.f32 0.0, %v583
  %585 = vmatmul.bf16.gmra.mxu0 %v440
  %v586 = vpop.f32.mrf.mxu0
  %v587 = vadd.f32 0.0, %v586
  %v588 = vpop.f32.mrf.mxu0
  %v589 = vadd.f32 0.0, %v588
  %590 = vmatmul.bf16.gmra.mxu0 %v443
  %v591 = vpop.f32.mrf.mxu0
  %v592 = vadd.f32 0.0, %v591
  %v593 = vpop.f32.mrf.mxu0
  %v594 = vadd.f32 0.0, %v593
  %595 = vmatmul.bf16.gmra.mxu0 %v446
  %v596 = vpop.f32.mrf.mxu0
  %v597 = vadd.f32 0.0, %v596
  %v598 = vpop.f32.mrf.mxu0
  %v599 = vadd.f32 0.0, %v598
  %600 = vmatmul.bf16.gmra.mxu0 %v449
  %v601 = vpop.f32.mrf.mxu0
  %v602 = vadd.f32 0.0, %v601
  %v603 = vpop.f32.mrf.mxu0
  %v604 = vadd.f32 0.0, %v603
  %605 = vmatmul.bf16.gmra.mxu0 %v452
  %v606 = vpop.f32.mrf.mxu0
  %v607 = vadd.f32 0.0, %v606
  %v608 = vpop.f32.mrf.mxu0
  %v609 = vadd.f32 0.0, %v608
  %610 = vmatmul.bf16.gmra.mxu0 %v455
  %v611 = vpop.f32.mrf.mxu0
  %v612 = vadd.f32 0.0, %v611
  %v613 = vpop.f32.mrf.mxu0
  %v614 = vadd.f32 0.0, %v613
  %615 = vmatmul.bf16.gmra.mxu0 %v458
  %v616 = vpop.f32.mrf.mxu0
  %v617 = vadd.f32 0.0, %v616
  %v618 = vpop.f32.mrf.mxu0
  %v619 = vadd.f32 0.0, %v618
  %620 = vmatmul.bf16.gmra.mxu0 %v461
  %v621 = vpop.f32.mrf.mxu0
  %v622 = vadd.f32 0.0, %v621
  %v623 = vpop.f32.mrf.mxu0
  %v624 = vadd.f32 0.0, %v623
  %625 = vmatmul.bf16.gmra.mxu0 %v464
  %v626 = vpop.f32.mrf.mxu0
  %v627 = vadd.f32 0.0, %v626
  %v628 = vpop.f32.mrf.mxu0
  %v629 = vadd.f32 0.0, %v628
  %630 = vmatmul.bf16.gmra.mxu0 %v467
  %v631 = vpop.f32.mrf.mxu0
  %v632 = vadd.f32 0.0, %v631
  %v633 = vpop.f32.mrf.mxu0
  %v634 = vadd.f32 0.0, %v633
  %635 = vmatmul.bf16.gmra.mxu0 %v470
  %v636 = vpop.f32.mrf.mxu0
  %v637 = vadd.f32 0.0, %v636
  %v638 = vpop.f32.mrf.mxu0
  %v639 = vadd.f32 0.0, %v638
  %640 = vmatmul.bf16.gmra.mxu0 %v473
  %v641 = vpop.f32.mrf.mxu0
  %v642 = vadd.f32 0.0, %v641
  %v643 = vpop.f32.mrf.mxu0
  %v644 = vadd.f32 0.0, %v643
  %645 = vmatmul.bf16.gmra.mxu0 %v476
  %v646 = vpop.f32.mrf.mxu0
  %v647 = vadd.f32 0.0, %v646
  %v648 = vpop.f32.mrf.mxu0
  %v649 = vadd.f32 0.0, %v648
  %650 = vdwg.mxu0
  %v651 = vpack.c.bf16 %v492, %v492
  %v652 = vpack.c.bf16 %v494, %v494
  %v653 = vpack.c.bf16 %v497, %v497
  %v654 = vpack.c.bf16 %v499, %v499
  %v655 = vpack.c.bf16 %v502, %v502
  %v656 = vpack.c.bf16 %v504, %v504
  %v657 = vpack.c.bf16 %v507, %v507
  %v658 = vpack.c.bf16 %v509, %v509
  %v659 = vpack.c.bf16 %v512, %v512
  %v660 = vpack.c.bf16 %v514, %v514
  %v661 = vpack.c.bf16 %v517, %v517
  %v662 = vpack.c.bf16 %v519, %v519
  %v663 = vpack.c.bf16 %v522, %v522
  %v664 = vpack.c.bf16 %v524, %v524
  %v665 = vpack.c.bf16 %v527, %v527
  %v666 = vpack.c.bf16 %v529, %v529
  %v667 = vpack.c.bf16 %v532, %v532
  %v668 = vpack.c.bf16 %v534, %v534
  %v669 = vpack.c.bf16 %v537, %v537
  %v670 = vpack.c.bf16 %v539, %v539
  %v671 = vpack.c.bf16 %v542, %v542
  %v672 = vpack.c.bf16 %v544, %v544
  %v673 = vpack.c.bf16 %v547, %v547
  %v674 = vpack.c.bf16 %v549, %v549
  %v675 = vpack.c.bf16 %v552, %v552
  %v676 = vpack.c.bf16 %v554, %v554
  %v677 = vpack.c.bf16 %v557, %v557
  %v678 = vpack.c.bf16 %v559, %v559
  %v679 = vpack.c.bf16 %v562, %v562
  %v680 = vpack.c.bf16 %v564, %v564
  %v681 = vpack.c.bf16 %v567, %v567
  %v682 = vpack.c.bf16 %v569, %v569
  %v683 = vpack.c.bf16 %v572, %v572
  %v684 = vpack.c.bf16 %v574, %v574
  %v685 = vpack.c.bf16 %v577, %v577
  %v686 = vpack.c.bf16 %v579, %v579
  %v687 = vpack.c.bf16 %v582, %v582
  %v688 = vpack.c.bf16 %v584, %v584
  %v689 = vpack.c.bf16 %v587, %v587
  %v690 = vpack.c.bf16 %v589, %v589
  %v691 = vpack.c.bf16 %v592, %v592
  %v692 = vpack.c.bf16 %v594, %v594
  %v693 = vpack.c.bf16 %v597, %v597
  %v694 = vpack.c.bf16 %v599, %v599
  %v695 = vpack.c.bf16 %v602, %v602
  %v696 = vpack.c.bf16 %v604, %v604
  %v697 = vpack.c.bf16 %v607, %v607
  %v698 = vpack.c.bf16 %v609, %v609
  %v699 = vpack.c.bf16 %v612, %v612
  %v700 = vpack.c.bf16 %v614, %v614
  %v701 = vpack.c.bf16 %v617, %v617
  %v702 = vpack.c.bf16 %v619, %v619
  %v703 = vpack.c.bf16 %v622, %v622
  %v704 = vpack.c.bf16 %v624, %v624
  %v705 = vpack.c.bf16 %v627, %v627
  %v706 = vpack.c.bf16 %v629, %v629
  %v707 = vpack.c.bf16 %v632, %v632
  %v708 = vpack.c.bf16 %v634, %v634
  %v709 = vpack.c.bf16 %v637, %v637
  %v710 = vpack.c.bf16 %v639, %v639
  %v711 = vpack.c.bf16 %v642, %v642
  %v712 = vpack.c.bf16 %v644, %v644
  %v713 = vpack.c.bf16 %v647, %v647
  %v714 = vpack.c.bf16 %v649, %v649
  %715 = vst [vmem:[%s4] sm:$0xf] %v651
  %716 = vst [vmem:[%s4 + $0x4] sm:$0xf] %v652
  %717 = vst [vmem:[%s4 + $0x8] sm:$0xf] %v653
  %718 = vst [vmem:[%s4 + $0xc] sm:$0xf] %v654
  %719 = vst [vmem:[%s4 + $0x10] sm:$0xf] %v655
  %720 = vst [vmem:[%s4 + $0x14] sm:$0xf] %v656
  %721 = vst [vmem:[%s4 + $0x18] sm:$0xf] %v657
  %722 = vst [vmem:[%s4 + $0x1c] sm:$0xf] %v658
  %723 = vst [vmem:[%s4 + $0x20] sm:$0xf] %v659
  %724 = vst [vmem:[%s4 + $0x24] sm:$0xf] %v660
  %725 = vst [vmem:[%s4 + $0x28] sm:$0xf] %v661
  %726 = vst [vmem:[%s4 + $0x2c] sm:$0xf] %v662
  %727 = vst [vmem:[%s4 + $0x30] sm:$0xf] %v663
  %728 = vst [vmem:[%s4 + $0x34] sm:$0xf] %v664
  %729 = vst [vmem:[%s4 + $0x38] sm:$0xf] %v665
  %730 = vst [vmem:[%s4 + $0x3c] sm:$0xf] %v666
  %731 = vst [vmem:[%s4 + $0x40] sm:$0xf] %v667
  %732 = vst [vmem:[%s4 + $0x44] sm:$0xf] %v668
  %733 = vst [vmem:[%s4 + $0x48] sm:$0xf] %v669
  %734 = vst [vmem:[%s4 + $0x4c] sm:$0xf] %v670
  %735 = vst [vmem:[%s4 + $0x50] sm:$0xf] %v671
  %736 = vst [vmem:[%s4 + $0x54] sm:$0xf] %v672
  %737 = vst [vmem:[%s4 + $0x58] sm:$0xf] %v673
  %738 = vst [vmem:[%s4 + $0x5c] sm:$0xf] %v674
  %739 = vst [vmem:[%s4 + $0x60] sm:$0xf] %v675
  %740 = vst [vmem:[%s4 + $0x64] sm:$0xf] %v676
  %741 = vst [vmem:[%s4 + $0x68] sm:$0xf] %v677
  %742 = vst [vmem:[%s4 + $0x6c] sm:$0xf] %v678
  %743 = vst [vmem:[%s4 + $0x70] sm:$0xf] %v679
  %744 = vst [vmem:[%s4 + $0x74] sm:$0xf] %v680
  %745 = vst [vmem:[%s4 + $0x78] sm:$0xf] %v681
  %746 = vst [vmem:[%s4 + $0x7c] sm:$0xf] %v682
  %747 = vst [vmem:[%s4 + $0x80] sm:$0xf] %v683
  %748 = vst [vmem:[%s4 + $0x84] sm:$0xf] %v684
  %749 = vst [vmem:[%s4 + $0x88] sm:$0xf] %v685
  %750 = vst [vmem:[%s4 + $0x8c] sm:$0xf] %v686
  %751 = vst [vmem:[%s4 + $0x90] sm:$0xf] %v687
  %752 = vst [vmem:[%s4 + $0x94] sm:$0xf] %v688
  %753 = vst [vmem:[%s4 + $0x98] sm:$0xf] %v689
  %754 = vst [vmem:[%s4 + $0x9c] sm:$0xf] %v690
  %755 = vst [vmem:[%s4 + $0xa0] sm:$0xf] %v691
  %756 = vst [vmem:[%s4 + $0xa4] sm:$0xf] %v692
  %757 = vst [vmem:[%s4 + $0xa8] sm:$0xf] %v693
  %758 = vst [vmem:[%s4 + $0xac] sm:$0xf] %v694
  %759 = vst [vmem:[%s4 + $0xb0] sm:$0xf] %v695
  %760 = vst [vmem:[%s4 + $0xb4] sm:$0xf] %v696
  %761 = vst [vmem:[%s4 + $0xb8] sm:$0xf] %v697
  %762 = vst [vmem:[%s4 + $0xbc] sm:$0xf] %v698
  %763 = vst [vmem:[%s4 + $0xc0] sm:$0xf] %v699
  %764 = vst [vmem:[%s4 + $0xc4] sm:$0xf] %v700
  %765 = vst [vmem:[%s4 + $0xc8] sm:$0xf] %v701
  %766 = vst [vmem:[%s4 + $0xcc] sm:$0xf] %v702
  %767 = vst [vmem:[%s4 + $0xd0] sm:$0xf] %v703
  %768 = vst [vmem:[%s4 + $0xd4] sm:$0xf] %v704
  %769 = vst [vmem:[%s4 + $0xd8] sm:$0xf] %v705
  %770 = vst [vmem:[%s4 + $0xdc] sm:$0xf] %v706
  %771 = vst [vmem:[%s4 + $0xe0] sm:$0xf] %v707
  %772 = vst [vmem:[%s4 + $0xe4] sm:$0xf] %v708
  %773 = vst [vmem:[%s4 + $0xe8] sm:$0xf] %v709
  %774 = vst [vmem:[%s4 + $0xec] sm:$0xf] %v710
  %775 = vst [vmem:[%s4 + $0xf0] sm:$0xf] %v711
  %776 = vst [vmem:[%s4 + $0xf4] sm:$0xf] %v712
  %777 = vst [vmem:[%s4 + $0xf8] sm:$0xf] %v713
  %778 = vst [vmem:[%s4 + $0xfc] sm:$0xf] %v714
  %v779 = vadd.f32 %v492, %v494
  %v780 = vadd.f32 %v779, %v497
  %v781 = vadd.f32 %v780, %v499
  %v782 = vadd.f32 %v781, %v502
  %v783 = vadd.f32 %v782, %v504
  %v784 = vadd.f32 %v783, %v507
  %v785 = vadd.f32 %v784, %v509
  %v786 = vadd.f32 %v785, %v512
  %v787 = vadd.f32 %v786, %v514
  %v788 = vadd.f32 %v787, %v517
  %v789 = vadd.f32 %v788, %v519
  %v790 = vadd.f32 %v789, %v522
  %v791 = vadd.f32 %v790, %v524
  %v792 = vadd.f32 %v791, %v527
  %v793 = vadd.f32 %v792, %v529
  %v794 = vadd.f32 %v793, %v532
  %v795 = vadd.f32 %v794, %v534
  %v796 = vadd.f32 %v795, %v537
  %v797 = vadd.f32 %v796, %v539
  %v798 = vadd.f32 %v797, %v542
  %v799 = vadd.f32 %v798, %v544
  %v800 = vadd.f32 %v799, %v547
  %v801 = vadd.f32 %v800, %v549
  %v802 = vadd.f32 %v801, %v552
  %v803 = vadd.f32 %v802, %v554
  %v804 = vadd.f32 %v803, %v557
  %v805 = vadd.f32 %v804, %v559
  %v806 = vadd.f32 %v805, %v562
  %v807 = vadd.f32 %v806, %v564
  %v808 = vadd.f32 %v807, %v567
  %v809 = vadd.f32 %v808, %v569
  %v810 = vadd.f32 %v809, %v572
  %v811 = vadd.f32 %v810, %v574
  %v812 = vadd.f32 %v811, %v577
  %v813 = vadd.f32 %v812, %v579
  %v814 = vadd.f32 %v813, %v582
  %v815 = vadd.f32 %v814, %v584
  %v816 = vadd.f32 %v815, %v587
  %v817 = vadd.f32 %v816, %v589
  %v818 = vadd.f32 %v817, %v592
  %v819 = vadd.f32 %v818, %v594
  %v820 = vadd.f32 %v819, %v597
  %v821 = vadd.f32 %v820, %v599
  %v822 = vadd.f32 %v821, %v602
  %v823 = vadd.f32 %v822, %v604
  %v824 = vadd.f32 %v823, %v607
  %v825 = vadd.f32 %v824, %v609
  %v826 = vadd.f32 %v825, %v612
  %v827 = vadd.f32 %v826, %v614
  %v828 = vadd.f32 %v827, %v617
  %v829 = vadd.f32 %v828, %v619
  %v830 = vadd.f32 %v829, %v622
  %v831 = vadd.f32 %v830, %v624
  %v832 = vadd.f32 %v831, %v627
  %v833 = vadd.f32 %v832, %v629
  %v834 = vadd.f32 %v833, %v632
  %v835 = vadd.f32 %v834, %v634
  %v836 = vadd.f32 %v835, %v637
  %v837 = vadd.f32 %v836, %v639
  %v838 = vadd.f32 %v837, %v642
  %v839 = vadd.f32 %v838, %v644
  %v840 = vadd.f32 %v839, %v647
  %v841 = vadd.f32 %v840, %v649
  %v842 = vrot.slane %v841, 4
  %v843 = vadd.f32 %v841, %v842
  %v844 = vrot.slane %v843, 2
  %v845 = vadd.f32 %v843, %v844
  %v846 = vrot.slane %v845, 1
  %v847 = vadd.f32 %v845, %v846
  %v848 = vmul.f32 %v492, %v492
  %v849 = vmul.f32 %v494, %v494
  %v850 = vmul.f32 %v497, %v497
  %v851 = vmul.f32 %v499, %v499
  %v852 = vmul.f32 %v502, %v502
  %v853 = vmul.f32 %v504, %v504
  %v854 = vmul.f32 %v507, %v507
  %v855 = vmul.f32 %v509, %v509
  %v856 = vmul.f32 %v512, %v512
  %v857 = vmul.f32 %v514, %v514
  %v858 = vmul.f32 %v517, %v517
  %v859 = vmul.f32 %v519, %v519
  %v860 = vmul.f32 %v522, %v522
  %v861 = vmul.f32 %v524, %v524
  %v862 = vmul.f32 %v527, %v527
  %v863 = vmul.f32 %v529, %v529
  %v864 = vmul.f32 %v532, %v532
  %v865 = vmul.f32 %v534, %v534
  %v866 = vmul.f32 %v537, %v537
  %v867 = vmul.f32 %v539, %v539
  %v868 = vmul.f32 %v542, %v542
  %v869 = vmul.f32 %v544, %v544
  %v870 = vmul.f32 %v547, %v547
  %v871 = vmul.f32 %v549, %v549
  %v872 = vmul.f32 %v552, %v552
  %v873 = vmul.f32 %v554, %v554
  %v874 = vmul.f32 %v557, %v557
  %v875 = vmul.f32 %v559, %v559
  %v876 = vmul.f32 %v562, %v562
  %v877 = vmul.f32 %v564, %v564
  %v878 = vmul.f32 %v567, %v567
  %v879 = vmul.f32 %v569, %v569
  %v880 = vmul.f32 %v572, %v572
  %v881 = vmul.f32 %v574, %v574
  %v882 = vmul.f32 %v577, %v577
  %v883 = vmul.f32 %v579, %v579
  %v884 = vmul.f32 %v582, %v582
  %v885 = vmul.f32 %v584, %v584
  %v886 = vmul.f32 %v587, %v587
  %v887 = vmul.f32 %v589, %v589
  %v888 = vmul.f32 %v592, %v592
  %v889 = vmul.f32 %v594, %v594
  %v890 = vmul.f32 %v597, %v597
  %v891 = vmul.f32 %v599, %v599
  %v892 = vmul.f32 %v602, %v602
  %v893 = vmul.f32 %v604, %v604
  %v894 = vmul.f32 %v607, %v607
  %v895 = vmul.f32 %v609, %v609
  %v896 = vmul.f32 %v612, %v612
  %v897 = vmul.f32 %v614, %v614
  %v898 = vmul.f32 %v617, %v617
  %v899 = vmul.f32 %v619, %v619
  %v900 = vmul.f32 %v622, %v622
  %v901 = vmul.f32 %v624, %v624
  %v902 = vmul.f32 %v627, %v627
  %v903 = vmul.f32 %v629, %v629
  %v904 = vmul.f32 %v632, %v632
  %v905 = vmul.f32 %v634, %v634
  %v906 = vmul.f32 %v637, %v637
  %v907 = vmul.f32 %v639, %v639
  %v908 = vmul.f32 %v642, %v642
  %v909 = vmul.f32 %v644, %v644
  %v910 = vmul.f32 %v647, %v647
  %v911 = vmul.f32 %v649, %v649
  %v912 = vadd.f32 %v848, %v849
  %v913 = vadd.f32 %v912, %v850
  %v914 = vadd.f32 %v913, %v851
  %v915 = vadd.f32 %v914, %v852
  %v916 = vadd.f32 %v915, %v853
  %v917 = vadd.f32 %v916, %v854
  %v918 = vadd.f32 %v917, %v855
  %v919 = vadd.f32 %v918, %v856
  %v920 = vadd.f32 %v919, %v857
  %v921 = vadd.f32 %v920, %v858
  %v922 = vadd.f32 %v921, %v859
  %v923 = vadd.f32 %v922, %v860
  %v924 = vadd.f32 %v923, %v861
  %v925 = vadd.f32 %v924, %v862
  %v926 = vadd.f32 %v925, %v863
  %v927 = vadd.f32 %v926, %v864
  %v928 = vadd.f32 %v927, %v865
  %v929 = vadd.f32 %v928, %v866
  %v930 = vadd.f32 %v929, %v867
  %v931 = vadd.f32 %v930, %v868
  %v932 = vadd.f32 %v931, %v869
  %v933 = vadd.f32 %v932, %v870
  %v934 = vadd.f32 %v933, %v871
  %v935 = vadd.f32 %v934, %v872
  %v936 = vadd.f32 %v935, %v873
  %v937 = vadd.f32 %v936, %v874
  %v938 = vadd.f32 %v937, %v875
  %v939 = vadd.f32 %v938, %v876
  %v940 = vadd.f32 %v939, %v877
  %v941 = vadd.f32 %v940, %v878
  %v942 = vadd.f32 %v941, %v879
  %v943 = vadd.f32 %v942, %v880
  %v944 = vadd.f32 %v943, %v881
  %v945 = vadd.f32 %v944, %v882
  %v946 = vadd.f32 %v945, %v883
  %v947 = vadd.f32 %v946, %v884
  %v948 = vadd.f32 %v947, %v885
  %v949 = vadd.f32 %v948, %v886
  %v950 = vadd.f32 %v949, %v887
  %v951 = vadd.f32 %v950, %v888
  %v952 = vadd.f32 %v951, %v889
  %v953 = vadd.f32 %v952, %v890
  %v954 = vadd.f32 %v953, %v891
  %v955 = vadd.f32 %v954, %v892
  %v956 = vadd.f32 %v955, %v893
  %v957 = vadd.f32 %v956, %v894
  %v958 = vadd.f32 %v957, %v895
  %v959 = vadd.f32 %v958, %v896
  %v960 = vadd.f32 %v959, %v897
  %v961 = vadd.f32 %v960, %v898
  %v962 = vadd.f32 %v961, %v899
  %v963 = vadd.f32 %v962, %v900
  %v964 = vadd.f32 %v963, %v901
  %v965 = vadd.f32 %v964, %v902
  %v966 = vadd.f32 %v965, %v903
  %v967 = vadd.f32 %v966, %v904
  %v968 = vadd.f32 %v967, %v905
  %v969 = vadd.f32 %v968, %v906
  %v970 = vadd.f32 %v969, %v907
  %v971 = vadd.f32 %v970, %v908
  %v972 = vadd.f32 %v971, %v909
  %v973 = vadd.f32 %v972, %v910
  %v974 = vadd.f32 %v973, %v911
  %v975 = vrot.slane %v974, 4
  %v976 = vadd.f32 %v974, %v975
  %v977 = vrot.slane %v976, 2
  %v978 = vadd.f32 %v976, %v977
  %v979 = vrot.slane %v978, 1
  %v980 = vadd.f32 %v978, %v979
  %vm981 = vcmask 1040384
  %v982 = vsel %vm981, %v847, %v980
  %vm983 = vcmask 1041408
  %v984 = vsel %vm983, %v982, 0.0
  %985 = vst [vmem:[%s5] sm:$0xff] %v984
  // Predicated region
  $region18: #{dense_layer_forward.2} parent=0 // pred_check
    _
  $region19: #{dense_layer_forward.2} parent=0 // pred_check_branch
    %987 = sbr.rel (0) target = $region21
  $region20: #{dense_layer_forward.2} parent=0 // pred_region
    _
  $region21: #{dense_layer_forward.2} parent=0 // pred_fallthru
    _
  // Predicated region
  $region22: #{dense_layer_forward.2} parent=0 // pred_check
    _
  $region23: #{dense_layer_forward.2} parent=0 // pred_check_branch
    %989 = sbr.rel (0) target = $region25
  $region24: #{dense_layer_forward.2} parent=0 // pred_region
    _
  $region25: #{dense_layer_forward.2} parent=0 // pred_fallthru
    _
  // Predicated region
  $region26: #{dense_layer_forward.2} parent=0 // pred_check
    _
  $region27: #{dense_layer_forward.2} parent=0 // pred_check_branch
    %991 = sbr.rel (0) target = $region29
  $region28: #{dense_layer_forward.2} parent=0 // pred_region
    _
  $region29: #{dense_layer_forward.2} parent=0 // pred_fallthru
    _
  // Predicated region
  $region30: #{dense_layer_forward.2} parent=0 // pred_check
    _
  $region31: #{dense_layer_forward.2} parent=0 // pred_check_branch
    %993 = sbr.rel (0) target = $region33
  $region32: #{dense_layer_forward.2} parent=0 // pred_region
    _
  $region33: #{dense_layer_forward.2} parent=0 // pred_fallthru
    _

// kernel: dense_layer_forward.3
$region0: #{dense_layer_forward.3}
  #allocation0 [shape = 'u32[]', space=smem, size = 0x4, offset = 0x4, fixed_abs, tag = 'smem constant byte address 0x4 - core index']
  #allocation1 [shape = 'u32[72,128]{1,0:T(1,128)}', space=vmem, size = 0x9000, scoped, tag = 'internal scratch']
  #allocation2 [shape = 'bf16[18,16,384]{2,1,0:T(8,128)(2,1)}', space=vmem, size = 0x36000, scoped, tag = 'scratch operand']
  %s0 = inlined_call_operand.vmem [shape: bf16[2,16,16,128], index: 0, kind: input, shape index: {}]
  %s1 = inlined_call_operand.vmem [shape: f32[1,128], index: 1, kind: input, shape index: {}]
  %s2 = inlined_call_operand.vmem [shape: f32[1,128], index: 2, kind: input, shape index: {}]
  %s3 = inlined_call_operand.vmem [shape: bf16[3,384,128], index: 3, kind: input, shape index: {}]
  %s4 = inlined_call_operand.vmem [shape: bf16[2,16,16,128], index: 4, kind: output, shape index: {}]
  %s5 = sld [smem:[#allocation0]]
  $region49: #{dense_layer_forward.3} parent=0
    _
  %s7 = ssub.s32 1, %s5
  %s8 = scalar_select 0, %s7, %s5
  loop: start=0, step=1, limit=4
  $region2: #{dense_layer_forward.3} parent=0 // loop_pre_header
    _
  $region3: #{dense_layer_forward.3} parent=0 // loop_header
    %s10 = sphi 0, %s14
    %p11 = scmp.ge.s32.totalorder %s10, 4
    %s20 = sphi 0, %s22
    %s23 = sphi 0, %s20
    %s24 = sphi 0, %s23
    %s40 = sphi 0, %s24
    %s44 = sphi 0, %s44
    %s46 = sphi 0, %s44
    %s47 = sphi 0, %s46
    %s61 = sphi 0, %s47
    %s65 = sphi 0, %s65
    %s67 = sphi 0, %s65
    %s68 = sphi 0, %s67
    %s82 = sphi 0, %s68
    %s86 = sphi 0, %s86
    %s88 = sphi 0, %s86
    %s89 = sphi 0, %s88
    %s103 = sphi 0, %s89
    %s109 = sphi 0, %s111
    %s112 = sphi 0, %s109
    %s113 = sphi 0, %s112
    %s129 = sphi 0, %s113
  $region4: #{dense_layer_forward.3} parent=0 // loop_header_branch
    %13 = sbr.rel (%p11) target = $region8
  $region5: #{dense_layer_forward.3} parent=0 // loop_body
    %s15 = ssub.s32 %s10, 1
    %s16 = ssub.s32 %s10, 2
    %s17 = sadd.s32 %s10, 1
    %s18 = ssub.s32 %s10, %s17
    %p19 = scmp.eq.s32.totalorder %s18, 0
    %s21 = sadd.s32 %s20, 1
    %s22 = scalar_select %p19, %s20, %s21
    %p25 = pneg %p19
    %p26 = scmp.eq.s32.totalorder %s10, 1
    %p27 = por %p25, %p26
    %p28 = scmp.ne.s32.totalorder %s20, %s23
    %p29 = scmp.eq.s32.totalorder %s10, 0
    %p30 = por %p28, %p29
    %p31 = scmp.ne.s32.totalorder %s20, %s23
    %p32 = scmp.eq.s32.totalorder %s15, 1
    %p33 = por %p31, %p32
    %p34 = scmp.ne.s32.totalorder %s23, %s24
    %p35 = scmp.eq.s32.totalorder %s15, 0
    %p36 = por %p34, %p35
    %p37 = scmp.ne.s32.totalorder %s23, %s24
    %p38 = scmp.eq.s32.totalorder %s16, 1
    %p39 = por %p37, %p38
    %p41 = scmp.ne.s32.totalorder %s24, %s40
    %p42 = scmp.eq.s32.totalorder %s16, 0
    %p43 = por %p41, %p42
    %s45 = sadd.s32 %s44, 1
    %p48 = scmp.eq.s32.totalorder %s10, 1
    %p49 = scmp.ne.s32.totalorder %s44, %s46
    %p50 = scmp.eq.s32.totalorder %s10, 0
    %p51 = por %p49, %p50
    %p52 = scmp.ne.s32.totalorder %s44, %s46
    %p53 = scmp.eq.s32.totalorder %s15, 1
    %p54 = por %p52, %p53
    %p55 = scmp.ne.s32.totalorder %s46, %s47
    %p56 = scmp.eq.s32.totalorder %s15, 0
    %p57 = por %p55, %p56
    %p58 = scmp.ne.s32.totalorder %s46, %s47
    %p59 = scmp.eq.s32.totalorder %s16, 1
    %p60 = por %p58, %p59
    %p62 = scmp.ne.s32.totalorder %s47, %s61
    %p63 = scmp.eq.s32.totalorder %s16, 0
    %p64 = por %p62, %p63
    %s66 = sadd.s32 %s65, 1
    %p69 = scmp.eq.s32.totalorder %s10, 1
    %p70 = scmp.ne.s32.totalorder %s65, %s67
    %p71 = scmp.eq.s32.totalorder %s10, 0
    %p72 = por %p70, %p71
    %p73 = scmp.ne.s32.totalorder %s65, %s67
    %p74 = scmp.eq.s32.totalorder %s15, 1
    %p75 = por %p73, %p74
    %p76 = scmp.ne.s32.totalorder %s67, %s68
    %p77 = scmp.eq.s32.totalorder %s15, 0
    %p78 = por %p76, %p77
    %p79 = scmp.ne.s32.totalorder %s67, %s68
    %p80 = scmp.eq.s32.totalorder %s16, 1
    %p81 = por %p79, %p80
    %p83 = scmp.ne.s32.totalorder %s68, %s82
    %p84 = scmp.eq.s32.totalorder %s16, 0
    %p85 = por %p83, %p84
    %s87 = sadd.s32 %s86, 1
    %p90 = scmp.eq.s32.totalorder %s10, 1
    %p91 = scmp.ne.s32.totalorder %s86, %s88
    %p92 = scmp.eq.s32.totalorder %s10, 0
    %p93 = por %p91, %p92
    %p94 = scmp.ne.s32.totalorder %s86, %s88
    %p95 = scmp.eq.s32.totalorder %s15, 1
    %p96 = por %p94, %p95
    %p97 = scmp.ne.s32.totalorder %s88, %s89
    %p98 = scmp.eq.s32.totalorder %s15, 0
    %p99 = por %p97, %p98
    %p100 = scmp.ne.s32.totalorder %s88, %s89
    %p101 = scmp.eq.s32.totalorder %s16, 1
    %p102 = por %p100, %p101
    %p104 = scmp.ne.s32.totalorder %s89, %s103
    %p105 = scmp.eq.s32.totalorder %s16, 0
    %p106 = por %p104, %p105
    %s107 = ssub.s32 %s10, %s17
    %p108 = scmp.eq.s32.totalorder %s107, 0
    %s110 = sadd.s32 %s109, 1
    %s111 = scalar_select %p108, %s109, %s110
    %p114 = pneg %p108
    %p115 = scmp.eq.s32.totalorder %s10, 1
    %p116 = por %p114, %p115
    %p117 = scmp.ne.s32.totalorder %s109, %s112
    %p118 = scmp.eq.s32.totalorder %s10, 0
    %p119 = por %p117, %p118
    %p120 = scmp.ne.s32.totalorder %s109, %s112
    %p121 = scmp.eq.s32.totalorder %s15, 1
    %p122 = por %p120, %p121
    %p123 = scmp.ne.s32.totalorder %s112, %s113
    %p124 = scmp.eq.s32.totalorder %s15, 0
    %p125 = por %p123, %p124
    %p126 = scmp.ne.s32.totalorder %s112, %s113
    %p127 = scmp.eq.s32.totalorder %s16, 1
    %p128 = por %p126, %p127
    %p130 = scmp.ne.s32.totalorder %s113, %s129
    %p131 = scmp.eq.s32.totalorder %s16, 0
    %p132 = por %p130, %p131
    %p133 = scmp.le.s32.totalorder 1, %s10
    %p134 = scmp.lt.s32.totalorder %s10, 3
    %p135 = pnand %p133, %p134
    %p136 = pneg %p135
    // Predicated region
    $region9: #{dense_layer_forward.3} parent=5 // pred_check
      _
    $region10: #{dense_layer_forward.3} parent=5 // pred_check_branch
      %138 = sbr.rel (%p135) target = $region12
    $region11: #{dense_layer_forward.3} parent=5 // pred_region
      %s139 = ssub.s32 %s10, 1
      // Predicated region
      $region13: #{dense_layer_forward.3} parent=11 // pred_check
        %p140 = pneg %p57
      $region14: #{dense_layer_forward.3} parent=11 // pred_check_branch
        %142 = sbr.rel (%p140) target = $region16
      $region15: #{dense_layer_forward.3} parent=11 // pred_region
        _
      $region16: #{dense_layer_forward.3} parent=11 // pred_fallthru
        _
      // Predicated region
      $region17: #{dense_layer_forward.3} parent=11 // pred_check
        %p143 = pneg %p78
      $region18: #{dense_layer_forward.3} parent=11 // pred_check_branch
        %145 = sbr.rel (%p143) target = $region20
      $region19: #{dense_layer_forward.3} parent=11 // pred_region
        _
      $region20: #{dense_layer_forward.3} parent=11 // pred_fallthru
        _
      // Predicated region
      $region21: #{dense_layer_forward.3} parent=11 // pred_check
        %p146 = pneg %p99
      $region22: #{dense_layer_forward.3} parent=11 // pred_check_branch
        %148 = sbr.rel (%p146) target = $region24
      $region23: #{dense_layer_forward.3} parent=11 // pred_region
        _
      $region24: #{dense_layer_forward.3} parent=11 // pred_fallthru
        _
    $region12: #{dense_layer_forward.3} parent=5 // pred_fallthru
      _
    %p149 = scmp.lt.s32.totalorder %s10, 2
    // Predicated region
    $region25: #{dense_layer_forward.3} parent=5 // pred_check
      %p150 = pneg %p149
    $region26: #{dense_layer_forward.3} parent=5 // pred_check_branch
      %152 = sbr.rel (%p150) target = $region28
    $region27: #{dense_layer_forward.3} parent=5 // pred_region
      // Predicated region
      $region29: #{dense_layer_forward.3} parent=27 // pred_check
        %p153 = pneg %p30
      $region30: #{dense_layer_forward.3} parent=27 // pred_check_branch
        %155 = sbr.rel (%p153) target = $region32
      $region31: #{dense_layer_forward.3} parent=27 // pred_region
        %p156 = scmp.lt.s32.totalorder %s10, 1
        %s157 = scalar_select %p156, %s10, 1
        %s158 = smul.addr %s157, 32
        %s159 = smul.addr %s158, 4
        %s160 = scalar_lea.vmem %s0, %s159
      $region32: #{dense_layer_forward.3} parent=27 // pred_fallthru
        _
    $region28: #{dense_layer_forward.3} parent=5 // pred_fallthru
      _
    %p161 = scmp.le.s32.totalorder 1, %s10
    %p162 = scmp.lt.s32.totalorder %s10, 3
    %p163 = pnand %p161, %p162
    %p164 = pneg %p163
    // Predicated region
    $region33: #{dense_layer_forward.3} parent=5 // pred_check
      _
    $region34: #{dense_layer_forward.3} parent=5 // pred_check_branch
      %166 = sbr.rel (%p163) target = $region36
    $region35: #{dense_layer_forward.3} parent=5 // pred_region
      %s167 = ssub.s32 %s10, 1
      %p168 = scmp.lt.s32.totalorder %s15, 1
      %s169 = scalar_select %p168, %s15, 1
      %s170 = smul.addr %s169, 32
      %s171 = smul.addr %s170, 4
      %s172 = scalar_lea.vmem %s0, %s171
      %p173 = pneg %p36
      %p174 = pneg %p33
      %p175 = pneg %p57
      %p176 = pneg %p54
      %p177 = pneg %p78
      %p178 = pneg %p75
      %p179 = pneg %p99
      %p180 = pneg %p96
      %p181 = pneg %p125
      %p182 = pneg %p122
      %p183 = scmp.lt.s32.totalorder %s15, 1
      %s184 = scalar_select %p183, %s15, 1
      %s185 = smul.addr %s184, 32
      %s186 = smul.addr %s185, 4
      %s187 = scalar_lea.vmem %s4, %s186
      %p188 = scmp.lt.s32.totalorder %s15, 1
      %s189 = scalar_select %p188, %s15, 1
      %s190 = smul.addr %s189, 32
      %s191 = smul.addr %s190, 4
      %s192 = scalar_lea.vmem %s0, %s191
      %p193 = scmp.lt.s32.totalorder %s15, 1
      %s194 = scalar_select %p193, %s15, 1
      %s195 = smul.addr %s194, 32
      %s196 = smul.addr %s195, 4
      %s197 = scalar_lea.vmem %s4, %s196
      %v199 = vld [vmem:[%s1] sm:$0x1]
      %v200 = vld [vmem:[%s2] sm:$0x1]
      %201 = vst [vmem:[#allocation2] sm:$0xff] 0
      %202 = vst [vmem:[#allocation2 + $0x8] sm:$0xf] 0
      %203 = vst [vmem:[#allocation2 + $0xc] sm:$0xff] 0
      %204 = vst [vmem:[#allocation2 + $0x14] sm:$0xf] 0
      %s205 = scalar_lea.vmem [#allocation2], 408
      %206 = vst [vmem:[%s205] sm:$0xff] 0
      %207 = vst [vmem:[%s205 + $0x8] sm:$0xf] 0
      %208 = vst [vmem:[%s205 + $0xc] sm:$0xff] 0
      %209 = vst [vmem:[%s205 + $0x14] sm:$0xf] 0
      %v210 = vld [vmem:[%s192] sm:$0xf]
      %v211 = vld [vmem:[%s192 + $0x4] sm:$0xf]
      %v212 = vld [vmem:[%s192 + $0x8] sm:$0xf]
      %v213 = vld [vmem:[%s192 + $0xc] sm:$0xf]
      %v214 = vld [vmem:[%s192 + $0x10] sm:$0xf]
      %v215 = vld [vmem:[%s192 + $0x14] sm:$0xf]
      %v216 = vld [vmem:[%s192 + $0x18] sm:$0xf]
      %v217 = vld [vmem:[%s192 + $0x1c] sm:$0xf]
      %v218 = vld [vmem:[%s192 + $0x20] sm:$0xf]
      %v219 = vld [vmem:[%s192 + $0x24] sm:$0xf]
      %v220 = vld [vmem:[%s192 + $0x28] sm:$0xf]
      %v221 = vld [vmem:[%s192 + $0x2c] sm:$0xf]
      %v222 = vld [vmem:[%s192 + $0x30] sm:$0xf]
      %v223 = vld [vmem:[%s192 + $0x34] sm:$0xf]
      %v224 = vld [vmem:[%s192 + $0x38] sm:$0xf]
      %v225 = vld [vmem:[%s192 + $0x3c] sm:$0xf]
      %v226 = vunpack.c.l.bf16 %v210
      %v227 = vunpack.c.l.bf16 %v211
      %v228 = vunpack.c.l.bf16 %v212
      %v229 = vunpack.c.l.bf16 %v213
      %v230 = vunpack.c.l.bf16 %v214
      %v231 = vunpack.c.l.bf16 %v215
      %v232 = vunpack.c.l.bf16 %v216
      %v233 = vunpack.c.l.bf16 %v217
      %v234 = vunpack.c.l.bf16 %v218
      %v235 = vunpack.c.l.bf16 %v219
      %v236 = vunpack.c.l.bf16 %v220
      %v237 = vunpack.c.l.bf16 %v221
      %v238 = vunpack.c.l.bf16 %v222
      %v239 = vunpack.c.l.bf16 %v223
      %v240 = vunpack.c.l.bf16 %v224
      %v241 = vunpack.c.l.bf16 %v225
      %v243 = vperm.slane %v199, 0
      %v245 = vmul.f32 %v226, %v243
      %v246 = vmul.f32 %v227, %v243
      %v247 = vmul.f32 %v228, %v243
      %v248 = vmul.f32 %v229, %v243
      %v249 = vmul.f32 %v230, %v243
      %v250 = vmul.f32 %v231, %v243
      %v251 = vmul.f32 %v232, %v243
      %v252 = vmul.f32 %v233, %v243
      %v253 = vmul.f32 %v234, %v243
      %v254 = vmul.f32 %v235, %v243
      %v255 = vmul.f32 %v236, %v243
      %v256 = vmul.f32 %v237, %v243
      %v257 = vmul.f32 %v238, %v243
      %v258 = vmul.f32 %v239, %v243
      %v259 = vmul.f32 %v240, %v243
      %v260 = vmul.f32 %v241, %v243
      %v262 = vperm.slane %v200, 0
      %v264 = vadd.f32 %v245, %v262
      %v265 = vadd.f32 %v246, %v262
      %v266 = vadd.f32 %v247, %v262
      %v267 = vadd.f32 %v248, %v262
      %v268 = vadd.f32 %v249, %v262
      %v269 = vadd.f32 %v250, %v262
      %v270 = vadd.f32 %v251, %v262
      %v271 = vadd.f32 %v252, %v262
      %v272 = vadd.f32 %v253, %v262
      %v273 = vadd.f32 %v254, %v262
      %v274 = vadd.f32 %v255, %v262
      %v275 = vadd.f32 %v256, %v262
      %v276 = vadd.f32 %v257, %v262
      %v277 = vadd.f32 %v258, %v262
      %v278 = vadd.f32 %v259, %v262
      %v279 = vadd.f32 %v260, %v262
      %v280 = vmax.f32 %v264, 0.0
      %v281 = vmax.f32 %v265, 0.0
      %v282 = vmax.f32 %v266, 0.0
      %v283 = vmax.f32 %v267, 0.0
      %v284 = vmax.f32 %v268, 0.0
      %v285 = vmax.f32 %v269, 0.0
      %v286 = vmax.f32 %v270, 0.0
      %v287 = vmax.f32 %v271, 0.0
      %v288 = vmax.f32 %v272, 0.0
      %v289 = vmax.f32 %v273, 0.0
      %v290 = vmax.f32 %v274, 0.0
      %v291 = vmax.f32 %v275, 0.0
      %v292 = vmax.f32 %v276, 0.0
      %v293 = vmax.f32 %v277, 0.0
      %v294 = vmax.f32 %v278, 0.0
      %v295 = vmax.f32 %v279, 0.0
      %v296 = vpack.c.bf16 %v280, %v280
      %v297 = vpack.c.bf16 %v281, %v281
      %v298 = vpack.c.bf16 %v282, %v282
      %v299 = vpack.c.bf16 %v283, %v283
      %v300 = vpack.c.bf16 %v284, %v284
      %v301 = vpack.c.bf16 %v285, %v285
      %v302 = vpack.c.bf16 %v286, %v286
      %v303 = vpack.c.bf16 %v287, %v287
      %v304 = vpack.c.bf16 %v288, %v288
      %v305 = vpack.c.bf16 %v289, %v289
      %v306 = vpack.c.bf16 %v290, %v290
      %v307 = vpack.c.bf16 %v291, %v291
      %v308 = vpack.c.bf16 %v292, %v292
      %v309 = vpack.c.bf16 %v293, %v293
      %v310 = vpack.c.bf16 %v294, %v294
      %v311 = vpack.c.bf16 %v295, %v295
      %v328 = vunpack.c.l.b16 %v296
      %v329 = vunpack.c.l.b16 %v297
      %v330 = vunpack.c.l.b16 %v298
      %v331 = vunpack.c.l.b16 %v299
      %v332 = vunpack.c.l.b16 %v300
      %v333 = vunpack.c.l.b16 %v301
      %v334 = vunpack.c.l.b16 %v302
      %v335 = vunpack.c.l.b16 %v303
      %v336 = vunpack.c.l.b16 %v304
      %v337 = vunpack.c.l.b16 %v305
      %v338 = vunpack.c.l.b16 %v306
      %v339 = vunpack.c.l.b16 %v307
      %v340 = vunpack.c.l.b16 %v308
      %v341 = vunpack.c.l.b16 %v309
      %v342 = vunpack.c.l.b16 %v310
      %v343 = vunpack.c.l.b16 %v311
      %v344 = vpack.c.b16 %v329, %v328
      %v345 = vpack.c.b16 %v331, %v330
      %v346 = vpack.c.b16 %v333, %v332
      %v347 = vpack.c.b16 %v335, %v334
      %v348 = vpack.c.b16 %v337, %v336
      %v349 = vpack.c.b16 %v339, %v338
      %v350 = vpack.c.b16 %v341, %v340
      %v351 = vpack.c.b16 %v343, %v342
      %v353 = vshrl.u32 %v344, 16
      %v355 = vrot.slane %v353, 7
      %v356 = vshll.u32 %v344, 16
      %v358 = vor.u32 %v355, %v356
      %v360 = vshrl.u32 %v345, 16
      %v362 = vrot.slane %v360, 7
      %v363 = vshll.u32 %v345, 16
      %v365 = vor.u32 %v362, %v363
      %v367 = vshrl.u32 %v346, 16
      %v369 = vrot.slane %v367, 7
      %v370 = vshll.u32 %v346, 16
      %v372 = vor.u32 %v369, %v370
      %v374 = vshrl.u32 %v347, 16
      %v376 = vrot.slane %v374, 7
      %v377 = vshll.u32 %v347, 16
      %v379 = vor.u32 %v376, %v377
      %v381 = vshrl.u32 %v348, 16
      %v383 = vrot.slane %v381, 7
      %v384 = vshll.u32 %v348, 16
      %v386 = vor.u32 %v383, %v384
      %v388 = vshrl.u32 %v349, 16
      %v390 = vrot.slane %v388, 7
      %v391 = vshll.u32 %v349, 16
      %v393 = vor.u32 %v390, %v391
      %v395 = vshrl.u32 %v350, 16
      %v397 = vrot.slane %v395, 7
      %v398 = vshll.u32 %v350, 16
      %v400 = vor.u32 %v397, %v398
      %v402 = vshrl.u32 %v351, 16
      %v404 = vrot.slane %v402, 7
      %v405 = vshll.u32 %v351, 16
      %v407 = vor.u32 %v404, %v405
      %vm416 = vcmask 1040384
      %vm417 = vsmask.f32 256
      %vm418 = vmand %vm416, %vm417
      %v419 = vsel %vm418, 0, %v358
      %v420 = vsel %vm418, 0, %v365
      %v421 = vsel %vm418, 0, %v372
      %v422 = vsel %vm418, 0, %v379
      %v423 = vsel %vm418, 0, %v386
      %v424 = vsel %vm418, 0, %v393
      %v425 = vsel %vm418, 0, %v400
      %v426 = vsel %vm418, 0, %v407
      %v435 = vunpack.c.l.b16 %v419
      %v436 = vunpack.c.h.b16 %v419
      %v437 = vunpack.c.l.b16 %v420
      %v438 = vunpack.c.h.b16 %v420
      %v439 = vunpack.c.l.b16 %v421
      %v440 = vunpack.c.h.b16 %v421
      %v441 = vunpack.c.l.b16 %v422
      %v442 = vunpack.c.h.b16 %v422
      %v443 = vunpack.c.l.b16 %v423
      %v444 = vunpack.c.h.b16 %v423
      %v445 = vunpack.c.l.b16 %v424
      %v446 = vunpack.c.h.b16 %v424
      %v447 = vunpack.c.l.b16 %v425
      %v448 = vunpack.c.h.b16 %v425
      %v449 = vunpack.c.l.b16 %v426
      %v450 = vunpack.c.h.b16 %v426
      %v451 = vpack.c.b16 %v435, %v435
      %v452 = vpack.c.b16 %v436, %v436
      %v453 = vpack.c.b16 %v437, %v437
      %v454 = vpack.c.b16 %v438, %v438
      %v455 = vpack.c.b16 %v439, %v439
      %v456 = vpack.c.b16 %v440, %v440
      %v457 = vpack.c.b16 %v441, %v441
      %v458 = vpack.c.b16 %v442, %v442
      %v459 = vpack.c.b16 %v443, %v443
      %v460 = vpack.c.b16 %v444, %v444
      %v461 = vpack.c.b16 %v445, %v445
      %v462 = vpack.c.b16 %v446, %v446
      %v463 = vpack.c.b16 %v447, %v447
      %v464 = vpack.c.b16 %v448, %v448
      %v465 = vpack.c.b16 %v449, %v449
      %v466 = vpack.c.b16 %v450, %v450
      %s483 = scalar_lea.vmem [#allocation2], 24
      %484 = vst [vmem:[%s483] sm:$0xf] %v451
      %485 = vst [vmem:[%s483 + $0xc] sm:$0xf] %v452
      %486 = vst [vmem:[%s483 + $0x18] sm:$0xf] %v453
      %487 = vst [vmem:[%s483 + $0x24] sm:$0xf] %v454
      %488 = vst [vmem:[%s483 + $0x30] sm:$0xf] %v455
      %489 = vst [vmem:[%s483 + $0x3c] sm:$0xf] %v456
      %490 = vst [vmem:[%s483 + $0x48] sm:$0xf] %v457
      %491 = vst [vmem:[%s483 + $0x54] sm:$0xf] %v458
      %492 = vst [vmem:[%s483 + $0x60] sm:$0xf] %v459
      %493 = vst [vmem:[%s483 + $0x6c] sm:$0xf] %v460
      %494 = vst [vmem:[%s483 + $0x78] sm:$0xf] %v461
      %495 = vst [vmem:[%s483 + $0x84] sm:$0xf] %v462
      %496 = vst [vmem:[%s483 + $0x90] sm:$0xf] %v463
      %497 = vst [vmem:[%s483 + $0x9c] sm:$0xf] %v464
      %498 = vst [vmem:[%s483 + $0xa8] sm:$0xf] %v465
      %499 = vst [vmem:[%s483 + $0xb4] sm:$0xf] %v466
      %500 = vst [vmem:[%s483 + $0x4] sm:$0xf] %v296
      %501 = vst [vmem:[%s483 + $0x10] sm:$0xf] %v297
      %502 = vst [vmem:[%s483 + $0x1c] sm:$0xf] %v298
      %503 = vst [vmem:[%s483 + $0x28] sm:$0xf] %v299
      %504 = vst [vmem:[%s483 + $0x34] sm:$0xf] %v300
      %505 = vst [vmem:[%s483 + $0x40] sm:$0xf] %v301
      %506 = vst [vmem:[%s483 + $0x4c] sm:$0xf] %v302
      %507 = vst [vmem:[%s483 + $0x58] sm:$0xf] %v303
      %508 = vst [vmem:[%s483 + $0x64] sm:$0xf] %v304
      %509 = vst [vmem:[%s483 + $0x70] sm:$0xf] %v305
      %510 = vst [vmem:[%s483 + $0x7c] sm:$0xf] %v306
      %511 = vst [vmem:[%s483 + $0x88] sm:$0xf] %v307
      %512 = vst [vmem:[%s483 + $0x94] sm:$0xf] %v308
      %513 = vst [vmem:[%s483 + $0xa0] sm:$0xf] %v309
      %514 = vst [vmem:[%s483 + $0xac] sm:$0xf] %v310
      %515 = vst [vmem:[%s483 + $0xb8] sm:$0xf] %v311
      %v516 = vrot.slane %v356, 1
      %v517 = vor.u32 %v353, %v516
      %v518 = vrot.slane %v363, 1
      %v519 = vor.u32 %v360, %v518
      %v520 = vrot.slane %v370, 1
      %v521 = vor.u32 %v367, %v520
      %v522 = vrot.slane %v377, 1
      %v523 = vor.u32 %v374, %v522
      %v524 = vrot.slane %v384, 1
      %v525 = vor.u32 %v381, %v524
      %v526 = vrot.slane %v391, 1
      %v527 = vor.u32 %v388, %v526
      %v528 = vrot.slane %v398, 1
      %v529 = vor.u32 %v395, %v528
      %v530 = vrot.slane %v405, 1
      %v531 = vor.u32 %v402, %v530
      %vm540 = vcmask 1047552
      %vm541 = vsmask.f32 7424
      %vm542 = vmand %vm540, %vm541
      %v543 = vsel %vm542, %v517, 0
      %v544 = vsel %vm542, %v519, 0
      %v545 = vsel %vm542, %v521, 0
      %v546 = vsel %vm542, %v523, 0
      %v547 = vsel %vm542, %v525, 0
      %v548 = vsel %vm542, %v527, 0
      %v549 = vsel %vm542, %v529, 0
      %v550 = vsel %vm542, %v531, 0
      %v559 = vunpack.c.l.b16 %v543
      %v560 = vunpack.c.h.b16 %v543
      %v561 = vunpack.c.l.b16 %v544
      %v562 = vunpack.c.h.b16 %v544
      %v563 = vunpack.c.l.b16 %v545
      %v564 = vunpack.c.h.b16 %v545
      %v565 = vunpack.c.l.b16 %v546
      %v566 = vunpack.c.h.b16 %v546
      %v567 = vunpack.c.l.b16 %v547
      %v568 = vunpack.c.h.b16 %v547
      %v569 = vunpack.c.l.b16 %v548
      %v570 = vunpack.c.h.b16 %v548
      %v571 = vunpack.c.l.b16 %v549
      %v572 = vunpack.c.h.b16 %v549
      %v573 = vunpack.c.l.b16 %v550
      %v574 = vunpack.c.h.b16 %v550
      %v575 = vpack.c.b16 %v559, %v559
      %v576 = vpack.c.b16 %v560, %v560
      %v577 = vpack.c.b16 %v561, %v561
      %v578 = vpack.c.b16 %v562, %v562
      %v579 = vpack.c.b16 %v563, %v563
      %v580 = vpack.c.b16 %v564, %v564
      %v581 = vpack.c.b16 %v565, %v565
      %v582 = vpack.c.b16 %v566, %v566
      %v583 = vpack.c.b16 %v567, %v567
      %v584 = vpack.c.b16 %v568, %v568
      %v585 = vpack.c.b16 %v569, %v569
      %v586 = vpack.c.b16 %v570, %v570
      %v587 = vpack.c.b16 %v571, %v571
      %v588 = vpack.c.b16 %v572, %v572
      %v589 = vpack.c.b16 %v573, %v573
      %v590 = vpack.c.b16 %v574, %v574
      %607 = vst [vmem:[%s483 + $0x8] sm:$0xf] %v575
      %608 = vst [vmem:[%s483 + $0x14] sm:$0xf] %v576
      %609 = vst [vmem:[%s483 + $0x20] sm:$0xf] %v577
      %610 = vst [vmem:[%s483 + $0x2c] sm:$0xf] %v578
      %611 = vst [vmem:[%s483 + $0x38] sm:$0xf] %v579
      %612 = vst [vmem:[%s483 + $0x44] sm:$0xf] %v580
      %613 = vst [vmem:[%s483 + $0x50] sm:$0xf] %v581
      %614 = vst [vmem:[%s483 + $0x5c] sm:$0xf] %v582
      %615 = vst [vmem:[%s483 + $0x68] sm:$0xf] %v583
      %616 = vst [vmem:[%s483 + $0x74] sm:$0xf] %v584
      %617 = vst [vmem:[%s483 + $0x80] sm:$0xf] %v585
      %618 = vst [vmem:[%s483 + $0x8c] sm:$0xf] %v586
      %619 = vst [vmem:[%s483 + $0x98] sm:$0xf] %v587
      %620 = vst [vmem:[%s483 + $0xa4] sm:$0xf] %v588
      %621 = vst [vmem:[%s483 + $0xb0] sm:$0xf] %v589
      %622 = vst [vmem:[%s483 + $0xbc] sm:$0xf] %v590
      %s623 = scalar_lea.vmem %s192, 64
      %v624 = vld [vmem:[%s623] sm:$0xf]
      %v625 = vld [vmem:[%s623 + $0x4] sm:$0xf]
      %v626 = vld [vmem:[%s623 + $0x8] sm:$0xf]
      %v627 = vld [vmem:[%s623 + $0xc] sm:$0xf]
      %v628 = vld [vmem:[%s623 + $0x10] sm:$0xf]
      %v629 = vld [vmem:[%s623 + $0x14] sm:$0xf]
      %v630 = vld [vmem:[%s623 + $0x18] sm:$0xf]
      %v631 = vld [vmem:[%s623 + $0x1c] sm:$0xf]
      %v632 = vld [vmem:[%s623 + $0x20] sm:$0xf]
      %v633 = vld [vmem:[%s623 + $0x24] sm:$0xf]
      %v634 = vld [vmem:[%s623 + $0x28] sm:$0xf]
      %v635 = vld [vmem:[%s623 + $0x2c] sm:$0xf]
      %v636 = vld [vmem:[%s623 + $0x30] sm:$0xf]
      %v637 = vld [vmem:[%s623 + $0x34] sm:$0xf]
      %v638 = vld [vmem:[%s623 + $0x38] sm:$0xf]
      %v639 = vld [vmem:[%s623 + $0x3c] sm:$0xf]
      %v640 = vunpack.c.l.bf16 %v624
      %v641 = vunpack.c.l.bf16 %v625
      %v642 = vunpack.c.l.bf16 %v626
      %v643 = vunpack.c.l.bf16 %v627
      %v644 = vunpack.c.l.bf16 %v628
      %v645 = vunpack.c.l.bf16 %v629
      %v646 = vunpack.c.l.bf16 %v630
      %v647 = vunpack.c.l.bf16 %v631
      %v648 = vunpack.c.l.bf16 %v632
      %v649 = vunpack.c.l.bf16 %v633
      %v650 = vunpack.c.l.bf16 %v634
      %v651 = vunpack.c.l.bf16 %v635
      %v652 = vunpack.c.l.bf16 %v636
      %v653 = vunpack.c.l.bf16 %v637
      %v654 = vunpack.c.l.bf16 %v638
      %v655 = vunpack.c.l.bf16 %v639
      %v656 = vmul.f32 %v640, %v243
      %v657 = vmul.f32 %v641, %v243
      %v658 = vmul.f32 %v642, %v243
      %v659 = vmul.f32 %v643, %v243
      %v660 = vmul.f32 %v644, %v243
      %v661 = vmul.f32 %v645, %v243
      %v662 = vmul.f32 %v646, %v243
      %v663 = vmul.f32 %v647, %v243
      %v664 = vmul.f32 %v648, %v243
      %v665 = vmul.f32 %v649, %v243
      %v666 = vmul.f32 %v650, %v243
      %v667 = vmul.f32 %v651, %v243
      %v668 = vmul.f32 %v652, %v243
      %v669 = vmul.f32 %v653, %v243
      %v670 = vmul.f32 %v654, %v243
      %v671 = vmul.f32 %v655, %v243
      %v672 = vadd.f32 %v656, %v262
      %v673 = vadd.f32 %v657, %v262
      %v674 = vadd.f32 %v658, %v262
      %v675 = vadd.f32 %v659, %v262
      %v676 = vadd.f32 %v660, %v262
      %v677 = vadd.f32 %v661, %v262
      %v678 = vadd.f32 %v662, %v262
      %v679 = vadd.f32 %v663, %v262
      %v680 = vadd.f32 %v664, %v262
      %v681 = vadd.f32 %v665, %v262
      %v682 = vadd.f32 %v666, %v262
      %v683 = vadd.f32 %v667, %v262
      %v684 = vadd.f32 %v668, %v262
      %v685 = vadd.f32 %v669, %v262
      %v686 = vadd.f32 %v670, %v262
      %v687 = vadd.f32 %v671, %v262
      %v688 = vmax.f32 %v672, 0.0
      %v689 = vmax.f32 %v673, 0.0
      %v690 = vmax.f32 %v674, 0.0
      %v691 = vmax.f32 %v675, 0.0
      %v692 = vmax.f32 %v676, 0.0
      %v693 = vmax.f32 %v677, 0.0
      %v694 = vmax.f32 %v678, 0.0
      %v695 = vmax.f32 %v679, 0.0
      %v696 = vmax.f32 %v680, 0.0
      %v697 = vmax.f32 %v681, 0.0
      %v698 = vmax.f32 %v682, 0.0
      %v699 = vmax.f32 %v683, 0.0
      %v700 = vmax.f32 %v684, 0.0
      %v701 = vmax.f32 %v685, 0.0
      %v702 = vmax.f32 %v686, 0.0
      %v703 = vmax.f32 %v687, 0.0
      %v704 = vpack.c.bf16 %v688, %v688
      %v705 = vpack.c.bf16 %v689, %v689
      %v706 = vpack.c.bf16 %v690, %v690
      %v707 = vpack.c.bf16 %v691, %v691
      %v708 = vpack.c.bf16 %v692, %v692
      %v709 = vpack.c.bf16 %v693, %v693
      %v710 = vpack.c.bf16 %v694, %v694
      %v711 = vpack.c.bf16 %v695, %v695
      %v712 = vpack.c.bf16 %v696, %v696
      %v713 = vpack.c.bf16 %v697, %v697
      %v714 = vpack.c.bf16 %v698, %v698
      %v715 = vpack.c.bf16 %v699, %v699
      %v716 = vpack.c.bf16 %v700, %v700
      %v717 = vpack.c.bf16 %v701, %v701
      %v718 = vpack.c.bf16 %v702, %v702
      %v719 = vpack.c.bf16 %v703, %v703
      %v736 = vunpack.c.l.b16 %v704
      %v737 = vunpack.c.l.b16 %v705
      %v738 = vunpack.c.l.b16 %v706
      %v739 = vunpack.c.l.b16 %v707
      %v740 = vunpack.c.l.b16 %v708
      %v741 = vunpack.c.l.b16 %v709
      %v742 = vunpack.c.l.b16 %v710
      %v743 = vunpack.c.l.b16 %v711
      %v744 = vunpack.c.l.b16 %v712
      %v745 = vunpack.c.l.b16 %v713
      %v746 = vunpack.c.l.b16 %v714
      %v747 = vunpack.c.l.b16 %v715
      %v748 = vunpack.c.l.b16 %v716
      %v749 = vunpack.c.l.b16 %v717
      %v750 = vunpack.c.l.b16 %v718
      %v751 = vunpack.c.l.b16 %v719
      %v752 = vpack.c.b16 %v737, %v736
      %v753 = vpack.c.b16 %v739, %v738
      %v754 = vpack.c.b16 %v741, %v740
      %v755 = vpack.c.b16 %v743, %v742
      %v756 = vpack.c.b16 %v745, %v744
      %v757 = vpack.c.b16 %v747, %v746
      %v758 = vpack.c.b16 %v749, %v748
      %v759 = vpack.c.b16 %v751, %v750
      %v761 = vshrl.u32 %v752, 16
      %v763 = vrot.slane %v761, 7
      %v764 = vshll.u32 %v752, 16
      %v766 = vor.u32 %v763, %v764
      %v768 = vshrl.u32 %v753, 16
      %v770 = vrot.slane %v768, 7
      %v771 = vshll.u32 %v753, 16
      %v773 = vor.u32 %v770, %v771
      %v775 = vshrl.u32 %v754, 16
      %v777 = vrot.slane %v775, 7
      %v778 = vshll.u32 %v754, 16
      %v780 = vor.u32 %v777, %v778
      %v782 = vshrl.u32 %v755, 16
      %v784 = vrot.slane %v782, 7
      %v785 = vshll.u32 %v755, 16
      %v787 = vor.u32 %v784, %v785
      %v789 = vshrl.u32 %v756, 16
      %v791 = vrot.slane %v789, 7
      %v792 = vshll.u32 %v756, 16
      %v794 = vor.u32 %v791, %v792
      %v796 = vshrl.u32 %v757, 16
      %v798 = vrot.slane %v796, 7
      %v799 = vshll.u32 %v757, 16
      %v801 = vor.u32 %v798, %v799
      %v803 = vshrl.u32 %v758, 16
      %v805 = vrot.slane %v803, 7
      %v806 = vshll.u32 %v758, 16
      %v808 = vor.u32 %v805, %v806
      %v810 = vshrl.u32 %v759, 16
      %v812 = vrot.slane %v810, 7
      %v813 = vshll.u32 %v759, 16
      %v815 = vor.u32 %v812, %v813
      %v824 = vsel %vm418, 0, %v766
      %v825 = vsel %vm418, 0, %v773
      %v826 = vsel %vm418, 0, %v780
      %v827 = vsel %vm418, 0, %v787
      %v828 = vsel %vm418, 0, %v794
      %v829 = vsel %vm418, 0, %v801
      %v830 = vsel %vm418, 0, %v808
      %v831 = vsel %vm418, 0, %v815
      %v840 = vunpack.c.l.b16 %v824
      %v841 = vunpack.c.h.b16 %v824
      %v842 = vunpack.c.l.b16 %v825
      %v843 = vunpack.c.h.b16 %v825
      %v844 = vunpack.c.l.b16 %v826
      %v845 = vunpack.c.h.b16 %v826
      %v846 = vunpack.c.l.b16 %v827
      %v847 = vunpack.c.h.b16 %v827
      %v848 = vunpack.c.l.b16 %v828
      %v849 = vunpack.c.h.b16 %v828
      %v850 = vunpack.c.l.b16 %v829
      %v851 = vunpack.c.h.b16 %v829
      %v852 = vunpack.c.l.b16 %v830
      %v853 = vunpack.c.h.b16 %v830
      %v854 = vunpack.c.l.b16 %v831
      %v855 = vunpack.c.h.b16 %v831
      %v856 = vpack.c.b16 %v840, %v840
      %v857 = vpack.c.b16 %v841, %v841
      %v858 = vpack.c.b16 %v842, %v842
      %v859 = vpack.c.b16 %v843, %v843
      %v860 = vpack.c.b16 %v844, %v844
      %v861 = vpack.c.b16 %v845, %v845
      %v862 = vpack.c.b16 %v846, %v846
      %v863 = vpack.c.b16 %v847, %v847
      %v864 = vpack.c.b16 %v848, %v848
      %v865 = vpack.c.b16 %v849, %v849
      %v866 = vpack.c.b16 %v850, %v850
      %v867 = vpack.c.b16 %v851, %v851
      %v868 = vpack.c.b16 %v852, %v852
      %v869 = vpack.c.b16 %v853, %v853
      %v870 = vpack.c.b16 %v854, %v854
      %v871 = vpack.c.b16 %v855, %v855
      %s888 = scalar_lea.vmem [#allocation2], 216
      %889 = vst [vmem:[%s888] sm:$0xf] %v856
      %890 = vst [vmem:[%s888 + $0xc] sm:$0xf] %v857
      %891 = vst [vmem:[%s888 + $0x18] sm:$0xf] %v858
      %892 = vst [vmem:[%s888 + $0x24] sm:$0xf] %v859
      %893 = vst [vmem:[%s888 + $0x30] sm:$0xf] %v860
      %894 = vst [vmem:[%s888 + $0x3c] sm:$0xf] %v861
      %895 = vst [vmem:[%s888 + $0x48] sm:$0xf] %v862
      %896 = vst [vmem:[%s888 + $0x54] sm:$0xf] %v863
      %897 = vst [vmem:[%s888 + $0x60] sm:$0xf] %v864
      %898 = vst [vmem:[%s888 + $0x6c] sm:$0xf] %v865
      %899 = vst [vmem:[%s888 + $0x78] sm:$0xf] %v866
      %900 = vst [vmem:[%s888 + $0x84] sm:$0xf] %v867
      %901 = vst [vmem:[%s888 + $0x90] sm:$0xf] %v868
      %902 = vst [vmem:[%s888 + $0x9c] sm:$0xf] %v869
      %903 = vst [vmem:[%s888 + $0xa8] sm:$0xf] %v870
      %904 = vst [vmem:[%s888 + $0xb4] sm:$0xf] %v871
      %905 = vst [vmem:[%s888 + $0x4] sm:$0xf] %v704
      %906 = vst [vmem:[%s888 + $0x10] sm:$0xf] %v705
      %907 = vst [vmem:[%s888 + $0x1c] sm:$0xf] %v706
      %908 = vst [vmem:[%s888 + $0x28] sm:$0xf] %v707
      %909 = vst [vmem:[%s888 + $0x34] sm:$0xf] %v708
      %910 = vst [vmem:[%s888 + $0x40] sm:$0xf] %v709
      %911 = vst [vmem:[%s888 + $0x4c] sm:$0xf] %v710
      %912 = vst [vmem:[%s888 + $0x58] sm:$0xf] %v711
      %913 = vst [vmem:[%s888 + $0x64] sm:$0xf] %v712
      %914 = vst [vmem:[%s888 + $0x70] sm:$0xf] %v713
      %915 = vst [vmem:[%s888 + $0x7c] sm:$0xf] %v714
      %916 = vst [vmem:[%s888 + $0x88] sm:$0xf] %v715
      %917 = vst [vmem:[%s888 + $0x94] sm:$0xf] %v716
      %918 = vst [vmem:[%s888 + $0xa0] sm:$0xf] %v717
      %919 = vst [vmem:[%s888 + $0xac] sm:$0xf] %v718
      %920 = vst [vmem:[%s888 + $0xb8] sm:$0xf] %v719
      %v921 = vrot.slane %v764, 1
      %v922 = vor.u32 %v761, %v921
      %v923 = vrot.slane %v771, 1
      %v924 = vor.u32 %v768, %v923
      %v925 = vrot.slane %v778, 1
      %v926 = vor.u32 %v775, %v925
      %v927 = vrot.slane %v785, 1
      %v928 = vor.u32 %v782, %v927
      %v929 = vrot.slane %v792, 1
      %v930 = vor.u32 %v789, %v929
      %v931 = vrot.slane %v799, 1
      %v932 = vor.u32 %v796, %v931
      %v933 = vrot.slane %v806, 1
      %v934 = vor.u32 %v803, %v933
      %v935 = vrot.slane %v813, 1
      %v936 = vor.u32 %v810, %v935
      %v945 = vsel %vm542, %v922, 0
      %v946 = vsel %vm542, %v924, 0
      %v947 = vsel %vm542, %v926, 0
      %v948 = vsel %vm542, %v928, 0
      %v949 = vsel %vm542, %v930, 0
      %v950 = vsel %vm542, %v932, 0
      %v951 = vsel %vm542, %v934, 0
      %v952 = vsel %vm542, %v936, 0
      %v961 = vunpack.c.l.b16 %v945
      %v962 = vunpack.c.h.b16 %v945
      %v963 = vunpack.c.l.b16 %v946
      %v964 = vunpack.c.h.b16 %v946
      %v965 = vunpack.c.l.b16 %v947
      %v966 = vunpack.c.h.b16 %v947
      %v967 = vunpack.c.l.b16 %v948
      %v968 = vunpack.c.h.b16 %v948
      %v969 = vunpack.c.l.b16 %v949
      %v970 = vunpack.c.h.b16 %v949
      %v971 = vunpack.c.l.b16 %v950
      %v972 = vunpack.c.h.b16 %v950
      %v973 = vunpack.c.l.b16 %v951
      %v974 = vunpack.c.h.b16 %v951
      %v975 = vunpack.c.l.b16 %v952
      %v976 = vunpack.c.h.b16 %v952
      %v977 = vpack.c.b16 %v961, %v961
      %v978 = vpack.c.b16 %v962, %v962
      %v979 = vpack.c.b16 %v963, %v963
      %v980 = vpack.c.b16 %v964, %v964
      %v981 = vpack.c.b16 %v965, %v965
      %v982 = vpack.c.b16 %v966, %v966
      %v983 = vpack.c.b16 %v967, %v967
      %v984 = vpack.c.b16 %v968, %v968
      %v985 = vpack.c.b16 %v969, %v969
      %v986 = vpack.c.b16 %v970, %v970
      %v987 = vpack.c.b16 %v971, %v971
      %v988 = vpack.c.b16 %v972, %v972
      %v989 = vpack.c.b16 %v973, %v973
      %v990 = vpack.c.b16 %v974, %v974
      %v991 = vpack.c.b16 %v975, %v975
      %v992 = vpack.c.b16 %v976, %v976
      %1009 = vst [vmem:[%s888 + $0x8] sm:$0xf] %v977
      %1010 = vst [vmem:[%s888 + $0x14] sm:$0xf] %v978
      %1011 = vst [vmem:[%s888 + $0x20] sm:$0xf] %v979
      %1012 = vst [vmem:[%s888 + $0x2c] sm:$0xf] %v980
      %1013 = vst [vmem:[%s888 + $0x38] sm:$0xf] %v981
      %1014 = vst [vmem:[%s888 + $0x44] sm:$0xf] %v982
      %1015 = vst [vmem:[%s888 + $0x50] sm:$0xf] %v983
      %1016 = vst [vmem:[%s888 + $0x5c] sm:$0xf] %v984
      %1017 = vst [vmem:[%s888 + $0x68] sm:$0xf] %v985
      %1018 = vst [vmem:[%s888 + $0x74] sm:$0xf] %v986
      %1019 = vst [vmem:[%s888 + $0x80] sm:$0xf] %v987
      %1020 = vst [vmem:[%s888 + $0x8c] sm:$0xf] %v988
      %1021 = vst [vmem:[%s888 + $0x98] sm:$0xf] %v989
      %1022 = vst [vmem:[%s888 + $0xa4] sm:$0xf] %v990
      %1023 = vst [vmem:[%s888 + $0xb0] sm:$0xf] %v991
      %1024 = vst [vmem:[%s888 + $0xbc] sm:$0xf] %v992
      %v1025 = vld [vmem:[#allocation2] sm:$0xff]
      %v1026 = vld [vmem:[#allocation2 + $0x8] sm:$0xf]
      %v1027 = vld [vmem:[#allocation2 + $0xc] sm:$0xff]
      %v1028 = vld [vmem:[#allocation2 + $0x14] sm:$0xf]
      %v1029 = vld [vmem:[#allocation2 + $0x18] sm:$0xff]
      %v1030 = vld [vmem:[#allocation2 + $0x20] sm:$0xf]
      %v1031 = vld [vmem:[#allocation2 + $0x24] sm:$0xff]
      %v1032 = vld [vmem:[#allocation2 + $0x2c] sm:$0xf]
      %v1033 = vld [vmem:[#allocation2 + $0x30] sm:$0xff]
      %v1034 = vld [vmem:[#allocation2 + $0x38] sm:$0xf]
      %v1035 = vld [vmem:[#allocation2 + $0x3c] sm:$0xff]
      %v1036 = vld [vmem:[#allocation2 + $0x44] sm:$0xf]
      %v1037 = vld [vmem:[#allocation2 + $0x48] sm:$0xff]
      %v1038 = vld [vmem:[#allocation2 + $0x50] sm:$0xf]
      %v1039 = vld [vmem:[#allocation2 + $0x54] sm:$0xff]
      %v1040 = vld [vmem:[#allocation2 + $0x5c] sm:$0xf]
      %v1041 = vld [vmem:[#allocation2 + $0x60] sm:$0xff]
      %v1042 = vld [vmem:[#allocation2 + $0x68] sm:$0xf]
      %v1043 = vld [vmem:[#allocation2 + $0x6c] sm:$0xff]
      %v1044 = vld [vmem:[#allocation2 + $0x74] sm:$0xf]
      %v1045 = vld [vmem:[#allocation2 + $0x78] sm:$0xff]
      %v1046 = vld [vmem:[#allocation2 + $0x80] sm:$0xf]
      %v1047 = vld [vmem:[#allocation2 + $0x84] sm:$0xff]
      %v1048 = vld [vmem:[#allocation2 + $0x8c] sm:$0xf]
      %v1049 = vld [vmem:[#allocation2 + $0x90] sm:$0xff]
      %v1050 = vld [vmem:[#allocation2 + $0x98] sm:$0xf]
      %v1051 = vld [vmem:[#allocation2 + $0x9c] sm:$0xff]
      %v1052 = vld [vmem:[#allocation2 + $0xa4] sm:$0xf]
      %v1053 = vld [vmem:[#allocation2 + $0xa8] sm:$0xff]
      %v1054 = vld [vmem:[#allocation2 + $0xb0] sm:$0xf]
      %v1055 = vld [vmem:[#allocation2 + $0xb4] sm:$0xff]
      %v1056 = vld [vmem:[#allocation2 + $0xbc] sm:$0xf]
      %v1057 = vld [vmem:[%s3] sm:$0xf]
      %v1058 = vld [vmem:[%s3 + $0x4] sm:$0xf]
      %v1059 = vld [vmem:[%s3 + $0x8] sm:$0xf]
      %v1060 = vld [vmem:[%s3 + $0xc] sm:$0xf]
      %v1061 = vld [vmem:[%s3 + $0x10] sm:$0xf]
      %v1062 = vld [vmem:[%s3 + $0x14] sm:$0xf]
      %v1063 = vld [vmem:[%s3 + $0x18] sm:$0xf]
      %v1064 = vld [vmem:[%s3 + $0x1c] sm:$0xf]
      %v1065 = vld [vmem:[%s3 + $0x20] sm:$0xf]
      %v1066 = vld [vmem:[%s3 + $0x24] sm:$0xf]
      %v1067 = vld [vmem:[%s3 + $0x28] sm:$0xf]
      %v1068 = vld [vmem:[%s3 + $0x2c] sm:$0xf]
      %v1069 = vld [vmem:[%s3 + $0x30] sm:$0xf]
      %v1070 = vld [vmem:[%s3 + $0x34] sm:$0xf]
      %v1071 = vld [vmem:[%s3 + $0x38] sm:$0xf]
      %v1072 = vld [vmem:[%s3 + $0x3c] sm:$0xf]
      %v1073 = vld [vmem:[%s3 + $0x40] sm:$0xf]
      %v1074 = vld [vmem:[%s3 + $0x44] sm:$0xf]
      %v1075 = vld [vmem:[%s3 + $0x48] sm:$0xf]
      %v1076 = vld [vmem:[%s3 + $0x4c] sm:$0xf]
      %v1077 = vld [vmem:[%s3 + $0x50] sm:$0xf]
      %v1078 = vld [vmem:[%s3 + $0x54] sm:$0xf]
      %v1079 = vld [vmem:[%s3 + $0x58] sm:$0xf]
      %v1080 = vld [vmem:[%s3 + $0x5c] sm:$0xf]
      %v1081 = vld [vmem:[%s3 + $0x60] sm:$0xf]
      %v1082 = vld [vmem:[%s3 + $0x64] sm:$0xf]
      %v1083 = vld [vmem:[%s3 + $0x68] sm:$0xf]
      %v1084 = vld [vmem:[%s3 + $0x6c] sm:$0xf]
      %v1085 = vld [vmem:[%s3 + $0x70] sm:$0xf]
      %v1086 = vld [vmem:[%s3 + $0x74] sm:$0xf]
      %v1087 = vld [vmem:[%s3 + $0x78] sm:$0xf]
      %v1088 = vld [vmem:[%s3 + $0x7c] sm:$0xf]
      %v1089 = vld [vmem:[%s3 + $0x80] sm:$0xf]
      %v1090 = vld [vmem:[%s3 + $0x84] sm:$0xf]
      %v1091 = vld [vmem:[%s3 + $0x88] sm:$0xf]
      %v1092 = vld [vmem:[%s3 + $0x8c] sm:$0xf]
      %v1093 = vld [vmem:[%s3 + $0x90] sm:$0xf]
      %v1094 = vld [vmem:[%s3 + $0x94] sm:$0xf]
      %v1095 = vld [vmem:[%s3 + $0x98] sm:$0xf]
      %v1096 = vld [vmem:[%s3 + $0x9c] sm:$0xf]
      %v1097 = vld [vmem:[%s3 + $0xa0] sm:$0xf]
      %v1098 = vld [vmem:[%s3 + $0xa4] sm:$0xf]
      %v1099 = vld [vmem:[%s3 + $0xa8] sm:$0xf]
      %v1100 = vld [vmem:[%s3 + $0xac] sm:$0xf]
      %v1101 = vld [vmem:[%s3 + $0xb0] sm:$0xf]
      %v1102 = vld [vmem:[%s3 + $0xb4] sm:$0xf]
      %v1103 = vld [vmem:[%s3 + $0xb8] sm:$0xf]
      %v1104 = vld [vmem:[%s3 + $0xbc] sm:$0xf]
      %v1105 = vld [vmem:[%s483] sm:$0xff]
      %v1106 = vld [vmem:[%s483 + $0x8] sm:$0xf]
      %v1107 = vld [vmem:[%s483 + $0xc] sm:$0xff]
      %v1108 = vld [vmem:[%s483 + $0x14] sm:$0xf]
      %v1109 = vld [vmem:[%s483 + $0x18] sm:$0xff]
      %v1110 = vld [vmem:[%s483 + $0x20] sm:$0xf]
      %v1111 = vld [vmem:[%s483 + $0x24] sm:$0xff]
      %v1112 = vld [vmem:[%s483 + $0x2c] sm:$0xf]
      %v1113 = vld [vmem:[%s483 + $0x30] sm:$0xff]
      %v1114 = vld [vmem:[%s483 + $0x38] sm:$0xf]
      %v1115 = vld [vmem:[%s483 + $0x3c] sm:$0xff]
      %v1116 = vld [vmem:[%s483 + $0x44] sm:$0xf]
      %v1117 = vld [vmem:[%s483 + $0x48] sm:$0xff]
      %v1118 = vld [vmem:[%s483 + $0x50] sm:$0xf]
      %v1119 = vld [vmem:[%s483 + $0x54] sm:$0xff]
      %v1120 = vld [vmem:[%s483 + $0x5c] sm:$0xf]
      %v1121 = vld [vmem:[%s483 + $0x60] sm:$0xff]
      %v1122 = vld [vmem:[%s483 + $0x68] sm:$0xf]
      %v1123 = vld [vmem:[%s483 + $0x6c] sm:$0xff]
      %v1124 = vld [vmem:[%s483 + $0x74] sm:$0xf]
      %v1125 = vld [vmem:[%s483 + $0x78] sm:$0xff]
      %v1126 = vld [vmem:[%s483 + $0x80] sm:$0xf]
      %v1127 = vld [vmem:[%s483 + $0x84] sm:$0xff]
      %v1128 = vld [vmem:[%s483 + $0x8c] sm:$0xf]
      %v1129 = vld [vmem:[%s483 + $0x90] sm:$0xff]
      %v1130 = vld [vmem:[%s483 + $0x98] sm:$0xf]
      %v1131 = vld [vmem:[%s483 + $0x9c] sm:$0xff]
      %v1132 = vld [vmem:[%s483 + $0xa4] sm:$0xf]
      %v1133 = vld [vmem:[%s483 + $0xa8] sm:$0xff]
      %v1134 = vld [vmem:[%s483 + $0xb0] sm:$0xf]
      %v1135 = vld [vmem:[%s483 + $0xb4] sm:$0xff]
      %v1136 = vld [vmem:[%s483 + $0xbc] sm:$0xf]
      %s1137 = scalar_lea.vmem %s3, 192
      %v1138 = vld [vmem:[%s1137] sm:$0xf]
      %v1139 = vld [vmem:[%s1137 + $0x4] sm:$0xf]
      %v1140 = vld [vmem:[%s1137 + $0x8] sm:$0xf]
      %v1141 = vld [vmem:[%s1137 + $0xc] sm:$0xf]
      %v1142 = vld [vmem:[%s1137 + $0x10] sm:$0xf]
      %v1143 = vld [vmem:[%s1137 + $0x14] sm:$0xf]
      %v1144 = vld [vmem:[%s1137 + $0x18] sm:$0xf]
      %v1145 = vld [vmem:[%s1137 + $0x1c] sm:$0xf]
      %v1146 = vld [vmem:[%s1137 + $0x20] sm:$0xf]
      %v1147 = vld [vmem:[%s1137 + $0x24] sm:$0xf]
      %v1148 = vld [vmem:[%s1137 + $0x28] sm:$0xf]
      %v1149 = vld [vmem:[%s1137 + $0x2c] sm:$0xf]
      %v1150 = vld [vmem:[%s1137 + $0x30] sm:$0xf]
      %v1151 = vld [vmem:[%s1137 + $0x34] sm:$0xf]
      %v1152 = vld [vmem:[%s1137 + $0x38] sm:$0xf]
      %v1153 = vld [vmem:[%s1137 + $0x3c] sm:$0xf]
      %v1154 = vld [vmem:[%s1137 + $0x40] sm:$0xf]
      %v1155 = vld [vmem:[%s1137 + $0x44] sm:$0xf]
      %v1156 = vld [vmem:[%s1137 + $0x48] sm:$0xf]
      %v1157 = vld [vmem:[%s1137 + $0x4c] sm:$0xf]
      %v1158 = vld [vmem:[%s1137 + $0x50] sm:$0xf]
      %v1159 = vld [vmem:[%s1137 + $0x54] sm:$0xf]
      %v1160 = vld [vmem:[%s1137 + $0x58] sm:$0xf]
      %v1161 = vld [vmem:[%s1137 + $0x5c] sm:$0xf]
      %v1162 = vld [vmem:[%s1137 + $0x60] sm:$0xf]
      %v1163 = vld [vmem:[%s1137 + $0x64] sm:$0xf]
      %v1164 = vld [vmem:[%s1137 + $0x68] sm:$0xf]
      %v1165 = vld [vmem:[%s1137 + $0x6c] sm:$0xf]
      %v1166 = vld [vmem:[%s1137 + $0x70] sm:$0xf]
      %v1167 = vld [vmem:[%s1137 + $0x74] sm:$0xf]
      %v1168 = vld [vmem:[%s1137 + $0x78] sm:$0xf]
      %v1169 = vld [vmem:[%s1137 + $0x7c] sm:$0xf]
      %v1170 = vld [vmem:[%s1137 + $0x80] sm:$0xf]
      %v1171 = vld [vmem:[%s1137 + $0x84] sm:$0xf]
      %v1172 = vld [vmem:[%s1137 + $0x88] sm:$0xf]
      %v1173 = vld [vmem:[%s1137 + $0x8c] sm:$0xf]
      %v1174 = vld [vmem:[%s1137 + $0x90] sm:$0xf]
      %v1175 = vld [vmem:[%s1137 + $0x94] sm:$0xf]
      %v1176 = vld [vmem:[%s1137 + $0x98] sm:$0xf]
      %v1177 = vld [vmem:[%s1137 + $0x9c] sm:$0xf]
      %v1178 = vld [vmem:[%s1137 + $0xa0] sm:$0xf]
      %v1179 = vld [vmem:[%s1137 + $0xa4] sm:$0xf]
      %v1180 = vld [vmem:[%s1137 + $0xa8] sm:$0xf]
      %v1181 = vld [vmem:[%s1137 + $0xac] sm:$0xf]
      %v1182 = vld [vmem:[%s1137 + $0xb0] sm:$0xf]
      %v1183 = vld [vmem:[%s1137 + $0xb4] sm:$0xf]
      %v1184 = vld [vmem:[%s1137 + $0xb8] sm:$0xf]
      %v1185 = vld [vmem:[%s1137 + $0xbc] sm:$0xf]
      %v1218 = vunpack.c.l.b16 %v1105
      %v1219 = vunpack.c.h.b16 %v1105
      %v1220 = vunpack.c.l.b16 %v1106
      %v1221 = vunpack.c.l.b16 %v1107
      %v1222 = vunpack.c.h.b16 %v1107
      %v1223 = vunpack.c.l.b16 %v1108
      %v1224 = vunpack.c.l.b16 %v1109
      %v1225 = vunpack.c.h.b16 %v1109
      %v1226 = vunpack.c.l.b16 %v1110
      %v1227 = vunpack.c.l.b16 %v1111
      %v1228 = vunpack.c.h.b16 %v1111
      %v1229 = vunpack.c.l.b16 %v1112
      %v1230 = vunpack.c.l.b16 %v1113
      %v1231 = vunpack.c.h.b16 %v1113
      %v1232 = vunpack.c.l.b16 %v1114
      %v1233 = vunpack.c.l.b16 %v1115
      %v1234 = vunpack.c.h.b16 %v1115
      %v1235 = vunpack.c.l.b16 %v1116
      %v1236 = vunpack.c.l.b16 %v1117
      %v1237 = vunpack.c.h.b16 %v1117
      %v1238 = vunpack.c.l.b16 %v1118
      %v1239 = vunpack.c.l.b16 %v1119
      %v1240 = vunpack.c.h.b16 %v1119
      %v1241 = vunpack.c.l.b16 %v1120
      %v1242 = vunpack.c.l.b16 %v1121
      %v1243 = vunpack.c.h.b16 %v1121
      %v1244 = vunpack.c.l.b16 %v1122
      %v1245 = vunpack.c.l.b16 %v1123
      %v1246 = vunpack.c.h.b16 %v1123
      %v1247 = vunpack.c.l.b16 %v1124
      %v1248 = vunpack.c.l.b16 %v1125
      %v1249 = vunpack.c.h.b16 %v1125
      %v1250 = vunpack.c.l.b16 %v1126
      %v1251 = vunpack.c.l.b16 %v1127
      %v1252 = vunpack.c.h.b16 %v1127
      %v1253 = vunpack.c.l.b16 %v1128
      %v1254 = vunpack.c.l.b16 %v1129
      %v1255 = vunpack.c.h.b16 %v1129
      %v1256 = vunpack.c.l.b16 %v1130
      %v1257 = vunpack.c.l.b16 %v1131
      %v1258 = vunpack.c.h.b16 %v1131
      %v1259 = vunpack.c.l.b16 %v1132
      %v1260 = vunpack.c.l.b16 %v1133
      %v1261 = vunpack.c.h.b16 %v1133
      %v1262 = vunpack.c.l.b16 %v1134
      %v1263 = vunpack.c.l.b16 %v1135
      %v1264 = vunpack.c.h.b16 %v1135
      %v1265 = vunpack.c.l.b16 %v1136
      %v1266 = vpack.c.b16 %v1221, %v1218
      %v1267 = vpack.c.b16 %v1222, %v1219
      %v1268 = vpack.c.b16 %v1223, %v1220
      %v1269 = vpack.c.b16 %v1227, %v1224
      %v1270 = vpack.c.b16 %v1228, %v1225
      %v1271 = vpack.c.b16 %v1229, %v1226
      %v1272 = vpack.c.b16 %v1233, %v1230
      %v1273 = vpack.c.b16 %v1234, %v1231
      %v1274 = vpack.c.b16 %v1235, %v1232
      %v1275 = vpack.c.b16 %v1239, %v1236
      %v1276 = vpack.c.b16 %v1240, %v1237
      %v1277 = vpack.c.b16 %v1241, %v1238
      %v1278 = vpack.c.b16 %v1245, %v1242
      %v1279 = vpack.c.b16 %v1246, %v1243
      %v1280 = vpack.c.b16 %v1247, %v1244
      %v1281 = vpack.c.b16 %v1251, %v1248
      %v1282 = vpack.c.b16 %v1252, %v1249
      %v1283 = vpack.c.b16 %v1253, %v1250
      %v1284 = vpack.c.b16 %v1257, %v1254
      %v1285 = vpack.c.b16 %v1258, %v1255
      %v1286 = vpack.c.b16 %v1259, %v1256
      %v1287 = vpack.c.b16 %v1263, %v1260
      %v1288 = vpack.c.b16 %v1264, %v1261
      %v1289 = vpack.c.b16 %v1265, %v1262
      %v1362 = vunpack.c.l.b16 %v1138
      %v1363 = vunpack.c.l.b16 %v1139
      %v1364 = vunpack.c.l.b16 %v1140
      %v1365 = vunpack.c.l.b16 %v1141
      %v1366 = vunpack.c.l.b16 %v1142
      %v1367 = vunpack.c.l.b16 %v1143
      %v1368 = vunpack.c.l.b16 %v1144
      %v1369 = vunpack.c.l.b16 %v1145
      %v1370 = vunpack.c.l.b16 %v1146
      %v1371 = vunpack.c.l.b16 %v1147
      %v1372 = vunpack.c.l.b16 %v1148
      %v1373 = vunpack.c.l.b16 %v1149
      %v1374 = vunpack.c.l.b16 %v1150
      %v1375 = vunpack.c.l.b16 %v1151
      %v1376 = vunpack.c.l.b16 %v1152
      %v1377 = vunpack.c.l.b16 %v1153
      %v1378 = vunpack.c.l.b16 %v1154
      %v1379 = vunpack.c.l.b16 %v1155
      %v1380 = vunpack.c.l.b16 %v1156
      %v1381 = vunpack.c.l.b16 %v1157
      %v1382 = vunpack.c.l.b16 %v1158
      %v1383 = vunpack.c.l.b16 %v1159
      %v1384 = vunpack.c.l.b16 %v1160
      %v1385 = vunpack.c.l.b16 %v1161
      %v1386 = vunpack.c.l.b16 %v1162
      %v1387 = vunpack.c.l.b16 %v1163
      %v1388 = vunpack.c.l.b16 %v1164
      %v1389 = vunpack.c.l.b16 %v1165
      %v1390 = vunpack.c.l.b16 %v1166
      %v1391 = vunpack.c.l.b16 %v1167
      %v1392 = vunpack.c.l.b16 %v1168
      %v1393 = vunpack.c.l.b16 %v1169
      %v1394 = vunpack.c.l.b16 %v1170
      %v1395 = vunpack.c.l.b16 %v1171
      %v1396 = vunpack.c.l.b16 %v1172
      %v1397 = vunpack.c.l.b16 %v1173
      %v1398 = vunpack.c.l.b16 %v1174
      %v1399 = vunpack.c.l.b16 %v1175
      %v1400 = vunpack.c.l.b16 %v1176
      %v1401 = vunpack.c.l.b16 %v1177
      %v1402 = vunpack.c.l.b16 %v1178
      %v1403 = vunpack.c.l.b16 %v1179
      %v1404 = vunpack.c.l.b16 %v1180
      %v1405 = vunpack.c.l.b16 %v1181
      %v1406 = vunpack.c.l.b16 %v1182
      %v1407 = vunpack.c.l.b16 %v1183
      %v1408 = vunpack.c.l.b16 %v1184
      %v1409 = vunpack.c.l.b16 %v1185
      %v1410 = vpack.c.b16 %v1363, %v1362
      %v1411 = vpack.c.b16 %v1365, %v1364
      %v1412 = vpack.c.b16 %v1367, %v1366
      %v1413 = vpack.c.b16 %v1369, %v1368
      %v1414 = vpack.c.b16 %v1371, %v1370
      %v1415 = vpack.c.b16 %v1373, %v1372
      %v1416 = vpack.c.b16 %v1375, %v1374
      %v1417 = vpack.c.b16 %v1377, %v1376
      %v1418 = vpack.c.b16 %v1379, %v1378
      %v1419 = vpack.c.b16 %v1381, %v1380
      %v1420 = vpack.c.b16 %v1383, %v1382
      %v1421 = vpack.c.b16 %v1385, %v1384
      %v1422 = vpack.c.b16 %v1387, %v1386
      %v1423 = vpack.c.b16 %v1389, %v1388
      %v1424 = vpack.c.b16 %v1391, %v1390
      %v1425 = vpack.c.b16 %v1393, %v1392
      %v1426 = vpack.c.b16 %v1395, %v1394
      %v1427 = vpack.c.b16 %v1397, %v1396
      %v1428 = vpack.c.b16 %v1399, %v1398
      %v1429 = vpack.c.b16 %v1401, %v1400
      %v1430 = vpack.c.b16 %v1403, %v1402
      %v1431 = vpack.c.b16 %v1405, %v1404
      %v1432 = vpack.c.b16 %v1407, %v1406
      %v1433 = vpack.c.b16 %v1409, %v1408
      %1458 = vmatpush.bf16.msra.mxu0 %v1417
      %1459 = vmatpush.bf16.msra.mxu0 %v1416
      %1460 = vmatpush.bf16.msra.mxu0 %v1415
      %1461 = vmatpush.bf16.msra.mxu0 %v1414
      %1462 = vmatpush.bf16.msra.mxu0 %v1413
      %1463 = vmatpush.bf16.msra.mxu0 %v1412
      %1464 = vmatpush.bf16.msra.mxu0 %v1411
      %1465 = vmatpush.bf16.msra.mxu0 %v1410
      %1466 = vmatmul.bf16.gmra.mxu0 %v1266
      %v1467 = vpop.f32.mrf.mxu0
      %v1468 = vadd.f32 0.0, %v1467
      %v1469 = vpop.f32.mrf.mxu0
      %v1470 = vadd.f32 0.0, %v1469
      %1471 = vmatmul.bf16.gmra.mxu0 %v1269
      %v1472 = vpop.f32.mrf.mxu0
      %v1473 = vadd.f32 0.0, %v1472
      %v1474 = vpop.f32.mrf.mxu0
      %v1475 = vadd.f32 0.0, %v1474
      %1476 = vmatmul.bf16.gmra.mxu0 %v1272
      %v1477 = vpop.f32.mrf.mxu0
      %v1478 = vadd.f32 0.0, %v1477
      %v1479 = vpop.f32.mrf.mxu0
      %v1480 = vadd.f32 0.0, %v1479
      %1481 = vmatmul.bf16.gmra.mxu0 %v1275
      %v1482 = vpop.f32.mrf.mxu0
      %v1483 = vadd.f32 0.0, %v1482
      %v1484 = vpop.f32.mrf.mxu0
      %v1485 = vadd.f32 0.0, %v1484
      %1486 = vmatmul.bf16.gmra.mxu0 %v1278
      %v1487 = vpop.f32.mrf.mxu0
      %v1488 = vadd.f32 0.0, %v1487
      %v1489 = vpop.f32.mrf.mxu0
      %v1490 = vadd.f32 0.0, %v1489
      %1491 = vmatmul.bf16.gmra.mxu0 %v1281
      %v1492 = vpop.f32.mrf.mxu0
      %v1493 = vadd.f32 0.0, %v1492
      %v1494 = vpop.f32.mrf.mxu0
      %v1495 = vadd.f32 0.0, %v1494
      %1496 = vmatmul.bf16.gmra.mxu0 %v1284
      %v1497 = vpop.f32.mrf.mxu0
      %v1498 = vadd.f32 0.0, %v1497
      %v1499 = vpop.f32.mrf.mxu0
      %v1500 = vadd.f32 0.0, %v1499
      %1501 = vmatmul.bf16.gmra.mxu0 %v1287
      %v1502 = vpop.f32.mrf.mxu0
      %v1503 = vadd.f32 0.0, %v1502
      %v1504 = vpop.f32.mrf.mxu0
      %v1505 = vadd.f32 0.0, %v1504
      %1506 = vdwg.mxu0
      %1507 = vmatpush.bf16.msra.mxu0 %v1425
      %1508 = vmatpush.bf16.msra.mxu0 %v1424
      %1509 = vmatpush.bf16.msra.mxu0 %v1423
      %1510 = vmatpush.bf16.msra.mxu0 %v1422
      %1511 = vmatpush.bf16.msra.mxu0 %v1421
      %1512 = vmatpush.bf16.msra.mxu0 %v1420
      %1513 = vmatpush.bf16.msra.mxu0 %v1419
      %1514 = vmatpush.bf16.msra.mxu0 %v1418
      %1515 = vmatmul.bf16.gmra.mxu0 %v1267
      %v1516 = vpop.f32.mrf.mxu0
      %v1517 = vadd.f32 %v1468, %v1516
      %v1518 = vpop.f32.mrf.mxu0
      %v1519 = vadd.f32 %v1470, %v1518
      %1520 = vmatmul.bf16.gmra.mxu0 %v1270
      %v1521 = vpop.f32.mrf.mxu0
      %v1522 = vadd.f32 %v1473, %v1521
      %v1523 = vpop.f32.mrf.mxu0
      %v1524 = vadd.f32 %v1475, %v1523
      %1525 = vmatmul.bf16.gmra.mxu0 %v1273
      %v1526 = vpop.f32.mrf.mxu0
      %v1527 = vadd.f32 %v1478, %v1526
      %v1528 = vpop.f32.mrf.mxu0
      %v1529 = vadd.f32 %v1480, %v1528
      %1530 = vmatmul.bf16.gmra.mxu0 %v1276
      %v1531 = vpop.f32.mrf.mxu0
      %v1532 = vadd.f32 %v1483, %v1531
      %v1533 = vpop.f32.mrf.mxu0
      %v1534 = vadd.f32 %v1485, %v1533
      %1535 = vmatmul.bf16.gmra.mxu0 %v1279
      %v1536 = vpop.f32.mrf.mxu0
      %v1537 = vadd.f32 %v1488, %v1536
      %v1538 = vpop.f32.mrf.mxu0
      %v1539 = vadd.f32 %v1490, %v1538
      %1540 = vmatmul.bf16.gmra.mxu0 %v1282
      %v1541 = vpop.f32.mrf.mxu0
      %v1542 = vadd.f32 %v1493, %v1541
      %v1543 = vpop.f32.mrf.mxu0
      %v1544 = vadd.f32 %v1495, %v1543
      %1545 = vmatmul.bf16.gmra.mxu0 %v1285
      %v1546 = vpop.f32.mrf.mxu0
      %v1547 = vadd.f32 %v1498, %v1546
      %v1548 = vpop.f32.mrf.mxu0
      %v1549 = vadd.f32 %v1500, %v1548
      %1550 = vmatmul.bf16.gmra.mxu0 %v1288
      %v1551 = vpop.f32.mrf.mxu0
      %v1552 = vadd.f32 %v1503, %v1551
      %v1553 = vpop.f32.mrf.mxu0
      %v1554 = vadd.f32 %v1505, %v1553
      %1555 = vdwg.mxu0
      %1556 = vmatpush.bf16.msra.mxu0 %v1433
      %1557 = vmatpush.bf16.msra.mxu0 %v1432
      %1558 = vmatpush.bf16.msra.mxu0 %v1431
      %1559 = vmatpush.bf16.msra.mxu0 %v1430
      %1560 = vmatpush.bf16.msra.mxu0 %v1429
      %1561 = vmatpush.bf16.msra.mxu0 %v1428
      %1562 = vmatpush.bf16.msra.mxu0 %v1427
      %1563 = vmatpush.bf16.msra.mxu0 %v1426
      %1564 = vmatmul.bf16.gmra.mxu0 %v1268
      %v1565 = vpop.f32.mrf.mxu0
      %v1566 = vadd.f32 %v1517, %v1565
      %v1567 = vpop.f32.mrf.mxu0
      %v1568 = vadd.f32 %v1519, %v1567
      %1569 = vmatmul.bf16.gmra.mxu0 %v1271
      %v1570 = vpop.f32.mrf.mxu0
      %v1571 = vadd.f32 %v1522, %v1570
      %v1572 = vpop.f32.mrf.mxu0
      %v1573 = vadd.f32 %v1524, %v1572
      %1574 = vmatmul.bf16.gmra.mxu0 %v1274
      %v1575 = vpop.f32.mrf.mxu0
      %v1576 = vadd.f32 %v1527, %v1575
      %v1577 = vpop.f32.mrf.mxu0
      %v1578 = vadd.f32 %v1529, %v1577
      %1579 = vmatmul.bf16.gmra.mxu0 %v1277
      %v1580 = vpop.f32.mrf.mxu0
      %v1581 = vadd.f32 %v1532, %v1580
      %v1582 = vpop.f32.mrf.mxu0
      %v1583 = vadd.f32 %v1534, %v1582
      %1584 = vmatmul.bf16.gmra.mxu0 %v1280
      %v1585 = vpop.f32.mrf.mxu0
      %v1586 = vadd.f32 %v1537, %v1585
      %v1587 = vpop.f32.mrf.mxu0
      %v1588 = vadd.f32 %v1539, %v1587
      %1589 = vmatmul.bf16.gmra.mxu0 %v1283
      %v1590 = vpop.f32.mrf.mxu0
      %v1591 = vadd.f32 %v1542, %v1590
      %v1592 = vpop.f32.mrf.mxu0
      %v1593 = vadd.f32 %v1544, %v1592
      %1594 = vmatmul.bf16.gmra.mxu0 %v1286
      %v1595 = vpop.f32.mrf.mxu0
      %v1596 = vadd.f32 %v1547, %v1595
      %v1597 = vpop.f32.mrf.mxu0
      %v1598 = vadd.f32 %v1549, %v1597
      %1599 = vmatmul.bf16.gmra.mxu0 %v1289
      %v1600 = vpop.f32.mrf.mxu0
      %v1601 = vadd.f32 %v1552, %v1600
      %v1602 = vpop.f32.mrf.mxu0
      %v1603 = vadd.f32 %v1554, %v1602
      %1604 = vdwg.mxu0
      %v1637 = vunpack.c.l.b16 %v1025
      %v1638 = vunpack.c.h.b16 %v1025
      %v1639 = vunpack.c.l.b16 %v1026
      %v1640 = vunpack.c.l.b16 %v1027
      %v1641 = vunpack.c.h.b16 %v1027
      %v1642 = vunpack.c.l.b16 %v1028
      %v1643 = vunpack.c.l.b16 %v1029
      %v1644 = vunpack.c.h.b16 %v1029
      %v1645 = vunpack.c.l.b16 %v1030
      %v1646 = vunpack.c.l.b16 %v1031
      %v1647 = vunpack.c.h.b16 %v1031
      %v1648 = vunpack.c.l.b16 %v1032
      %v1649 = vunpack.c.l.b16 %v1033
      %v1650 = vunpack.c.h.b16 %v1033
      %v1651 = vunpack.c.l.b16 %v1034
      %v1652 = vunpack.c.l.b16 %v1035
      %v1653 = vunpack.c.h.b16 %v1035
      %v1654 = vunpack.c.l.b16 %v1036
      %v1655 = vunpack.c.l.b16 %v1037
      %v1656 = vunpack.c.h.b16 %v1037
      %v1657 = vunpack.c.l.b16 %v1038
      %v1658 = vunpack.c.l.b16 %v1039
      %v1659 = vunpack.c.h.b16 %v1039
      %v1660 = vunpack.c.l.b16 %v1040
      %v1661 = vunpack.c.l.b16 %v1041
      %v1662 = vunpack.c.h.b16 %v1041
      %v1663 = vunpack.c.l.b16 %v1042
      %v1664 = vunpack.c.l.b16 %v1043
      %v1665 = vunpack.c.h.b16 %v1043
      %v1666 = vunpack.c.l.b16 %v1044
      %v1667 = vunpack.c.l.b16 %v1045
      %v1668 = vunpack.c.h.b16 %v1045
      %v1669 = vunpack.c.l.b16 %v1046
      %v1670 = vunpack.c.l.b16 %v1047
      %v1671 = vunpack.c.h.b16 %v1047
      %v1672 = vunpack.c.l.b16 %v1048
      %v1673 = vunpack.c.l.b16 %v1049
      %v1674 = vunpack.c.h.b16 %v1049
      %v1675 = vunpack.c.l.b16 %v1050
      %v1676 = vunpack.c.l.b16 %v1051
      %v1677 = vunpack.c.h.b16 %v1051
      %v1678 = vunpack.c.l.b16 %v1052
      %v1679 = vunpack.c.l.b16 %v1053
      %v1680 = vunpack.c.h.b16 %v1053
      %v1681 = vunpack.c.l.b16 %v1054
      %v1682 = vunpack.c.l.b16 %v1055
      %v1683 = vunpack.c.h.b16 %v1055
      %v1684 = vunpack.c.l.b16 %v1056
      %v1685 = vpack.c.b16 %v1640, %v1637
      %v1686 = vpack.c.b16 %v1641, %v1638
      %v1687 = vpack.c.b16 %v1642, %v1639
      %v1688 = vpack.c.b16 %v1646, %v1643
      %v1689 = vpack.c.b16 %v1647, %v1644
      %v1690 = vpack.c.b16 %v1648, %v1645
      %v1691 = vpack.c.b16 %v1652, %v1649
      %v1692 = vpack.c.b16 %v1653, %v1650
      %v1693 = vpack.c.b16 %v1654, %v1651
      %v1694 = vpack.c.b16 %v1658, %v1655
      %v1695 = vpack.c.b16 %v1659, %v1656
      %v1696 = vpack.c.b16 %v1660, %v1657
      %v1697 = vpack.c.b16 %v1664, %v1661
      %v1698 = vpack.c.b16 %v1665, %v1662
      %v1699 = vpack.c.b16 %v1666, %v1663
      %v1700 = vpack.c.b16 %v1670, %v1667
      %v1701 = vpack.c.b16 %v1671, %v1668
      %v1702 = vpack.c.b16 %v1672, %v1669
      %v1703 = vpack.c.b16 %v1676, %v1673
      %v1704 = vpack.c.b16 %v1677, %v1674
      %v1705 = vpack.c.b16 %v1678, %v1675
      %v1706 = vpack.c.b16 %v1682, %v1679
      %v1707 = vpack.c.b16 %v1683, %v1680
      %v1708 = vpack.c.b16 %v1684, %v1681
      %v1781 = vunpack.c.l.b16 %v1057
      %v1782 = vunpack.c.l.b16 %v1058
      %v1783 = vunpack.c.l.b16 %v1059
      %v1784 = vunpack.c.l.b16 %v1060
      %v1785 = vunpack.c.l.b16 %v1061
      %v1786 = vunpack.c.l.b16 %v1062
      %v1787 = vunpack.c.l.b16 %v1063
      %v1788 = vunpack.c.l.b16 %v1064
      %v1789 = vunpack.c.l.b16 %v1065
      %v1790 = vunpack.c.l.b16 %v1066
      %v1791 = vunpack.c.l.b16 %v1067
      %v1792 = vunpack.c.l.b16 %v1068
      %v1793 = vunpack.c.l.b16 %v1069
      %v1794 = vunpack.c.l.b16 %v1070
      %v1795 = vunpack.c.l.b16 %v1071
      %v1796 = vunpack.c.l.b16 %v1072
      %v1797 = vunpack.c.l.b16 %v1073
      %v1798 = vunpack.c.l.b16 %v1074
      %v1799 = vunpack.c.l.b16 %v1075
      %v1800 = vunpack.c.l.b16 %v1076
      %v1801 = vunpack.c.l.b16 %v1077
      %v1802 = vunpack.c.l.b16 %v1078
      %v1803 = vunpack.c.l.b16 %v1079
      %v1804 = vunpack.c.l.b16 %v1080
      %v1805 = vunpack.c.l.b16 %v1081
      %v1806 = vunpack.c.l.b16 %v1082
      %v1807 = vunpack.c.l.b16 %v1083
      %v1808 = vunpack.c.l.b16 %v1084
      %v1809 = vunpack.c.l.b16 %v1085
      %v1810 = vunpack.c.l.b16 %v1086
      %v1811 = vunpack.c.l.b16 %v1087
      %v1812 = vunpack.c.l.b16 %v1088
      %v1813 = vunpack.c.l.b16 %v1089
      %v1814 = vunpack.c.l.b16 %v1090
      %v1815 = vunpack.c.l.b16 %v1091
      %v1816 = vunpack.c.l.b16 %v1092
      %v1817 = vunpack.c.l.b16 %v1093
      %v1818 = vunpack.c.l.b16 %v1094
      %v1819 = vunpack.c.l.b16 %v1095
      %v1820 = vunpack.c.l.b16 %v1096
      %v1821 = vunpack.c.l.b16 %v1097
      %v1822 = vunpack.c.l.b16 %v1098
      %v1823 = vunpack.c.l.b16 %v1099
      %v1824 = vunpack.c.l.b16 %v1100
      %v1825 = vunpack.c.l.b16 %v1101
      %v1826 = vunpack.c.l.b16 %v1102
      %v1827 = vunpack.c.l.b16 %v1103
      %v1828 = vunpack.c.l.b16 %v1104
      %v1829 = vpack.c.b16 %v1782, %v1781
      %v1830 = vpack.c.b16 %v1784, %v1783
      %v1831 = vpack.c.b16 %v1786, %v1785
      %v1832 = vpack.c.b16 %v1788, %v1787
      %v1833 = vpack.c.b16 %v1790, %v1789
      %v1834 = vpack.c.b16 %v1792, %v1791
      %v1835 = vpack.c.b16 %v1794, %v1793
      %v1836 = vpack.c.b16 %v1796, %v1795
      %v1837 = vpack.c.b16 %v1798, %v1797
      %v1838 = vpack.c.b16 %v1800, %v1799
      %v1839 = vpack.c.b16 %v1802, %v1801
      %v1840 = vpack.c.b16 %v1804, %v1803
      %v1841 = vpack.c.b16 %v1806, %v1805
      %v1842 = vpack.c.b16 %v1808, %v1807
      %v1843 = vpack.c.b16 %v1810, %v1809
      %v1844 = vpack.c.b16 %v1812, %v1811
      %v1845 = vpack.c.b16 %v1814, %v1813
      %v1846 = vpack.c.b16 %v1816, %v1815
      %v1847 = vpack.c.b16 %v1818, %v1817
      %v1848 = vpack.c.b16 %v1820, %v1819
      %v1849 = vpack.c.b16 %v1822, %v1821
      %v1850 = vpack.c.b16 %v1824, %v1823
      %v1851 = vpack.c.b16 %v1826, %v1825
      %v1852 = vpack.c.b16 %v1828, %v1827
      %1877 = vmatpush.bf16.msra.mxu0 %v1836
      %1878 = vmatpush.bf16.msra.mxu0 %v1835
      %1879 = vmatpush.bf16.msra.mxu0 %v1834
      %1880 = vmatpush.bf16.msra.mxu0 %v1833
      %1881 = vmatpush.bf16.msra.mxu0 %v1832
      %1882 = vmatpush.bf16.msra.mxu0 %v1831
      %1883 = vmatpush.bf16.msra.mxu0 %v1830
      %1884 = vmatpush.bf16.msra.mxu0 %v1829
      %1885 = vmatmul.bf16.gmra.mxu0 %v1685
      %v1886 = vpop.f32.mrf.mxu0
      %v1887 = vadd.f32 %v1566, %v1886
      %v1888 = vpop.f32.mrf.mxu0
      %v1889 = vadd.f32 %v1568, %v1888
      %1890 = vmatmul.bf16.gmra.mxu0 %v1688
      %v1891 = vpop.f32.mrf.mxu0
      %v1892 = vadd.f32 %v1571, %v1891
      %v1893 = vpop.f32.mrf.mxu0
      %v1894 = vadd.f32 %v1573, %v1893
      %1895 = vmatmul.bf16.gmra.mxu0 %v1691
      %v1896 = vpop.f32.mrf.mxu0
      %v1897 = vadd.f32 %v1576, %v1896
      %v1898 = vpop.f32.mrf.mxu0
      %v1899 = vadd.f32 %v1578, %v1898
      %1900 = vmatmul.bf16.gmra.mxu0 %v1694
      %v1901 = vpop.f32.mrf.mxu0
      %v1902 = vadd.f32 %v1581, %v1901
      %v1903 = vpop.f32.mrf.mxu0
      %v1904 = vadd.f32 %v1583, %v1903
      %1905 = vmatmul.bf16.gmra.mxu0 %v1697
      %v1906 = vpop.f32.mrf.mxu0
      %v1907 = vadd.f32 %v1586, %v1906
      %v1908 = vpop.f32.mrf.mxu0
      %v1909 = vadd.f32 %v1588, %v1908
      %1910 = vmatmul.bf16.gmra.mxu0 %v1700
      %v1911 = vpop.f32.mrf.mxu0
      %v1912 = vadd.f32 %v1591, %v1911
      %v1913 = vpop.f32.mrf.mxu0
      %v1914 = vadd.f32 %v1593, %v1913
      %1915 = vmatmul.bf16.gmra.mxu0 %v1703
      %v1916 = vpop.f32.mrf.mxu0
      %v1917 = vadd.f32 %v1596, %v1916
      %v1918 = vpop.f32.mrf.mxu0
      %v1919 = vadd.f32 %v1598, %v1918
      %1920 = vmatmul.bf16.gmra.mxu0 %v1706
      %v1921 = vpop.f32.mrf.mxu0
      %v1922 = vadd.f32 %v1601, %v1921
      %v1923 = vpop.f32.mrf.mxu0
      %v1924 = vadd.f32 %v1603, %v1923
      %1925 = vdwg.mxu0
      %1926 = vmatpush.bf16.msra.mxu0 %v1844
      %1927 = vmatpush.bf16.msra.mxu0 %v1843
      %1928 = vmatpush.bf16.msra.mxu0 %v1842
      %1929 = vmatpush.bf16.msra.mxu0 %v1841
      %1930 = vmatpush.bf16.msra.mxu0 %v1840
      %1931 = vmatpush.bf16.msra.mxu0 %v1839
      %1932 = vmatpush.bf16.msra.mxu0 %v1838
      %1933 = vmatpush.bf16.msra.mxu0 %v1837
      %1934 = vmatmul.bf16.gmra.mxu0 %v1686
      %v1935 = vpop.f32.mrf.mxu0
      %v1936 = vadd.f32 %v1887, %v1935
      %v1937 = vpop.f32.mrf.mxu0
      %v1938 = vadd.f32 %v1889, %v1937
      %1939 = vmatmul.bf16.gmra.mxu0 %v1689
      %v1940 = vpop.f32.mrf.mxu0
      %v1941 = vadd.f32 %v1892, %v1940
      %v1942 = vpop.f32.mrf.mxu0
      %v1943 = vadd.f32 %v1894, %v1942
      %1944 = vmatmul.bf16.gmra.mxu0 %v1692
      %v1945 = vpop.f32.mrf.mxu0
      %v1946 = vadd.f32 %v1897, %v1945
      %v1947 = vpop.f32.mrf.mxu0
      %v1948 = vadd.f32 %v1899, %v1947
      %1949 = vmatmul.bf16.gmra.mxu0 %v1695
      %v1950 = vpop.f32.mrf.mxu0
      %v1951 = vadd.f32 %v1902, %v1950
      %v1952 = vpop.f32.mrf.mxu0
      %v1953 = vadd.f32 %v1904, %v1952
      %1954 = vmatmul.bf16.gmra.mxu0 %v1698
      %v1955 = vpop.f32.mrf.mxu0
      %v1956 = vadd.f32 %v1907, %v1955
      %v1957 = vpop.f32.mrf.mxu0
      %v1958 = vadd.f32 %v1909, %v1957
      %1959 = vmatmul.bf16.gmra.mxu0 %v1701
      %v1960 = vpop.f32.mrf.mxu0
      %v1961 = vadd.f32 %v1912, %v1960
      %v1962 = vpop.f32.mrf.mxu0
      %v1963 = vadd.f32 %v1914, %v1962
      %1964 = vmatmul.bf16.gmra.mxu0 %v1704
      %v1965 = vpop.f32.mrf.mxu0
      %v1966 = vadd.f32 %v1917, %v1965
      %v1967 = vpop.f32.mrf.mxu0
      %v1968 = vadd.f32 %v1919, %v1967
      %1969 = vmatmul.bf16.gmra.mxu0 %v1707
      %v1970 = vpop.f32.mrf.mxu0
      %v1971 = vadd.f32 %v1922, %v1970
      %v1972 = vpop.f32.mrf.mxu0
      %v1973 = vadd.f32 %v1924, %v1972
      %1974 = vdwg.mxu0
      %1975 = vmatpush.bf16.msra.mxu0 %v1852
      %1976 = vmatpush.bf16.msra.mxu0 %v1851
      %1977 = vmatpush.bf16.msra.mxu0 %v1850
      %1978 = vmatpush.bf16.msra.mxu0 %v1849
      %1979 = vmatpush.bf16.msra.mxu0 %v1848
      %1980 = vmatpush.bf16.msra.mxu0 %v1847
      %1981 = vmatpush.bf16.msra.mxu0 %v1846
      %1982 = vmatpush.bf16.msra.mxu0 %v1845
      %1983 = vmatmul.bf16.gmra.mxu0 %v1687
      %v1984 = vpop.f32.mrf.mxu0
      %v1985 = vadd.f32 %v1936, %v1984
      %v1986 = vpop.f32.mrf.mxu0
      %v1987 = vadd.f32 %v1938, %v1986
      %1988 = vmatmul.bf16.gmra.mxu0 %v1690
      %v1989 = vpop.f32.mrf.mxu0
      %v1990 = vadd.f32 %v1941, %v1989
      %v1991 = vpop.f32.mrf.mxu0
      %v1992 = vadd.f32 %v1943, %v1991
      %1993 = vmatmul.bf16.gmra.mxu0 %v1693
      %v1994 = vpop.f32.mrf.mxu0
      %v1995 = vadd.f32 %v1946, %v1994
      %v1996 = vpop.f32.mrf.mxu0
      %v1997 = vadd.f32 %v1948, %v1996
      %1998 = vmatmul.bf16.gmra.mxu0 %v1696
      %v1999 = vpop.f32.mrf.mxu0
      %v2000 = vadd.f32 %v1951, %v1999
      %v2001 = vpop.f32.mrf.mxu0
      %v2002 = vadd.f32 %v1953, %v2001
      %2003 = vmatmul.bf16.gmra.mxu0 %v1699
      %v2004 = vpop.f32.mrf.mxu0
      %v2005 = vadd.f32 %v1956, %v2004
      %v2006 = vpop.f32.mrf.mxu0
      %v2007 = vadd.f32 %v1958, %v2006
      %2008 = vmatmul.bf16.gmra.mxu0 %v1702
      %v2009 = vpop.f32.mrf.mxu0
      %v2010 = vadd.f32 %v1961, %v2009
      %v2011 = vpop.f32.mrf.mxu0
      %v2012 = vadd.f32 %v1963, %v2011
      %2013 = vmatmul.bf16.gmra.mxu0 %v1705
      %v2014 = vpop.f32.mrf.mxu0
      %v2015 = vadd.f32 %v1966, %v2014
      %v2016 = vpop.f32.mrf.mxu0
      %v2017 = vadd.f32 %v1968, %v2016
      %2018 = vmatmul.bf16.gmra.mxu0 %v1708
      %v2019 = vpop.f32.mrf.mxu0
      %v2020 = vadd.f32 %v1971, %v2019
      %v2021 = vpop.f32.mrf.mxu0
      %v2022 = vadd.f32 %v1973, %v2021
      %2023 = vdwg.mxu0
      %s2024 = scalar_lea.vmem [#allocation2], 48
      %v2025 = vld [vmem:[%s2024] sm:$0xff]
      %v2026 = vld [vmem:[%s2024 + $0x8] sm:$0xf]
      %v2027 = vld [vmem:[%s2024 + $0xc] sm:$0xff]
      %v2028 = vld [vmem:[%s2024 + $0x14] sm:$0xf]
      %v2029 = vld [vmem:[%s2024 + $0x18] sm:$0xff]
      %v2030 = vld [vmem:[%s2024 + $0x20] sm:$0xf]
      %v2031 = vld [vmem:[%s2024 + $0x24] sm:$0xff]
      %v2032 = vld [vmem:[%s2024 + $0x2c] sm:$0xf]
      %v2033 = vld [vmem:[%s2024 + $0x30] sm:$0xff]
      %v2034 = vld [vmem:[%s2024 + $0x38] sm:$0xf]
      %v2035 = vld [vmem:[%s2024 + $0x3c] sm:$0xff]
      %v2036 = vld [vmem:[%s2024 + $0x44] sm:$0xf]
      %v2037 = vld [vmem:[%s2024 + $0x48] sm:$0xff]
      %v2038 = vld [vmem:[%s2024 + $0x50] sm:$0xf]
      %v2039 = vld [vmem:[%s2024 + $0x54] sm:$0xff]
      %v2040 = vld [vmem:[%s2024 + $0x5c] sm:$0xf]
      %v2041 = vld [vmem:[%s2024 + $0x60] sm:$0xff]
      %v2042 = vld [vmem:[%s2024 + $0x68] sm:$0xf]
      %v2043 = vld [vmem:[%s2024 + $0x6c] sm:$0xff]
      %v2044 = vld [vmem:[%s2024 + $0x74] sm:$0xf]
      %v2045 = vld [vmem:[%s2024 + $0x78] sm:$0xff]
      %v2046 = vld [vmem:[%s2024 + $0x80] sm:$0xf]
      %v2047 = vld [vmem:[%s2024 + $0x84] sm:$0xff]
      %v2048 = vld [vmem:[%s2024 + $0x8c] sm:$0xf]
      %v2049 = vld [vmem:[%s2024 + $0x90] sm:$0xff]
      %v2050 = vld [vmem:[%s2024 + $0x98] sm:$0xf]
      %v2051 = vld [vmem:[%s2024 + $0x9c] sm:$0xff]
      %v2052 = vld [vmem:[%s2024 + $0xa4] sm:$0xf]
      %v2053 = vld [vmem:[%s2024 + $0xa8] sm:$0xff]
      %v2054 = vld [vmem:[%s2024 + $0xb0] sm:$0xf]
      %v2055 = vld [vmem:[%s2024 + $0xb4] sm:$0xff]
      %v2056 = vld [vmem:[%s2024 + $0xbc] sm:$0xf]
      %s2057 = scalar_lea.vmem %s3, 384
      %v2058 = vld [vmem:[%s2057] sm:$0xf]
      %v2059 = vld [vmem:[%s2057 + $0x4] sm:$0xf]
      %v2060 = vld [vmem:[%s2057 + $0x8] sm:$0xf]
      %v2061 = vld [vmem:[%s2057 + $0xc] sm:$0xf]
      %v2062 = vld [vmem:[%s2057 + $0x10] sm:$0xf]
      %v2063 = vld [vmem:[%s2057 + $0x14] sm:$0xf]
      %v2064 = vld [vmem:[%s2057 + $0x18] sm:$0xf]
      %v2065 = vld [vmem:[%s2057 + $0x1c] sm:$0xf]
      %v2066 = vld [vmem:[%s2057 + $0x20] sm:$0xf]
      %v2067 = vld [vmem:[%s2057 + $0x24] sm:$0xf]
      %v2068 = vld [vmem:[%s2057 + $0x28] sm:$0xf]
      %v2069 = vld [vmem:[%s2057 + $0x2c] sm:$0xf]
      %v2070 = vld [vmem:[%s2057 + $0x30] sm:$0xf]
      %v2071 = vld [vmem:[%s2057 + $0x34] sm:$0xf]
      %v2072 = vld [vmem:[%s2057 + $0x38] sm:$0xf]
      %v2073 = vld [vmem:[%s2057 + $0x3c] sm:$0xf]
      %v2074 = vld [vmem:[%s2057 + $0x40] sm:$0xf]
      %v2075 = vld [vmem:[%s2057 + $0x44] sm:$0xf]
      %v2076 = vld [vmem:[%s2057 + $0x48] sm:$0xf]
      %v2077 = vld [vmem:[%s2057 + $0x4c] sm:$0xf]
      %v2078 = vld [vmem:[%s2057 + $0x50] sm:$0xf]
      %v2079 = vld [vmem:[%s2057 + $0x54] sm:$0xf]
      %v2080 = vld [vmem:[%s2057 + $0x58] sm:$0xf]
      %v2081 = vld [vmem:[%s2057 + $0x5c] sm:$0xf]
      %v2082 = vld [vmem:[%s2057 + $0x60] sm:$0xf]
      %v2083 = vld [vmem:[%s2057 + $0x64] sm:$0xf]
      %v2084 = vld [vmem:[%s2057 + $0x68] sm:$0xf]
      %v2085 = vld [vmem:[%s2057 + $0x6c] sm:$0xf]
      %v2086 = vld [vmem:[%s2057 + $0x70] sm:$0xf]
      %v2087 = vld [vmem:[%s2057 + $0x74] sm:$0xf]
      %v2088 = vld [vmem:[%s2057 + $0x78] sm:$0xf]
      %v2089 = vld [vmem:[%s2057 + $0x7c] sm:$0xf]
      %v2090 = vld [vmem:[%s2057 + $0x80] sm:$0xf]
      %v2091 = vld [vmem:[%s2057 + $0x84] sm:$0xf]
      %v2092 = vld [vmem:[%s2057 + $0x88] sm:$0xf]
      %v2093 = vld [vmem:[%s2057 + $0x8c] sm:$0xf]
      %v2094 = vld [vmem:[%s2057 + $0x90] sm:$0xf]
      %v2095 = vld [vmem:[%s2057 + $0x94] sm:$0xf]
      %v2096 = vld [vmem:[%s2057 + $0x98] sm:$0xf]
      %v2097 = vld [vmem:[%s2057 + $0x9c] sm:$0xf]
      %v2098 = vld [vmem:[%s2057 + $0xa0] sm:$0xf]
      %v2099 = vld [vmem:[%s2057 + $0xa4] sm:$0xf]
      %v2100 = vld [vmem:[%s2057 + $0xa8] sm:$0xf]
      %v2101 = vld [vmem:[%s2057 + $0xac] sm:$0xf]
      %v2102 = vld [vmem:[%s2057 + $0xb0] sm:$0xf]
      %v2103 = vld [vmem:[%s2057 + $0xb4] sm:$0xf]
      %v2104 = vld [vmem:[%s2057 + $0xb8] sm:$0xf]
      %v2105 = vld [vmem:[%s2057 + $0xbc] sm:$0xf]
      %v2138 = vunpack.c.l.b16 %v2025
      %v2139 = vunpack.c.h.b16 %v2025
      %v2140 = vunpack.c.l.b16 %v2026
      %v2141 = vunpack.c.l.b16 %v2027
      %v2142 = vunpack.c.h.b16 %v2027
      %v2143 = vunpack.c.l.b16 %v2028
      %v2144 = vunpack.c.l.b16 %v2029
      %v2145 = vunpack.c.h.b16 %v2029
      %v2146 = vunpack.c.l.b16 %v2030
      %v2147 = vunpack.c.l.b16 %v2031
      %v2148 = vunpack.c.h.b16 %v2031
      %v2149 = vunpack.c.l.b16 %v2032
      %v2150 = vunpack.c.l.b16 %v2033
      %v2151 = vunpack.c.h.b16 %v2033
      %v2152 = vunpack.c.l.b16 %v2034
      %v2153 = vunpack.c.l.b16 %v2035
      %v2154 = vunpack.c.h.b16 %v2035
      %v2155 = vunpack.c.l.b16 %v2036
      %v2156 = vunpack.c.l.b16 %v2037
      %v2157 = vunpack.c.h.b16 %v2037
      %v2158 = vunpack.c.l.b16 %v2038
      %v2159 = vunpack.c.l.b16 %v2039
      %v2160 = vunpack.c.h.b16 %v2039
      %v2161 = vunpack.c.l.b16 %v2040
      %v2162 = vunpack.c.l.b16 %v2041
      %v2163 = vunpack.c.h.b16 %v2041
      %v2164 = vunpack.c.l.b16 %v2042
      %v2165 = vunpack.c.l.b16 %v2043
      %v2166 = vunpack.c.h.b16 %v2043
      %v2167 = vunpack.c.l.b16 %v2044
      %v2168 = vunpack.c.l.b16 %v2045
      %v2169 = vunpack.c.h.b16 %v2045
      %v2170 = vunpack.c.l.b16 %v2046
      %v2171 = vunpack.c.l.b16 %v2047
      %v2172 = vunpack.c.h.b16 %v2047
      %v2173 = vunpack.c.l.b16 %v2048
      %v2174 = vunpack.c.l.b16 %v2049
      %v2175 = vunpack.c.h.b16 %v2049
      %v2176 = vunpack.c.l.b16 %v2050
      %v2177 = vunpack.c.l.b16 %v2051
      %v2178 = vunpack.c.h.b16 %v2051
      %v2179 = vunpack.c.l.b16 %v2052
      %v2180 = vunpack.c.l.b16 %v2053
      %v2181 = vunpack.c.h.b16 %v2053
      %v2182 = vunpack.c.l.b16 %v2054
      %v2183 = vunpack.c.l.b16 %v2055
      %v2184 = vunpack.c.h.b16 %v2055
      %v2185 = vunpack.c.l.b16 %v2056
      %v2186 = vpack.c.b16 %v2141, %v2138
      %v2187 = vpack.c.b16 %v2142, %v2139
      %v2188 = vpack.c.b16 %v2143, %v2140
      %v2189 = vpack.c.b16 %v2147, %v2144
      %v2190 = vpack.c.b16 %v2148, %v2145
      %v2191 = vpack.c.b16 %v2149, %v2146
      %v2192 = vpack.c.b16 %v2153, %v2150
      %v2193 = vpack.c.b16 %v2154, %v2151
      %v2194 = vpack.c.b16 %v2155, %v2152
      %v2195 = vpack.c.b16 %v2159, %v2156
      %v2196 = vpack.c.b16 %v2160, %v2157
      %v2197 = vpack.c.b16 %v2161, %v2158
      %v2198 = vpack.c.b16 %v2165, %v2162
      %v2199 = vpack.c.b16 %v2166, %v2163
      %v2200 = vpack.c.b16 %v2167, %v2164
      %v2201 = vpack.c.b16 %v2171, %v2168
      %v2202 = vpack.c.b16 %v2172, %v2169
      %v2203 = vpack.c.b16 %v2173, %v2170
      %v2204 = vpack.c.b16 %v2177, %v2174
      %v2205 = vpack.c.b16 %v2178, %v2175
      %v2206 = vpack.c.b16 %v2179, %v2176
      %v2207 = vpack.c.b16 %v2183, %v2180
      %v2208 = vpack.c.b16 %v2184, %v2181
      %v2209 = vpack.c.b16 %v2185, %v2182
      %v2282 = vunpack.c.l.b16 %v2058
      %v2283 = vunpack.c.l.b16 %v2059
      %v2284 = vunpack.c.l.b16 %v2060
      %v2285 = vunpack.c.l.b16 %v2061
      %v2286 = vunpack.c.l.b16 %v2062
      %v2287 = vunpack.c.l.b16 %v2063
      %v2288 = vunpack.c.l.b16 %v2064
      %v2289 = vunpack.c.l.b16 %v2065
      %v2290 = vunpack.c.l.b16 %v2066
      %v2291 = vunpack.c.l.b16 %v2067
      %v2292 = vunpack.c.l.b16 %v2068
      %v2293 = vunpack.c.l.b16 %v2069
      %v2294 = vunpack.c.l.b16 %v2070
      %v2295 = vunpack.c.l.b16 %v2071
      %v2296 = vunpack.c.l.b16 %v2072
      %v2297 = vunpack.c.l.b16 %v2073
      %v2298 = vunpack.c.l.b16 %v2074
      %v2299 = vunpack.c.l.b16 %v2075
      %v2300 = vunpack.c.l.b16 %v2076
      %v2301 = vunpack.c.l.b16 %v2077
      %v2302 = vunpack.c.l.b16 %v2078
      %v2303 = vunpack.c.l.b16 %v2079
      %v2304 = vunpack.c.l.b16 %v2080
      %v2305 = vunpack.c.l.b16 %v2081
      %v2306 = vunpack.c.l.b16 %v2082
      %v2307 = vunpack.c.l.b16 %v2083
      %v2308 = vunpack.c.l.b16 %v2084
      %v2309 = vunpack.c.l.b16 %v2085
      %v2310 = vunpack.c.l.b16 %v2086
      %v2311 = vunpack.c.l.b16 %v2087
      %v2312 = vunpack.c.l.b16 %v2088
      %v2313 = vunpack.c.l.b16 %v2089
      %v2314 = vunpack.c.l.b16 %v2090
      %v2315 = vunpack.c.l.b16 %v2091
      %v2316 = vunpack.c.l.b16 %v2092
      %v2317 = vunpack.c.l.b16 %v2093
      %v2318 = vunpack.c.l.b16 %v2094
      %v2319 = vunpack.c.l.b16 %v2095
      %v2320 = vunpack.c.l.b16 %v2096
      %v2321 = vunpack.c.l.b16 %v2097
      %v2322 = vunpack.c.l.b16 %v2098
      %v2323 = vunpack.c.l.b16 %v2099
      %v2324 = vunpack.c.l.b16 %v2100
      %v2325 = vunpack.c.l.b16 %v2101
      %v2326 = vunpack.c.l.b16 %v2102
      %v2327 = vunpack.c.l.b16 %v2103
      %v2328 = vunpack.c.l.b16 %v2104
      %v2329 = vunpack.c.l.b16 %v2105
      %v2330 = vpack.c.b16 %v2283, %v2282
      %v2331 = vpack.c.b16 %v2285, %v2284
      %v2332 = vpack.c.b16 %v2287, %v2286
      %v2333 = vpack.c.b16 %v2289, %v2288
      %v2334 = vpack.c.b16 %v2291, %v2290
      %v2335 = vpack.c.b16 %v2293, %v2292
      %v2336 = vpack.c.b16 %v2295, %v2294
      %v2337 = vpack.c.b16 %v2297, %v2296
      %v2338 = vpack.c.b16 %v2299, %v2298
      %v2339 = vpack.c.b16 %v2301, %v2300
      %v2340 = vpack.c.b16 %v2303, %v2302
      %v2341 = vpack.c.b16 %v2305, %v2304
      %v2342 = vpack.c.b16 %v2307, %v2306
      %v2343 = vpack.c.b16 %v2309, %v2308
      %v2344 = vpack.c.b16 %v2311, %v2310
      %v2345 = vpack.c.b16 %v2313, %v2312
      %v2346 = vpack.c.b16 %v2315, %v2314
      %v2347 = vpack.c.b16 %v2317, %v2316
      %v2348 = vpack.c.b16 %v2319, %v2318
      %v2349 = vpack.c.b16 %v2321, %v2320
      %v2350 = vpack.c.b16 %v2323, %v2322
      %v2351 = vpack.c.b16 %v2325, %v2324
      %v2352 = vpack.c.b16 %v2327, %v2326
      %v2353 = vpack.c.b16 %v2329, %v2328
      %2378 = vmatpush.bf16.msra.mxu0 %v2337
      %2379 = vmatpush.bf16.msra.mxu0 %v2336
      %2380 = vmatpush.bf16.msra.mxu0 %v2335
      %2381 = vmatpush.bf16.msra.mxu0 %v2334
      %2382 = vmatpush.bf16.msra.mxu0 %v2333
      %2383 = vmatpush.bf16.msra.mxu0 %v2332
      %2384 = vmatpush.bf16.msra.mxu0 %v2331
      %2385 = vmatpush.bf16.msra.mxu0 %v2330
      %2386 = vmatmul.bf16.gmra.mxu0 %v2186
      %v2387 = vpop.f32.mrf.mxu0
      %v2388 = vadd.f32 0.0, %v2387
      %v2389 = vpop.f32.mrf.mxu0
      %v2390 = vadd.f32 0.0, %v2389
      %2391 = vmatmul.bf16.gmra.mxu0 %v2189
      %v2392 = vpop.f32.mrf.mxu0
      %v2393 = vadd.f32 0.0, %v2392
      %v2394 = vpop.f32.mrf.mxu0
      %v2395 = vadd.f32 0.0, %v2394
      %2396 = vmatmul.bf16.gmra.mxu0 %v2192
      %v2397 = vpop.f32.mrf.mxu0
      %v2398 = vadd.f32 0.0, %v2397
      %v2399 = vpop.f32.mrf.mxu0
      %v2400 = vadd.f32 0.0, %v2399
      %2401 = vmatmul.bf16.gmra.mxu0 %v2195
      %v2402 = vpop.f32.mrf.mxu0
      %v2403 = vadd.f32 0.0, %v2402
      %v2404 = vpop.f32.mrf.mxu0
      %v2405 = vadd.f32 0.0, %v2404
      %2406 = vmatmul.bf16.gmra.mxu0 %v2198
      %v2407 = vpop.f32.mrf.mxu0
      %v2408 = vadd.f32 0.0, %v2407
      %v2409 = vpop.f32.mrf.mxu0
      %v2410 = vadd.f32 0.0, %v2409
      %2411 = vmatmul.bf16.gmra.mxu0 %v2201
      %v2412 = vpop.f32.mrf.mxu0
      %v2413 = vadd.f32 0.0, %v2412
      %v2414 = vpop.f32.mrf.mxu0
      %v2415 = vadd.f32 0.0, %v2414
      %2416 = vmatmul.bf16.gmra.mxu0 %v2204
      %v2417 = vpop.f32.mrf.mxu0
      %v2418 = vadd.f32 0.0, %v2417
      %v2419 = vpop.f32.mrf.mxu0
      %v2420 = vadd.f32 0.0, %v2419
      %2421 = vmatmul.bf16.gmra.mxu0 %v2207
      %v2422 = vpop.f32.mrf.mxu0
      %v2423 = vadd.f32 0.0, %v2422
      %v2424 = vpop.f32.mrf.mxu0
      %v2425 = vadd.f32 0.0, %v2424
      %2426 = vdwg.mxu0
      %2427 = vmatpush.bf16.msra.mxu0 %v2345
      %2428 = vmatpush.bf16.msra.mxu0 %v2344
      %2429 = vmatpush.bf16.msra.mxu0 %v2343
      %2430 = vmatpush.bf16.msra.mxu0 %v2342
      %2431 = vmatpush.bf16.msra.mxu0 %v2341
      %2432 = vmatpush.bf16.msra.mxu0 %v2340
      %2433 = vmatpush.bf16.msra.mxu0 %v2339
      %2434 = vmatpush.bf16.msra.mxu0 %v2338
      %2435 = vmatmul.bf16.gmra.mxu0 %v2187
      %v2436 = vpop.f32.mrf.mxu0
      %v2437 = vadd.f32 %v2388, %v2436
      %v2438 = vpop.f32.mrf.mxu0
      %v2439 = vadd.f32 %v2390, %v2438
      %2440 = vmatmul.bf16.gmra.mxu0 %v2190
      %v2441 = vpop.f32.mrf.mxu0
      %v2442 = vadd.f32 %v2393, %v2441
      %v2443 = vpop.f32.mrf.mxu0
      %v2444 = vadd.f32 %v2395, %v2443
      %2445 = vmatmul.bf16.gmra.mxu0 %v2193
      %v2446 = vpop.f32.mrf.mxu0
      %v2447 = vadd.f32 %v2398, %v2446
      %v2448 = vpop.f32.mrf.mxu0
      %v2449 = vadd.f32 %v2400, %v2448
      %2450 = vmatmul.bf16.gmra.mxu0 %v2196
      %v2451 = vpop.f32.mrf.mxu0
      %v2452 = vadd.f32 %v2403, %v2451
      %v2453 = vpop.f32.mrf.mxu0
      %v2454 = vadd.f32 %v2405, %v2453
      %2455 = vmatmul.bf16.gmra.mxu0 %v2199
      %v2456 = vpop.f32.mrf.mxu0
      %v2457 = vadd.f32 %v2408, %v2456
      %v2458 = vpop.f32.mrf.mxu0
      %v2459 = vadd.f32 %v2410, %v2458
      %2460 = vmatmul.bf16.gmra.mxu0 %v2202
      %v2461 = vpop.f32.mrf.mxu0
      %v2462 = vadd.f32 %v2413, %v2461
      %v2463 = vpop.f32.mrf.mxu0
      %v2464 = vadd.f32 %v2415, %v2463
      %2465 = vmatmul.bf16.gmra.mxu0 %v2205
      %v2466 = vpop.f32.mrf.mxu0
      %v2467 = vadd.f32 %v2418, %v2466
      %v2468 = vpop.f32.mrf.mxu0
      %v2469 = vadd.f32 %v2420, %v2468
      %2470 = vmatmul.bf16.gmra.mxu0 %v2208
      %v2471 = vpop.f32.mrf.mxu0
      %v2472 = vadd.f32 %v2423, %v2471
      %v2473 = vpop.f32.mrf.mxu0
      %v2474 = vadd.f32 %v2425, %v2473
      %2475 = vdwg.mxu0
      %2476 = vmatpush.bf16.msra.mxu0 %v2353
      %2477 = vmatpush.bf16.msra.mxu0 %v2352
      %2478 = vmatpush.bf16.msra.mxu0 %v2351
      %2479 = vmatpush.bf16.msra.mxu0 %v2350
      %2480 = vmatpush.bf16.msra.mxu0 %v2349
      %2481 = vmatpush.bf16.msra.mxu0 %v2348
      %2482 = vmatpush.bf16.msra.mxu0 %v2347
      %2483 = vmatpush.bf16.msra.mxu0 %v2346
      %2484 = vmatmul.bf16.gmra.mxu0 %v2188
      %v2485 = vpop.f32.mrf.mxu0
      %v2486 = vadd.f32 %v2437, %v2485
      %v2487 = vpop.f32.mrf.mxu0
      %v2488 = vadd.f32 %v2439, %v2487
      %2489 = vmatmul.bf16.gmra.mxu0 %v2191
      %v2490 = vpop.f32.mrf.mxu0
      %v2491 = vadd.f32 %v2442, %v2490
      %v2492 = vpop.f32.mrf.mxu0
      %v2493 = vadd.f32 %v2444, %v2492
      %2494 = vmatmul.bf16.gmra.mxu0 %v2194
      %v2495 = vpop.f32.mrf.mxu0
      %v2496 = vadd.f32 %v2447, %v2495
      %v2497 = vpop.f32.mrf.mxu0
      %v2498 = vadd.f32 %v2449, %v2497
      %2499 = vmatmul.bf16.gmra.mxu0 %v2197
      %v2500 = vpop.f32.mrf.mxu0
      %v2501 = vadd.f32 %v2452, %v2500
      %v2502 = vpop.f32.mrf.mxu0
      %v2503 = vadd.f32 %v2454, %v2502
      %2504 = vmatmul.bf16.gmra.mxu0 %v2200
      %v2505 = vpop.f32.mrf.mxu0
      %v2506 = vadd.f32 %v2457, %v2505
      %v2507 = vpop.f32.mrf.mxu0
      %v2508 = vadd.f32 %v2459, %v2507
      %2509 = vmatmul.bf16.gmra.mxu0 %v2203
      %v2510 = vpop.f32.mrf.mxu0
      %v2511 = vadd.f32 %v2462, %v2510
      %v2512 = vpop.f32.mrf.mxu0
      %v2513 = vadd.f32 %v2464, %v2512
      %2514 = vmatmul.bf16.gmra.mxu0 %v2206
      %v2515 = vpop.f32.mrf.mxu0
      %v2516 = vadd.f32 %v2467, %v2515
      %v2517 = vpop.f32.mrf.mxu0
      %v2518 = vadd.f32 %v2469, %v2517
      %2519 = vmatmul.bf16.gmra.mxu0 %v2209
      %v2520 = vpop.f32.mrf.mxu0
      %v2521 = vadd.f32 %v2472, %v2520
      %v2522 = vpop.f32.mrf.mxu0
      %v2523 = vadd.f32 %v2474, %v2522
      %2524 = vdwg.mxu0
      %v2525 = vadd.f32 %v1985, %v2486
      %v2526 = vadd.f32 %v1987, %v2488
      %v2527 = vadd.f32 %v1990, %v2491
      %v2528 = vadd.f32 %v1992, %v2493
      %v2529 = vadd.f32 %v1995, %v2496
      %v2530 = vadd.f32 %v1997, %v2498
      %v2531 = vadd.f32 %v2000, %v2501
      %v2532 = vadd.f32 %v2002, %v2503
      %v2533 = vadd.f32 %v2005, %v2506
      %v2534 = vadd.f32 %v2007, %v2508
      %v2535 = vadd.f32 %v2010, %v2511
      %v2536 = vadd.f32 %v2012, %v2513
      %v2537 = vadd.f32 %v2015, %v2516
      %v2538 = vadd.f32 %v2017, %v2518
      %v2539 = vadd.f32 %v2020, %v2521
      %v2540 = vadd.f32 %v2022, %v2523
      %v2541 = vpack.c.bf16 %v2525, %v2525
      %v2542 = vpack.c.bf16 %v2526, %v2526
      %v2543 = vpack.c.bf16 %v2527, %v2527
      %v2544 = vpack.c.bf16 %v2528, %v2528
      %v2545 = vpack.c.bf16 %v2529, %v2529
      %v2546 = vpack.c.bf16 %v2530, %v2530
      %v2547 = vpack.c.bf16 %v2531, %v2531
      %v2548 = vpack.c.bf16 %v2532, %v2532
      %v2549 = vpack.c.bf16 %v2533, %v2533
      %v2550 = vpack.c.bf16 %v2534, %v2534
      %v2551 = vpack.c.bf16 %v2535, %v2535
      %v2552 = vpack.c.bf16 %v2536, %v2536
      %v2553 = vpack.c.bf16 %v2537, %v2537
      %v2554 = vpack.c.bf16 %v2538, %v2538
      %v2555 = vpack.c.bf16 %v2539, %v2539
      %v2556 = vpack.c.bf16 %v2540, %v2540
      %2557 = vst [vmem:[%s197] sm:$0xf] %v2541
      %2558 = vst [vmem:[%s197 + $0x4] sm:$0xf] %v2542
      %2559 = vst [vmem:[%s197 + $0x8] sm:$0xf] %v2543
      %2560 = vst [vmem:[%s197 + $0xc] sm:$0xf] %v2544
      %2561 = vst [vmem:[%s197 + $0x10] sm:$0xf] %v2545
      %2562 = vst [vmem:[%s197 + $0x14] sm:$0xf] %v2546
      %2563 = vst [vmem:[%s197 + $0x18] sm:$0xf] %v2547
      %2564 = vst [vmem:[%s197 + $0x1c] sm:$0xf] %v2548
      %2565 = vst [vmem:[%s197 + $0x20] sm:$0xf] %v2549
      %2566 = vst [vmem:[%s197 + $0x24] sm:$0xf] %v2550
      %2567 = vst [vmem:[%s197 + $0x28] sm:$0xf] %v2551
      %2568 = vst [vmem:[%s197 + $0x2c] sm:$0xf] %v2552
      %2569 = vst [vmem:[%s197 + $0x30] sm:$0xf] %v2553
      %2570 = vst [vmem:[%s197 + $0x34] sm:$0xf] %v2554
      %2571 = vst [vmem:[%s197 + $0x38] sm:$0xf] %v2555
      %2572 = vst [vmem:[%s197 + $0x3c] sm:$0xf] %v2556
      %s2573 = scalar_lea.vmem [#allocation2], 192
      %v2574 = vld [vmem:[%s2573] sm:$0xff]
      %v2575 = vld [vmem:[%s2573 + $0x8] sm:$0xf]
      %v2576 = vld [vmem:[%s2573 + $0xc] sm:$0xff]
      %v2577 = vld [vmem:[%s2573 + $0x14] sm:$0xf]
      %v2578 = vld [vmem:[%s2573 + $0x18] sm:$0xff]
      %v2579 = vld [vmem:[%s2573 + $0x20] sm:$0xf]
      %v2580 = vld [vmem:[%s2573 + $0x24] sm:$0xff]
      %v2581 = vld [vmem:[%s2573 + $0x2c] sm:$0xf]
      %v2582 = vld [vmem:[%s2573 + $0x30] sm:$0xff]
      %v2583 = vld [vmem:[%s2573 + $0x38] sm:$0xf]
      %v2584 = vld [vmem:[%s2573 + $0x3c] sm:$0xff]
      %v2585 = vld [vmem:[%s2573 + $0x44] sm:$0xf]
      %v2586 = vld [vmem:[%s2573 + $0x48] sm:$0xff]
      %v2587 = vld [vmem:[%s2573 + $0x50] sm:$0xf]
      %v2588 = vld [vmem:[%s2573 + $0x54] sm:$0xff]
      %v2589 = vld [vmem:[%s2573 + $0x5c] sm:$0xf]
      %v2590 = vld [vmem:[%s2573 + $0x60] sm:$0xff]
      %v2591 = vld [vmem:[%s2573 + $0x68] sm:$0xf]
      %v2592 = vld [vmem:[%s2573 + $0x6c] sm:$0xff]
      %v2593 = vld [vmem:[%s2573 + $0x74] sm:$0xf]
      %v2594 = vld [vmem:[%s2573 + $0x78] sm:$0xff]
      %v2595 = vld [vmem:[%s2573 + $0x80] sm:$0xf]
      %v2596 = vld [vmem:[%s2573 + $0x84] sm:$0xff]
      %v2597 = vld [vmem:[%s2573 + $0x8c] sm:$0xf]
      %v2598 = vld [vmem:[%s2573 + $0x90] sm:$0xff]
      %v2599 = vld [vmem:[%s2573 + $0x98] sm:$0xf]
      %v2600 = vld [vmem:[%s2573 + $0x9c] sm:$0xff]
      %v2601 = vld [vmem:[%s2573 + $0xa4] sm:$0xf]
      %v2602 = vld [vmem:[%s2573 + $0xa8] sm:$0xff]
      %v2603 = vld [vmem:[%s2573 + $0xb0] sm:$0xf]
      %v2604 = vld [vmem:[%s2573 + $0xb4] sm:$0xff]
      %v2605 = vld [vmem:[%s2573 + $0xbc] sm:$0xf]
      %v2606 = vld [vmem:[%s3] sm:$0xf]
      %v2607 = vld [vmem:[%s3 + $0x4] sm:$0xf]
      %v2608 = vld [vmem:[%s3 + $0x8] sm:$0xf]
      %v2609 = vld [vmem:[%s3 + $0xc] sm:$0xf]
      %v2610 = vld [vmem:[%s3 + $0x10] sm:$0xf]
      %v2611 = vld [vmem:[%s3 + $0x14] sm:$0xf]
      %v2612 = vld [vmem:[%s3 + $0x18] sm:$0xf]
      %v2613 = vld [vmem:[%s3 + $0x1c] sm:$0xf]
      %v2614 = vld [vmem:[%s3 + $0x20] sm:$0xf]
      %v2615 = vld [vmem:[%s3 + $0x24] sm:$0xf]
      %v2616 = vld [vmem:[%s3 + $0x28] sm:$0xf]
      %v2617 = vld [vmem:[%s3 + $0x2c] sm:$0xf]
      %v2618 = vld [vmem:[%s3 + $0x30] sm:$0xf]
      %v2619 = vld [vmem:[%s3 + $0x34] sm:$0xf]
      %v2620 = vld [vmem:[%s3 + $0x38] sm:$0xf]
      %v2621 = vld [vmem:[%s3 + $0x3c] sm:$0xf]
      %v2622 = vld [vmem:[%s3 + $0x40] sm:$0xf]
      %v2623 = vld [vmem:[%s3 + $0x44] sm:$0xf]
      %v2624 = vld [vmem:[%s3 + $0x48] sm:$0xf]
      %v2625 = vld [vmem:[%s3 + $0x4c] sm:$0xf]
      %v2626 = vld [vmem:[%s3 + $0x50] sm:$0xf]
      %v2627 = vld [vmem:[%s3 + $0x54] sm:$0xf]
      %v2628 = vld [vmem:[%s3 + $0x58] sm:$0xf]
      %v2629 = vld [vmem:[%s3 + $0x5c] sm:$0xf]
      %v2630 = vld [vmem:[%s3 + $0x60] sm:$0xf]
      %v2631 = vld [vmem:[%s3 + $0x64] sm:$0xf]
      %v2632 = vld [vmem:[%s3 + $0x68] sm:$0xf]
      %v2633 = vld [vmem:[%s3 + $0x6c] sm:$0xf]
      %v2634 = vld [vmem:[%s3 + $0x70] sm:$0xf]
      %v2635 = vld [vmem:[%s3 + $0x74] sm:$0xf]
      %v2636 = vld [vmem:[%s3 + $0x78] sm:$0xf]
      %v2637 = vld [vmem:[%s3 + $0x7c] sm:$0xf]
      %v2638 = vld [vmem:[%s3 + $0x80] sm:$0xf]
      %v2639 = vld [vmem:[%s3 + $0x84] sm:$0xf]
      %v2640 = vld [vmem:[%s3 + $0x88] sm:$0xf]
      %v2641 = vld [vmem:[%s3 + $0x8c] sm:$0xf]
      %v2642 = vld [vmem:[%s3 + $0x90] sm:$0xf]
      %v2643 = vld [vmem:[%s3 + $0x94] sm:$0xf]
      %v2644 = vld [vmem:[%s3 + $0x98] sm:$0xf]
      %v2645 = vld [vmem:[%s3 + $0x9c] sm:$0xf]
      %v2646 = vld [vmem:[%s3 + $0xa0] sm:$0xf]
      %v2647 = vld [vmem:[%s3 + $0xa4] sm:$0xf]
      %v2648 = vld [vmem:[%s3 + $0xa8] sm:$0xf]
      %v2649 = vld [vmem:[%s3 + $0xac] sm:$0xf]
      %v2650 = vld [vmem:[%s3 + $0xb0] sm:$0xf]
      %v2651 = vld [vmem:[%s3 + $0xb4] sm:$0xf]
      %v2652 = vld [vmem:[%s3 + $0xb8] sm:$0xf]
      %v2653 = vld [vmem:[%s3 + $0xbc] sm:$0xf]
      %v2654 = vld [vmem:[%s888] sm:$0xff]
      %v2655 = vld [vmem:[%s888 + $0x8] sm:$0xf]
      %v2656 = vld [vmem:[%s888 + $0xc] sm:$0xff]
      %v2657 = vld [vmem:[%s888 + $0x14] sm:$0xf]
      %v2658 = vld [vmem:[%s888 + $0x18] sm:$0xff]
      %v2659 = vld [vmem:[%s888 + $0x20] sm:$0xf]
      %v2660 = vld [vmem:[%s888 + $0x24] sm:$0xff]
      %v2661 = vld [vmem:[%s888 + $0x2c] sm:$0xf]
      %v2662 = vld [vmem:[%s888 + $0x30] sm:$0xff]
      %v2663 = vld [vmem:[%s888 + $0x38] sm:$0xf]
      %v2664 = vld [vmem:[%s888 + $0x3c] sm:$0xff]
      %v2665 = vld [vmem:[%s888 + $0x44] sm:$0xf]
      %v2666 = vld [vmem:[%s888 + $0x48] sm:$0xff]
      %v2667 = vld [vmem:[%s888 + $0x50] sm:$0xf]
      %v2668 = vld [vmem:[%s888 + $0x54] sm:$0xff]
      %v2669 = vld [vmem:[%s888 + $0x5c] sm:$0xf]
      %v2670 = vld [vmem:[%s888 + $0x60] sm:$0xff]
      %v2671 = vld [vmem:[%s888 + $0x68] sm:$0xf]
      %v2672 = vld [vmem:[%s888 + $0x6c] sm:$0xff]
      %v2673 = vld [vmem:[%s888 + $0x74] sm:$0xf]
      %v2674 = vld [vmem:[%s888 + $0x78] sm:$0xff]
      %v2675 = vld [vmem:[%s888 + $0x80] sm:$0xf]
      %v2676 = vld [vmem:[%s888 + $0x84] sm:$0xff]
      %v2677 = vld [vmem:[%s888 + $0x8c] sm:$0xf]
      %v2678 = vld [vmem:[%s888 + $0x90] sm:$0xff]
      %v2679 = vld [vmem:[%s888 + $0x98] sm:$0xf]
      %v2680 = vld [vmem:[%s888 + $0x9c] sm:$0xff]
      %v2681 = vld [vmem:[%s888 + $0xa4] sm:$0xf]
      %v2682 = vld [vmem:[%s888 + $0xa8] sm:$0xff]
      %v2683 = vld [vmem:[%s888 + $0xb0] sm:$0xf]
      %v2684 = vld [vmem:[%s888 + $0xb4] sm:$0xff]
      %v2685 = vld [vmem:[%s888 + $0xbc] sm:$0xf]
      %v2686 = vld [vmem:[%s1137] sm:$0xf]
      %v2687 = vld [vmem:[%s1137 + $0x4] sm:$0xf]
      %v2688 = vld [vmem:[%s1137 + $0x8] sm:$0xf]
      %v2689 = vld [vmem:[%s1137 + $0xc] sm:$0xf]
      %v2690 = vld [vmem:[%s1137 + $0x10] sm:$0xf]
      %v2691 = vld [vmem:[%s1137 + $0x14] sm:$0xf]
      %v2692 = vld [vmem:[%s1137 + $0x18] sm:$0xf]
      %v2693 = vld [vmem:[%s1137 + $0x1c] sm:$0xf]
      %v2694 = vld [vmem:[%s1137 + $0x20] sm:$0xf]
      %v2695 = vld [vmem:[%s1137 + $0x24] sm:$0xf]
      %v2696 = vld [vmem:[%s1137 + $0x28] sm:$0xf]
      %v2697 = vld [vmem:[%s1137 + $0x2c] sm:$0xf]
      %v2698 = vld [vmem:[%s1137 + $0x30] sm:$0xf]
      %v2699 = vld [vmem:[%s1137 + $0x34] sm:$0xf]
      %v2700 = vld [vmem:[%s1137 + $0x38] sm:$0xf]
      %v2701 = vld [vmem:[%s1137 + $0x3c] sm:$0xf]
      %v2702 = vld [vmem:[%s1137 + $0x40] sm:$0xf]
      %v2703 = vld [vmem:[%s1137 + $0x44] sm:$0xf]
      %v2704 = vld [vmem:[%s1137 + $0x48] sm:$0xf]
      %v2705 = vld [vmem:[%s1137 + $0x4c] sm:$0xf]
      %v2706 = vld [vmem:[%s1137 + $0x50] sm:$0xf]
      %v2707 = vld [vmem:[%s1137 + $0x54] sm:$0xf]
      %v2708 = vld [vmem:[%s1137 + $0x58] sm:$0xf]
      %v2709 = vld [vmem:[%s1137 + $0x5c] sm:$0xf]
      %v2710 = vld [vmem:[%s1137 + $0x60] sm:$0xf]
      %v2711 = vld [vmem:[%s1137 + $0x64] sm:$0xf]
      %v2712 = vld [vmem:[%s1137 + $0x68] sm:$0xf]
      %v2713 = vld [vmem:[%s1137 + $0x6c] sm:$0xf]
      %v2714 = vld [vmem:[%s1137 + $0x70] sm:$0xf]
      %v2715 = vld [vmem:[%s1137 + $0x74] sm:$0xf]
      %v2716 = vld [vmem:[%s1137 + $0x78] sm:$0xf]
      %v2717 = vld [vmem:[%s1137 + $0x7c] sm:$0xf]
      %v2718 = vld [vmem:[%s1137 + $0x80] sm:$0xf]
      %v2719 = vld [vmem:[%s1137 + $0x84] sm:$0xf]
      %v2720 = vld [vmem:[%s1137 + $0x88] sm:$0xf]
      %v2721 = vld [vmem:[%s1137 + $0x8c] sm:$0xf]
      %v2722 = vld [vmem:[%s1137 + $0x90] sm:$0xf]
      %v2723 = vld [vmem:[%s1137 + $0x94] sm:$0xf]
      %v2724 = vld [vmem:[%s1137 + $0x98] sm:$0xf]
      %v2725 = vld [vmem:[%s1137 + $0x9c] sm:$0xf]
      %v2726 = vld [vmem:[%s1137 + $0xa0] sm:$0xf]
      %v2727 = vld [vmem:[%s1137 + $0xa4] sm:$0xf]
      %v2728 = vld [vmem:[%s1137 + $0xa8] sm:$0xf]
      %v2729 = vld [vmem:[%s1137 + $0xac] sm:$0xf]
      %v2730 = vld [vmem:[%s1137 + $0xb0] sm:$0xf]
      %v2731 = vld [vmem:[%s1137 + $0xb4] sm:$0xf]
      %v2732 = vld [vmem:[%s1137 + $0xb8] sm:$0xf]
      %v2733 = vld [vmem:[%s1137 + $0xbc] sm:$0xf]
      %v2766 = vunpack.c.l.b16 %v2654
      %v2767 = vunpack.c.h.b16 %v2654
      %v2768 = vunpack.c.l.b16 %v2655
      %v2769 = vunpack.c.l.b16 %v2656
      %v2770 = vunpack.c.h.b16 %v2656
      %v2771 = vunpack.c.l.b16 %v2657
      %v2772 = vunpack.c.l.b16 %v2658
      %v2773 = vunpack.c.h.b16 %v2658
      %v2774 = vunpack.c.l.b16 %v2659
      %v2775 = vunpack.c.l.b16 %v2660
      %v2776 = vunpack.c.h.b16 %v2660
      %v2777 = vunpack.c.l.b16 %v2661
      %v2778 = vunpack.c.l.b16 %v2662
      %v2779 = vunpack.c.h.b16 %v2662
      %v2780 = vunpack.c.l.b16 %v2663
      %v2781 = vunpack.c.l.b16 %v2664
      %v2782 = vunpack.c.h.b16 %v2664
      %v2783 = vunpack.c.l.b16 %v2665
      %v2784 = vunpack.c.l.b16 %v2666
      %v2785 = vunpack.c.h.b16 %v2666
      %v2786 = vunpack.c.l.b16 %v2667
      %v2787 = vunpack.c.l.b16 %v2668
      %v2788 = vunpack.c.h.b16 %v2668
      %v2789 = vunpack.c.l.b16 %v2669
      %v2790 = vunpack.c.l.b16 %v2670
      %v2791 = vunpack.c.h.b16 %v2670
      %v2792 = vunpack.c.l.b16 %v2671
      %v2793 = vunpack.c.l.b16 %v2672
      %v2794 = vunpack.c.h.b16 %v2672
      %v2795 = vunpack.c.l.b16 %v2673
      %v2796 = vunpack.c.l.b16 %v2674
      %v2797 = vunpack.c.h.b16 %v2674
      %v2798 = vunpack.c.l.b16 %v2675
      %v2799 = vunpack.c.l.b16 %v2676
      %v2800 = vunpack.c.h.b16 %v2676
      %v2801 = vunpack.c.l.b16 %v2677
      %v2802 = vunpack.c.l.b16 %v2678
      %v2803 = vunpack.c.h.b16 %v2678
      %v2804 = vunpack.c.l.b16 %v2679
      %v2805 = vunpack.c.l.b16 %v2680
      %v2806 = vunpack.c.h.b16 %v2680
      %v2807 = vunpack.c.l.b16 %v2681
      %v2808 = vunpack.c.l.b16 %v2682
      %v2809 = vunpack.c.h.b16 %v2682
      %v2810 = vunpack.c.l.b16 %v2683
      %v2811 = vunpack.c.l.b16 %v2684
      %v2812 = vunpack.c.h.b16 %v2684
      %v2813 = vunpack.c.l.b16 %v2685
      %v2814 = vpack.c.b16 %v2769, %v2766
      %v2815 = vpack.c.b16 %v2770, %v2767
      %v2816 = vpack.c.b16 %v2771, %v2768
      %v2817 = vpack.c.b16 %v2775, %v2772
      %v2818 = vpack.c.b16 %v2776, %v2773
      %v2819 = vpack.c.b16 %v2777, %v2774
      %v2820 = vpack.c.b16 %v2781, %v2778
      %v2821 = vpack.c.b16 %v2782, %v2779
      %v2822 = vpack.c.b16 %v2783, %v2780
      %v2823 = vpack.c.b16 %v2787, %v2784
      %v2824 = vpack.c.b16 %v2788, %v2785
      %v2825 = vpack.c.b16 %v2789, %v2786
      %v2826 = vpack.c.b16 %v2793, %v2790
      %v2827 = vpack.c.b16 %v2794, %v2791
      %v2828 = vpack.c.b16 %v2795, %v2792
      %v2829 = vpack.c.b16 %v2799, %v2796
      %v2830 = vpack.c.b16 %v2800, %v2797
      %v2831 = vpack.c.b16 %v2801, %v2798
      %v2832 = vpack.c.b16 %v2805, %v2802
      %v2833 = vpack.c.b16 %v2806, %v2803
      %v2834 = vpack.c.b16 %v2807, %v2804
      %v2835 = vpack.c.b16 %v2811, %v2808
      %v2836 = vpack.c.b16 %v2812, %v2809
      %v2837 = vpack.c.b16 %v2813, %v2810
      %v2910 = vunpack.c.l.b16 %v2686
      %v2911 = vunpack.c.l.b16 %v2687
      %v2912 = vunpack.c.l.b16 %v2688
      %v2913 = vunpack.c.l.b16 %v2689
      %v2914 = vunpack.c.l.b16 %v2690
      %v2915 = vunpack.c.l.b16 %v2691
      %v2916 = vunpack.c.l.b16 %v2692
      %v2917 = vunpack.c.l.b16 %v2693
      %v2918 = vunpack.c.l.b16 %v2694
      %v2919 = vunpack.c.l.b16 %v2695
      %v2920 = vunpack.c.l.b16 %v2696
      %v2921 = vunpack.c.l.b16 %v2697
      %v2922 = vunpack.c.l.b16 %v2698
      %v2923 = vunpack.c.l.b16 %v2699
      %v2924 = vunpack.c.l.b16 %v2700
      %v2925 = vunpack.c.l.b16 %v2701
      %v2926 = vunpack.c.l.b16 %v2702
      %v2927 = vunpack.c.l.b16 %v2703
      %v2928 = vunpack.c.l.b16 %v2704
      %v2929 = vunpack.c.l.b16 %v2705
      %v2930 = vunpack.c.l.b16 %v2706
      %v2931 = vunpack.c.l.b16 %v2707
      %v2932 = vunpack.c.l.b16 %v2708
      %v2933 = vunpack.c.l.b16 %v2709
      %v2934 = vunpack.c.l.b16 %v2710
      %v2935 = vunpack.c.l.b16 %v2711
      %v2936 = vunpack.c.l.b16 %v2712
      %v2937 = vunpack.c.l.b16 %v2713
      %v2938 = vunpack.c.l.b16 %v2714
      %v2939 = vunpack.c.l.b16 %v2715
      %v2940 = vunpack.c.l.b16 %v2716
      %v2941 = vunpack.c.l.b16 %v2717
      %v2942 = vunpack.c.l.b16 %v2718
      %v2943 = vunpack.c.l.b16 %v2719
      %v2944 = vunpack.c.l.b16 %v2720
      %v2945 = vunpack.c.l.b16 %v2721
      %v2946 = vunpack.c.l.b16 %v2722
      %v2947 = vunpack.c.l.b16 %v2723
      %v2948 = vunpack.c.l.b16 %v2724
      %v2949 = vunpack.c.l.b16 %v2725
      %v2950 = vunpack.c.l.b16 %v2726
      %v2951 = vunpack.c.l.b16 %v2727
      %v2952 = vunpack.c.l.b16 %v2728
      %v2953 = vunpack.c.l.b16 %v2729
      %v2954 = vunpack.c.l.b16 %v2730
      %v2955 = vunpack.c.l.b16 %v2731
      %v2956 = vunpack.c.l.b16 %v2732
      %v2957 = vunpack.c.l.b16 %v2733
      %v2958 = vpack.c.b16 %v2911, %v2910
      %v2959 = vpack.c.b16 %v2913, %v2912
      %v2960 = vpack.c.b16 %v2915, %v2914
      %v2961 = vpack.c.b16 %v2917, %v2916
      %v2962 = vpack.c.b16 %v2919, %v2918
      %v2963 = vpack.c.b16 %v2921, %v2920
      %v2964 = vpack.c.b16 %v2923, %v2922
      %v2965 = vpack.c.b16 %v2925, %v2924
      %v2966 = vpack.c.b16 %v2927, %v2926
      %v2967 = vpack.c.b16 %v2929, %v2928
      %v2968 = vpack.c.b16 %v2931, %v2930
      %v2969 = vpack.c.b16 %v2933, %v2932
      %v2970 = vpack.c.b16 %v2935, %v2934
      %v2971 = vpack.c.b16 %v2937, %v2936
      %v2972 = vpack.c.b16 %v2939, %v2938
      %v2973 = vpack.c.b16 %v2941, %v2940
      %v2974 = vpack.c.b16 %v2943, %v2942
      %v2975 = vpack.c.b16 %v2945, %v2944
      %v2976 = vpack.c.b16 %v2947, %v2946
      %v2977 = vpack.c.b16 %v2949, %v2948
      %v2978 = vpack.c.b16 %v2951, %v2950
      %v2979 = vpack.c.b16 %v2953, %v2952
      %v2980 = vpack.c.b16 %v2955, %v2954
      %v2981 = vpack.c.b16 %v2957, %v2956
      %3006 = vmatpush.bf16.msra.mxu0 %v2965
      %3007 = vmatpush.bf16.msra.mxu0 %v2964
      %3008 = vmatpush.bf16.msra.mxu0 %v2963
      %3009 = vmatpush.bf16.msra.mxu0 %v2962
      %3010 = vmatpush.bf16.msra.mxu0 %v2961
      %3011 = vmatpush.bf16.msra.mxu0 %v2960
      %3012 = vmatpush.bf16.msra.mxu0 %v2959
      %3013 = vmatpush.bf16.msra.mxu0 %v2958
      %3014 = vmatmul.bf16.gmra.mxu0 %v2814
      %v3015 = vpop.f32.mrf.mxu0
      %v3016 = vadd.f32 0.0, %v3015
      %v3017 = vpop.f32.mrf.mxu0
      %v3018 = vadd.f32 0.0, %v3017
      %3019 = vmatmul.bf16.gmra.mxu0 %v2817
      %v3020 = vpop.f32.mrf.mxu0
      %v3021 = vadd.f32 0.0, %v3020
      %v3022 = vpop.f32.mrf.mxu0
      %v3023 = vadd.f32 0.0, %v3022
      %3024 = vmatmul.bf16.gmra.mxu0 %v2820
      %v3025 = vpop.f32.mrf.mxu0
      %v3026 = vadd.f32 0.0, %v3025
      %v3027 = vpop.f32.mrf.mxu0
      %v3028 = vadd.f32 0.0, %v3027
      %3029 = vmatmul.bf16.gmra.mxu0 %v2823
      %v3030 = vpop.f32.mrf.mxu0
      %v3031 = vadd.f32 0.0, %v3030
      %v3032 = vpop.f32.mrf.mxu0
      %v3033 = vadd.f32 0.0, %v3032
      %3034 = vmatmul.bf16.gmra.mxu0 %v2826
      %v3035 = vpop.f32.mrf.mxu0
      %v3036 = vadd.f32 0.0, %v3035
      %v3037 = vpop.f32.mrf.mxu0
      %v3038 = vadd.f32 0.0, %v3037
      %3039 = vmatmul.bf16.gmra.mxu0 %v2829
      %v3040 = vpop.f32.mrf.mxu0
      %v3041 = vadd.f32 0.0, %v3040
      %v3042 = vpop.f32.mrf.mxu0
      %v3043 = vadd.f32 0.0, %v3042
      %3044 = vmatmul.bf16.gmra.mxu0 %v2832
      %v3045 = vpop.f32.mrf.mxu0
      %v3046 = vadd.f32 0.0, %v3045
      %v3047 = vpop.f32.mrf.mxu0
      %v3048 = vadd.f32 0.0, %v3047
      %3049 = vmatmul.bf16.gmra.mxu0 %v2835
      %v3050 = vpop.f32.mrf.mxu0
      %v3051 = vadd.f32 0.0, %v3050
      %v3052 = vpop.f32.mrf.mxu0
      %v3053 = vadd.f32 0.0, %v3052
      %3054 = vdwg.mxu0
      %3055 = vmatpush.bf16.msra.mxu0 %v2973
      %3056 = vmatpush.bf16.msra.mxu0 %v2972
      %3057 = vmatpush.bf16.msra.mxu0 %v2971
      %3058 = vmatpush.bf16.msra.mxu0 %v2970
      %3059 = vmatpush.bf16.msra.mxu0 %v2969
      %3060 = vmatpush.bf16.msra.mxu0 %v2968
      %3061 = vmatpush.bf16.msra.mxu0 %v2967
      %3062 = vmatpush.bf16.msra.mxu0 %v2966
      %3063 = vmatmul.bf16.gmra.mxu0 %v2815
      %v3064 = vpop.f32.mrf.mxu0
      %v3065 = vadd.f32 %v3016, %v3064
      %v3066 = vpop.f32.mrf.mxu0
      %v3067 = vadd.f32 %v3018, %v3066
      %3068 = vmatmul.bf16.gmra.mxu0 %v2818
      %v3069 = vpop.f32.mrf.mxu0
      %v3070 = vadd.f32 %v3021, %v3069
      %v3071 = vpop.f32.mrf.mxu0
      %v3072 = vadd.f32 %v3023, %v3071
      %3073 = vmatmul.bf16.gmra.mxu0 %v2821
      %v3074 = vpop.f32.mrf.mxu0
      %v3075 = vadd.f32 %v3026, %v3074
      %v3076 = vpop.f32.mrf.mxu0
      %v3077 = vadd.f32 %v3028, %v3076
      %3078 = vmatmul.bf16.gmra.mxu0 %v2824
      %v3079 = vpop.f32.mrf.mxu0
      %v3080 = vadd.f32 %v3031, %v3079
      %v3081 = vpop.f32.mrf.mxu0
      %v3082 = vadd.f32 %v3033, %v3081
      %3083 = vmatmul.bf16.gmra.mxu0 %v2827
      %v3084 = vpop.f32.mrf.mxu0
      %v3085 = vadd.f32 %v3036, %v3084
      %v3086 = vpop.f32.mrf.mxu0
      %v3087 = vadd.f32 %v3038, %v3086
      %3088 = vmatmul.bf16.gmra.mxu0 %v2830
      %v3089 = vpop.f32.mrf.mxu0
      %v3090 = vadd.f32 %v3041, %v3089
      %v3091 = vpop.f32.mrf.mxu0
      %v3092 = vadd.f32 %v3043, %v3091
      %3093 = vmatmul.bf16.gmra.mxu0 %v2833
      %v3094 = vpop.f32.mrf.mxu0
      %v3095 = vadd.f32 %v3046, %v3094
      %v3096 = vpop.f32.mrf.mxu0
      %v3097 = vadd.f32 %v3048, %v3096
      %3098 = vmatmul.bf16.gmra.mxu0 %v2836
      %v3099 = vpop.f32.mrf.mxu0
      %v3100 = vadd.f32 %v3051, %v3099
      %v3101 = vpop.f32.mrf.mxu0
      %v3102 = vadd.f32 %v3053, %v3101
      %3103 = vdwg.mxu0
      %3104 = vmatpush.bf16.msra.mxu0 %v2981
      %3105 = vmatpush.bf16.msra.mxu0 %v2980
      %3106 = vmatpush.bf16.msra.mxu0 %v2979
      %3107 = vmatpush.bf16.msra.mxu0 %v2978
      %3108 = vmatpush.bf16.msra.mxu0 %v2977
      %3109 = vmatpush.bf16.msra.mxu0 %v2976
      %3110 = vmatpush.bf16.msra.mxu0 %v2975
      %3111 = vmatpush.bf16.msra.mxu0 %v2974
      %3112 = vmatmul.bf16.gmra.mxu0 %v2816
      %v3113 = vpop.f32.mrf.mxu0
      %v3114 = vadd.f32 %v3065, %v3113
      %v3115 = vpop.f32.mrf.mxu0
      %v3116 = vadd.f32 %v3067, %v3115
      %3117 = vmatmul.bf16.gmra.mxu0 %v2819
      %v3118 = vpop.f32.mrf.mxu0
      %v3119 = vadd.f32 %v3070, %v3118
      %v3120 = vpop.f32.mrf.mxu0
      %v3121 = vadd.f32 %v3072, %v3120
      %3122 = vmatmul.bf16.gmra.mxu0 %v2822
      %v3123 = vpop.f32.mrf.mxu0
      %v3124 = vadd.f32 %v3075, %v3123
      %v3125 = vpop.f32.mrf.mxu0
      %v3126 = vadd.f32 %v3077, %v3125
      %3127 = vmatmul.bf16.gmra.mxu0 %v2825
      %v3128 = vpop.f32.mrf.mxu0
      %v3129 = vadd.f32 %v3080, %v3128
      %v3130 = vpop.f32.mrf.mxu0
      %v3131 = vadd.f32 %v3082, %v3130
      %3132 = vmatmul.bf16.gmra.mxu0 %v2828
      %v3133 = vpop.f32.mrf.mxu0
      %v3134 = vadd.f32 %v3085, %v3133
      %v3135 = vpop.f32.mrf.mxu0
      %v3136 = vadd.f32 %v3087, %v3135
      %3137 = vmatmul.bf16.gmra.mxu0 %v2831
      %v3138 = vpop.f32.mrf.mxu0
      %v3139 = vadd.f32 %v3090, %v3138
      %v3140 = vpop.f32.mrf.mxu0
      %v3141 = vadd.f32 %v3092, %v3140
      %3142 = vmatmul.bf16.gmra.mxu0 %v2834
      %v3143 = vpop.f32.mrf.mxu0
      %v3144 = vadd.f32 %v3095, %v3143
      %v3145 = vpop.f32.mrf.mxu0
      %v3146 = vadd.f32 %v3097, %v3145
      %3147 = vmatmul.bf16.gmra.mxu0 %v2837
      %v3148 = vpop.f32.mrf.mxu0
      %v3149 = vadd.f32 %v3100, %v3148
      %v3150 = vpop.f32.mrf.mxu0
      %v3151 = vadd.f32 %v3102, %v3150
      %3152 = vdwg.mxu0
      %v3185 = vunpack.c.l.b16 %v2574
      %v3186 = vunpack.c.h.b16 %v2574
      %v3187 = vunpack.c.l.b16 %v2575
      %v3188 = vunpack.c.l.b16 %v2576
      %v3189 = vunpack.c.h.b16 %v2576
      %v3190 = vunpack.c.l.b16 %v2577
      %v3191 = vunpack.c.l.b16 %v2578
      %v3192 = vunpack.c.h.b16 %v2578
      %v3193 = vunpack.c.l.b16 %v2579
      %v3194 = vunpack.c.l.b16 %v2580
      %v3195 = vunpack.c.h.b16 %v2580
      %v3196 = vunpack.c.l.b16 %v2581
      %v3197 = vunpack.c.l.b16 %v2582
      %v3198 = vunpack.c.h.b16 %v2582
      %v3199 = vunpack.c.l.b16 %v2583
      %v3200 = vunpack.c.l.b16 %v2584
      %v3201 = vunpack.c.h.b16 %v2584
      %v3202 = vunpack.c.l.b16 %v2585
      %v3203 = vunpack.c.l.b16 %v2586
      %v3204 = vunpack.c.h.b16 %v2586
      %v3205 = vunpack.c.l.b16 %v2587
      %v3206 = vunpack.c.l.b16 %v2588
      %v3207 = vunpack.c.h.b16 %v2588
      %v3208 = vunpack.c.l.b16 %v2589
      %v3209 = vunpack.c.l.b16 %v2590
      %v3210 = vunpack.c.h.b16 %v2590
      %v3211 = vunpack.c.l.b16 %v2591
      %v3212 = vunpack.c.l.b16 %v2592
      %v3213 = vunpack.c.h.b16 %v2592
      %v3214 = vunpack.c.l.b16 %v2593
      %v3215 = vunpack.c.l.b16 %v2594
      %v3216 = vunpack.c.h.b16 %v2594
      %v3217 = vunpack.c.l.b16 %v2595
      %v3218 = vunpack.c.l.b16 %v2596
      %v3219 = vunpack.c.h.b16 %v2596
      %v3220 = vunpack.c.l.b16 %v2597
      %v3221 = vunpack.c.l.b16 %v2598
      %v3222 = vunpack.c.h.b16 %v2598
      %v3223 = vunpack.c.l.b16 %v2599
      %v3224 = vunpack.c.l.b16 %v2600
      %v3225 = vunpack.c.h.b16 %v2600
      %v3226 = vunpack.c.l.b16 %v2601
      %v3227 = vunpack.c.l.b16 %v2602
      %v3228 = vunpack.c.h.b16 %v2602
      %v3229 = vunpack.c.l.b16 %v2603
      %v3230 = vunpack.c.l.b16 %v2604
      %v3231 = vunpack.c.h.b16 %v2604
      %v3232 = vunpack.c.l.b16 %v2605
      %v3233 = vpack.c.b16 %v3188, %v3185
      %v3234 = vpack.c.b16 %v3189, %v3186
      %v3235 = vpack.c.b16 %v3190, %v3187
      %v3236 = vpack.c.b16 %v3194, %v3191
      %v3237 = vpack.c.b16 %v3195, %v3192
      %v3238 = vpack.c.b16 %v3196, %v3193
      %v3239 = vpack.c.b16 %v3200, %v3197
      %v3240 = vpack.c.b16 %v3201, %v3198
      %v3241 = vpack.c.b16 %v3202, %v3199
      %v3242 = vpack.c.b16 %v3206, %v3203
      %v3243 = vpack.c.b16 %v3207, %v3204
      %v3244 = vpack.c.b16 %v3208, %v3205
      %v3245 = vpack.c.b16 %v3212, %v3209
      %v3246 = vpack.c.b16 %v3213, %v3210
      %v3247 = vpack.c.b16 %v3214, %v3211
      %v3248 = vpack.c.b16 %v3218, %v3215
      %v3249 = vpack.c.b16 %v3219, %v3216
      %v3250 = vpack.c.b16 %v3220, %v3217
      %v3251 = vpack.c.b16 %v3224, %v3221
      %v3252 = vpack.c.b16 %v3225, %v3222
      %v3253 = vpack.c.b16 %v3226, %v3223
      %v3254 = vpack.c.b16 %v3230, %v3227
      %v3255 = vpack.c.b16 %v3231, %v3228
      %v3256 = vpack.c.b16 %v3232, %v3229
      %v3329 = vunpack.c.l.b16 %v2606
      %v3330 = vunpack.c.l.b16 %v2607
      %v3331 = vunpack.c.l.b16 %v2608
      %v3332 = vunpack.c.l.b16 %v2609
      %v3333 = vunpack.c.l.b16 %v2610
      %v3334 = vunpack.c.l.b16 %v2611
      %v3335 = vunpack.c.l.b16 %v2612
      %v3336 = vunpack.c.l.b16 %v2613
      %v3337 = vunpack.c.l.b16 %v2614
      %v3338 = vunpack.c.l.b16 %v2615
      %v3339 = vunpack.c.l.b16 %v2616
      %v3340 = vunpack.c.l.b16 %v2617
      %v3341 = vunpack.c.l.b16 %v2618
      %v3342 = vunpack.c.l.b16 %v2619
      %v3343 = vunpack.c.l.b16 %v2620
      %v3344 = vunpack.c.l.b16 %v2621
      %v3345 = vunpack.c.l.b16 %v2622
      %v3346 = vunpack.c.l.b16 %v2623
      %v3347 = vunpack.c.l.b16 %v2624
      %v3348 = vunpack.c.l.b16 %v2625
      %v3349 = vunpack.c.l.b16 %v2626
      %v3350 = vunpack.c.l.b16 %v2627
      %v3351 = vunpack.c.l.b16 %v2628
      %v3352 = vunpack.c.l.b16 %v2629
      %v3353 = vunpack.c.l.b16 %v2630
      %v3354 = vunpack.c.l.b16 %v2631
      %v3355 = vunpack.c.l.b16 %v2632
      %v3356 = vunpack.c.l.b16 %v2633
      %v3357 = vunpack.c.l.b16 %v2634
      %v3358 = vunpack.c.l.b16 %v2635
      %v3359 = vunpack.c.l.b16 %v2636
      %v3360 = vunpack.c.l.b16 %v2637
      %v3361 = vunpack.c.l.b16 %v2638
      %v3362 = vunpack.c.l.b16 %v2639
      %v3363 = vunpack.c.l.b16 %v2640
      %v3364 = vunpack.c.l.b16 %v2641
      %v3365 = vunpack.c.l.b16 %v2642
      %v3366 = vunpack.c.l.b16 %v2643
      %v3367 = vunpack.c.l.b16 %v2644
      %v3368 = vunpack.c.l.b16 %v2645
      %v3369 = vunpack.c.l.b16 %v2646
      %v3370 = vunpack.c.l.b16 %v2647
      %v3371 = vunpack.c.l.b16 %v2648
      %v3372 = vunpack.c.l.b16 %v2649
      %v3373 = vunpack.c.l.b16 %v2650
      %v3374 = vunpack.c.l.b16 %v2651
      %v3375 = vunpack.c.l.b16 %v2652
      %v3376 = vunpack.c.l.b16 %v2653
      %v3377 = vpack.c.b16 %v3330, %v3329
      %v3378 = vpack.c.b16 %v3332, %v3331
      %v3379 = vpack.c.b16 %v3334, %v3333
      %v3380 = vpack.c.b16 %v3336, %v3335
      %v3381 = vpack.c.b16 %v3338, %v3337
      %v3382 = vpack.c.b16 %v3340, %v3339
      %v3383 = vpack.c.b16 %v3342, %v3341
      %v3384 = vpack.c.b16 %v3344, %v3343
      %v3385 = vpack.c.b16 %v3346, %v3345
      %v3386 = vpack.c.b16 %v3348, %v3347
      %v3387 = vpack.c.b16 %v3350, %v3349
      %v3388 = vpack.c.b16 %v3352, %v3351
      %v3389 = vpack.c.b16 %v3354, %v3353
      %v3390 = vpack.c.b16 %v3356, %v3355
      %v3391 = vpack.c.b16 %v3358, %v3357
      %v3392 = vpack.c.b16 %v3360, %v3359
      %v3393 = vpack.c.b16 %v3362, %v3361
      %v3394 = vpack.c.b16 %v3364, %v3363
      %v3395 = vpack.c.b16 %v3366, %v3365
      %v3396 = vpack.c.b16 %v3368, %v3367
      %v3397 = vpack.c.b16 %v3370, %v3369
      %v3398 = vpack.c.b16 %v3372, %v3371
      %v3399 = vpack.c.b16 %v3374, %v3373
      %v3400 = vpack.c.b16 %v3376, %v3375
      %3425 = vmatpush.bf16.msra.mxu0 %v3384
      %3426 = vmatpush.bf16.msra.mxu0 %v3383
      %3427 = vmatpush.bf16.msra.mxu0 %v3382
      %3428 = vmatpush.bf16.msra.mxu0 %v3381
      %3429 = vmatpush.bf16.msra.mxu0 %v3380
      %3430 = vmatpush.bf16.msra.mxu0 %v3379
      %3431 = vmatpush.bf16.msra.mxu0 %v3378
      %3432 = vmatpush.bf16.msra.mxu0 %v3377
      %3433 = vmatmul.bf16.gmra.mxu0 %v3233
      %v3434 = vpop.f32.mrf.mxu0
      %v3435 = vadd.f32 %v3114, %v3434
      %v3436 = vpop.f32.mrf.mxu0
      %v3437 = vadd.f32 %v3116, %v3436
      %3438 = vmatmul.bf16.gmra.mxu0 %v3236
      %v3439 = vpop.f32.mrf.mxu0
      %v3440 = vadd.f32 %v3119, %v3439
      %v3441 = vpop.f32.mrf.mxu0
      %v3442 = vadd.f32 %v3121, %v3441
      %3443 = vmatmul.bf16.gmra.mxu0 %v3239
      %v3444 = vpop.f32.mrf.mxu0
      %v3445 = vadd.f32 %v3124, %v3444
      %v3446 = vpop.f32.mrf.mxu0
      %v3447 = vadd.f32 %v3126, %v3446
      %3448 = vmatmul.bf16.gmra.mxu0 %v3242
      %v3449 = vpop.f32.mrf.mxu0
      %v3450 = vadd.f32 %v3129, %v3449
      %v3451 = vpop.f32.mrf.mxu0
      %v3452 = vadd.f32 %v3131, %v3451
      %3453 = vmatmul.bf16.gmra.mxu0 %v3245
      %v3454 = vpop.f32.mrf.mxu0
      %v3455 = vadd.f32 %v3134, %v3454
      %v3456 = vpop.f32.mrf.mxu0
      %v3457 = vadd.f32 %v3136, %v3456
      %3458 = vmatmul.bf16.gmra.mxu0 %v3248
      %v3459 = vpop.f32.mrf.mxu0
      %v3460 = vadd.f32 %v3139, %v3459
      %v3461 = vpop.f32.mrf.mxu0
      %v3462 = vadd.f32 %v3141, %v3461
      %3463 = vmatmul.bf16.gmra.mxu0 %v3251
      %v3464 = vpop.f32.mrf.mxu0
      %v3465 = vadd.f32 %v3144, %v3464
      %v3466 = vpop.f32.mrf.mxu0
      %v3467 = vadd.f32 %v3146, %v3466
      %3468 = vmatmul.bf16.gmra.mxu0 %v3254
      %v3469 = vpop.f32.mrf.mxu0
      %v3470 = vadd.f32 %v3149, %v3469
      %v3471 = vpop.f32.mrf.mxu0
      %v3472 = vadd.f32 %v3151, %v3471
      %3473 = vdwg.mxu0
      %3474 = vmatpush.bf16.msra.mxu0 %v3392
      %3475 = vmatpush.bf16.msra.mxu0 %v3391
      %3476 = vmatpush.bf16.msra.mxu0 %v3390
      %3477 = vmatpush.bf16.msra.mxu0 %v3389
      %3478 = vmatpush.bf16.msra.mxu0 %v3388
      %3479 = vmatpush.bf16.msra.mxu0 %v3387
      %3480 = vmatpush.bf16.msra.mxu0 %v3386
      %3481 = vmatpush.bf16.msra.mxu0 %v3385
      %3482 = vmatmul.bf16.gmra.mxu0 %v3234
      %v3483 = vpop.f32.mrf.mxu0
      %v3484 = vadd.f32 %v3435, %v3483
      %v3485 = vpop.f32.mrf.mxu0
      %v3486 = vadd.f32 %v3437, %v3485
      %3487 = vmatmul.bf16.gmra.mxu0 %v3237
      %v3488 = vpop.f32.mrf.mxu0
      %v3489 = vadd.f32 %v3440, %v3488
      %v3490 = vpop.f32.mrf.mxu0
      %v3491 = vadd.f32 %v3442, %v3490
      %3492 = vmatmul.bf16.gmra.mxu0 %v3240
      %v3493 = vpop.f32.mrf.mxu0
      %v3494 = vadd.f32 %v3445, %v3493
      %v3495 = vpop.f32.mrf.mxu0
      %v3496 = vadd.f32 %v3447, %v3495
      %3497 = vmatmul.bf16.gmra.mxu0 %v3243
      %v3498 = vpop.f32.mrf.mxu0
      %v3499 = vadd.f32 %v3450, %v3498
      %v3500 = vpop.f32.mrf.mxu0
      %v3501 = vadd.f32 %v3452, %v3500
      %3502 = vmatmul.bf16.gmra.mxu0 %v3246
      %v3503 = vpop.f32.mrf.mxu0
      %v3504 = vadd.f32 %v3455, %v3503
      %v3505 = vpop.f32.mrf.mxu0
      %v3506 = vadd.f32 %v3457, %v3505
      %3507 = vmatmul.bf16.gmra.mxu0 %v3249
      %v3508 = vpop.f32.mrf.mxu0
      %v3509 = vadd.f32 %v3460, %v3508
      %v3510 = vpop.f32.mrf.mxu0
      %v3511 = vadd.f32 %v3462, %v3510
      %3512 = vmatmul.bf16.gmra.mxu0 %v3252
      %v3513 = vpop.f32.mrf.mxu0
      %v3514 = vadd.f32 %v3465, %v3513
      %v3515 = vpop.f32.mrf.mxu0
      %v3516 = vadd.f32 %v3467, %v3515
      %3517 = vmatmul.bf16.gmra.mxu0 %v3255
      %v3518 = vpop.f32.mrf.mxu0
      %v3519 = vadd.f32 %v3470, %v3518
      %v3520 = vpop.f32.mrf.mxu0
      %v3521 = vadd.f32 %v3472, %v3520
      %3522 = vdwg.mxu0
      %3523 = vmatpush.bf16.msra.mxu0 %v3400
      %3524 = vmatpush.bf16.msra.mxu0 %v3399
      %3525 = vmatpush.bf16.msra.mxu0 %v3398
      %3526 = vmatpush.bf16.msra.mxu0 %v3397
      %3527 = vmatpush.bf16.msra.mxu0 %v3396
      %3528 = vmatpush.bf16.msra.mxu0 %v3395
      %3529 = vmatpush.bf16.msra.mxu0 %v3394
      %3530 = vmatpush.bf16.msra.mxu0 %v3393
      %3531 = vmatmul.bf16.gmra.mxu0 %v3235
      %v3532 = vpop.f32.mrf.mxu0
      %v3533 = vadd.f32 %v3484, %v3532
      %v3534 = vpop.f32.mrf.mxu0
      %v3535 = vadd.f32 %v3486, %v3534
      %3536 = vmatmul.bf16.gmra.mxu0 %v3238
      %v3537 = vpop.f32.mrf.mxu0
      %v3538 = vadd.f32 %v3489, %v3537
      %v3539 = vpop.f32.mrf.mxu0
      %v3540 = vadd.f32 %v3491, %v3539
      %3541 = vmatmul.bf16.gmra.mxu0 %v3241
      %v3542 = vpop.f32.mrf.mxu0
      %v3543 = vadd.f32 %v3494, %v3542
      %v3544 = vpop.f32.mrf.mxu0
      %v3545 = vadd.f32 %v3496, %v3544
      %3546 = vmatmul.bf16.gmra.mxu0 %v3244
      %v3547 = vpop.f32.mrf.mxu0
      %v3548 = vadd.f32 %v3499, %v3547
      %v3549 = vpop.f32.mrf.mxu0
      %v3550 = vadd.f32 %v3501, %v3549
      %3551 = vmatmul.bf16.gmra.mxu0 %v3247
      %v3552 = vpop.f32.mrf.mxu0
      %v3553 = vadd.f32 %v3504, %v3552
      %v3554 = vpop.f32.mrf.mxu0
      %v3555 = vadd.f32 %v3506, %v3554
      %3556 = vmatmul.bf16.gmra.mxu0 %v3250
      %v3557 = vpop.f32.mrf.mxu0
      %v3558 = vadd.f32 %v3509, %v3557
      %v3559 = vpop.f32.mrf.mxu0
      %v3560 = vadd.f32 %v3511, %v3559
      %3561 = vmatmul.bf16.gmra.mxu0 %v3253
      %v3562 = vpop.f32.mrf.mxu0
      %v3563 = vadd.f32 %v3514, %v3562
      %v3564 = vpop.f32.mrf.mxu0
      %v3565 = vadd.f32 %v3516, %v3564
      %3566 = vmatmul.bf16.gmra.mxu0 %v3256
      %v3567 = vpop.f32.mrf.mxu0
      %v3568 = vadd.f32 %v3519, %v3567
      %v3569 = vpop.f32.mrf.mxu0
      %v3570 = vadd.f32 %v3521, %v3569
      %3571 = vdwg.mxu0
      %s3572 = scalar_lea.vmem [#allocation2], 240
      %v3573 = vld [vmem:[%s3572] sm:$0xff]
      %v3574 = vld [vmem:[%s3572 + $0x8] sm:$0xf]
      %v3575 = vld [vmem:[%s3572 + $0xc] sm:$0xff]
      %v3576 = vld [vmem:[%s3572 + $0x14] sm:$0xf]
      %v3577 = vld [vmem:[%s3572 + $0x18] sm:$0xff]
      %v3578 = vld [vmem:[%s3572 + $0x20] sm:$0xf]
      %v3579 = vld [vmem:[%s3572 + $0x24] sm:$0xff]
      %v3580 = vld [vmem:[%s3572 + $0x2c] sm:$0xf]
      %v3581 = vld [vmem:[%s3572 + $0x30] sm:$0xff]
      %v3582 = vld [vmem:[%s3572 + $0x38] sm:$0xf]
      %v3583 = vld [vmem:[%s3572 + $0x3c] sm:$0xff]
      %v3584 = vld [vmem:[%s3572 + $0x44] sm:$0xf]
      %v3585 = vld [vmem:[%s3572 + $0x48] sm:$0xff]
      %v3586 = vld [vmem:[%s3572 + $0x50] sm:$0xf]
      %v3587 = vld [vmem:[%s3572 + $0x54] sm:$0xff]
      %v3588 = vld [vmem:[%s3572 + $0x5c] sm:$0xf]
      %v3589 = vld [vmem:[%s3572 + $0x60] sm:$0xff]
      %v3590 = vld [vmem:[%s3572 + $0x68] sm:$0xf]
      %v3591 = vld [vmem:[%s3572 + $0x6c] sm:$0xff]
      %v3592 = vld [vmem:[%s3572 + $0x74] sm:$0xf]
      %v3593 = vld [vmem:[%s3572 + $0x78] sm:$0xff]
      %v3594 = vld [vmem:[%s3572 + $0x80] sm:$0xf]
      %v3595 = vld [vmem:[%s3572 + $0x84] sm:$0xff]
      %v3596 = vld [vmem:[%s3572 + $0x8c] sm:$0xf]
      %v3597 = vld [vmem:[%s3572 + $0x90] sm:$0xff]
      %v3598 = vld [vmem:[%s3572 + $0x98] sm:$0xf]
      %v3599 = vld [vmem:[%s3572 + $0x9c] sm:$0xff]
      %v3600 = vld [vmem:[%s3572 + $0xa4] sm:$0xf]
      %v3601 = vld [vmem:[%s3572 + $0xa8] sm:$0xff]
      %v3602 = vld [vmem:[%s3572 + $0xb0] sm:$0xf]
      %v3603 = vld [vmem:[%s3572 + $0xb4] sm:$0xff]
      %v3604 = vld [vmem:[%s3572 + $0xbc] sm:$0xf]
      %v3605 = vld [vmem:[%s2057] sm:$0xf]
      %v3606 = vld [vmem:[%s2057 + $0x4] sm:$0xf]
      %v3607 = vld [vmem:[%s2057 + $0x8] sm:$0xf]
      %v3608 = vld [vmem:[%s2057 + $0xc] sm:$0xf]
      %v3609 = vld [vmem:[%s2057 + $0x10] sm:$0xf]
      %v3610 = vld [vmem:[%s2057 + $0x14] sm:$0xf]
      %v3611 = vld [vmem:[%s2057 + $0x18] sm:$0xf]
      %v3612 = vld [vmem:[%s2057 + $0x1c] sm:$0xf]
      %v3613 = vld [vmem:[%s2057 + $0x20] sm:$0xf]
      %v3614 = vld [vmem:[%s2057 + $0x24] sm:$0xf]
      %v3615 = vld [vmem:[%s2057 + $0x28] sm:$0xf]
      %v3616 = vld [vmem:[%s2057 + $0x2c] sm:$0xf]
      %v3617 = vld [vmem:[%s2057 + $0x30] sm:$0xf]
      %v3618 = vld [vmem:[%s2057 + $0x34] sm:$0xf]
      %v3619 = vld [vmem:[%s2057 + $0x38] sm:$0xf]
      %v3620 = vld [vmem:[%s2057 + $0x3c] sm:$0xf]
      %v3621 = vld [vmem:[%s2057 + $0x40] sm:$0xf]
      %v3622 = vld [vmem:[%s2057 + $0x44] sm:$0xf]
      %v3623 = vld [vmem:[%s2057 + $0x48] sm:$0xf]
      %v3624 = vld [vmem:[%s2057 + $0x4c] sm:$0xf]
      %v3625 = vld [vmem:[%s2057 + $0x50] sm:$0xf]
      %v3626 = vld [vmem:[%s2057 + $0x54] sm:$0xf]
      %v3627 = vld [vmem:[%s2057 + $0x58] sm:$0xf]
      %v3628 = vld [vmem:[%s2057 + $0x5c] sm:$0xf]
      %v3629 = vld [vmem:[%s2057 + $0x60] sm:$0xf]
      %v3630 = vld [vmem:[%s2057 + $0x64] sm:$0xf]
      %v3631 = vld [vmem:[%s2057 + $0x68] sm:$0xf]
      %v3632 = vld [vmem:[%s2057 + $0x6c] sm:$0xf]
      %v3633 = vld [vmem:[%s2057 + $0x70] sm:$0xf]
      %v3634 = vld [vmem:[%s2057 + $0x74] sm:$0xf]
      %v3635 = vld [vmem:[%s2057 + $0x78] sm:$0xf]
      %v3636 = vld [vmem:[%s2057 + $0x7c] sm:$0xf]
      %v3637 = vld [vmem:[%s2057 + $0x80] sm:$0xf]
      %v3638 = vld [vmem:[%s2057 + $0x84] sm:$0xf]
      %v3639 = vld [vmem:[%s2057 + $0x88] sm:$0xf]
      %v3640 = vld [vmem:[%s2057 + $0x8c] sm:$0xf]
      %v3641 = vld [vmem:[%s2057 + $0x90] sm:$0xf]
      %v3642 = vld [vmem:[%s2057 + $0x94] sm:$0xf]
      %v3643 = vld [vmem:[%s2057 + $0x98] sm:$0xf]
      %v3644 = vld [vmem:[%s2057 + $0x9c] sm:$0xf]
      %v3645 = vld [vmem:[%s2057 + $0xa0] sm:$0xf]
      %v3646 = vld [vmem:[%s2057 + $0xa4] sm:$0xf]
      %v3647 = vld [vmem:[%s2057 + $0xa8] sm:$0xf]
      %v3648 = vld [vmem:[%s2057 + $0xac] sm:$0xf]
      %v3649 = vld [vmem:[%s2057 + $0xb0] sm:$0xf]
      %v3650 = vld [vmem:[%s2057 + $0xb4] sm:$0xf]
      %v3651 = vld [vmem:[%s2057 + $0xb8] sm:$0xf]
      %v3652 = vld [vmem:[%s2057 + $0xbc] sm:$0xf]
      %v3685 = vunpack.c.l.b16 %v3573
      %v3686 = vunpack.c.h.b16 %v3573
      %v3687 = vunpack.c.l.b16 %v3574
      %v3688 = vunpack.c.l.b16 %v3575
      %v3689 = vunpack.c.h.b16 %v3575
      %v3690 = vunpack.c.l.b16 %v3576
      %v3691 = vunpack.c.l.b16 %v3577
      %v3692 = vunpack.c.h.b16 %v3577
      %v3693 = vunpack.c.l.b16 %v3578
      %v3694 = vunpack.c.l.b16 %v3579
      %v3695 = vunpack.c.h.b16 %v3579
      %v3696 = vunpack.c.l.b16 %v3580
      %v3697 = vunpack.c.l.b16 %v3581
      %v3698 = vunpack.c.h.b16 %v3581
      %v3699 = vunpack.c.l.b16 %v3582
      %v3700 = vunpack.c.l.b16 %v3583
      %v3701 = vunpack.c.h.b16 %v3583
      %v3702 = vunpack.c.l.b16 %v3584
      %v3703 = vunpack.c.l.b16 %v3585
      %v3704 = vunpack.c.h.b16 %v3585
      %v3705 = vunpack.c.l.b16 %v3586
      %v3706 = vunpack.c.l.b16 %v3587
      %v3707 = vunpack.c.h.b16 %v3587
      %v3708 = vunpack.c.l.b16 %v3588
      %v3709 = vunpack.c.l.b16 %v3589
      %v3710 = vunpack.c.h.b16 %v3589
      %v3711 = vunpack.c.l.b16 %v3590
      %v3712 = vunpack.c.l.b16 %v3591
      %v3713 = vunpack.c.h.b16 %v3591
      %v3714 = vunpack.c.l.b16 %v3592
      %v3715 = vunpack.c.l.b16 %v3593
      %v3716 = vunpack.c.h.b16 %v3593
      %v3717 = vunpack.c.l.b16 %v3594
      %v3718 = vunpack.c.l.b16 %v3595
      %v3719 = vunpack.c.h.b16 %v3595
      %v3720 = vunpack.c.l.b16 %v3596
      %v3721 = vunpack.c.l.b16 %v3597
      %v3722 = vunpack.c.h.b16 %v3597
      %v3723 = vunpack.c.l.b16 %v3598
      %v3724 = vunpack.c.l.b16 %v3599
      %v3725 = vunpack.c.h.b16 %v3599
      %v3726 = vunpack.c.l.b16 %v3600
      %v3727 = vunpack.c.l.b16 %v3601
      %v3728 = vunpack.c.h.b16 %v3601
      %v3729 = vunpack.c.l.b16 %v3602
      %v3730 = vunpack.c.l.b16 %v3603
      %v3731 = vunpack.c.h.b16 %v3603
      %v3732 = vunpack.c.l.b16 %v3604
      %v3733 = vpack.c.b16 %v3688, %v3685
      %v3734 = vpack.c.b16 %v3689, %v3686
      %v3735 = vpack.c.b16 %v3690, %v3687
      %v3736 = vpack.c.b16 %v3694, %v3691
      %v3737 = vpack.c.b16 %v3695, %v3692
      %v3738 = vpack.c.b16 %v3696, %v3693
      %v3739 = vpack.c.b16 %v3700, %v3697
      %v3740 = vpack.c.b16 %v3701, %v3698
      %v3741 = vpack.c.b16 %v3702, %v3699
      %v3742 = vpack.c.b16 %v3706, %v3703
      %v3743 = vpack.c.b16 %v3707, %v3704
      %v3744 = vpack.c.b16 %v3708, %v3705
      %v3745 = vpack.c.b16 %v3712, %v3709
      %v3746 = vpack.c.b16 %v3713, %v3710
      %v3747 = vpack.c.b16 %v3714, %v3711
      %v3748 = vpack.c.b16 %v3718, %v3715
      %v3749 = vpack.c.b16 %v3719, %v3716
      %v3750 = vpack.c.b16 %v3720, %v3717
      %v3751 = vpack.c.b16 %v3724, %v3721
      %v3752 = vpack.c.b16 %v3725, %v3722
      %v3753 = vpack.c.b16 %v3726, %v3723
      %v3754 = vpack.c.b16 %v3730, %v3727
      %v3755 = vpack.c.b16 %v3731, %v3728
      %v3756 = vpack.c.b16 %v3732, %v3729
      %v3829 = vunpack.c.l.b16 %v3605
      %v3830 = vunpack.c.l.b16 %v3606
      %v3831 = vunpack.c.l.b16 %v3607
      %v3832 = vunpack.c.l.b16 %v3608
      %v3833 = vunpack.c.l.b16 %v3609
      %v3834 = vunpack.c.l.b16 %v3610
      %v3835 = vunpack.c.l.b16 %v3611
      %v3836 = vunpack.c.l.b16 %v3612
      %v3837 = vunpack.c.l.b16 %v3613
      %v3838 = vunpack.c.l.b16 %v3614
      %v3839 = vunpack.c.l.b16 %v3615
      %v3840 = vunpack.c.l.b16 %v3616
      %v3841 = vunpack.c.l.b16 %v3617
      %v3842 = vunpack.c.l.b16 %v3618
      %v3843 = vunpack.c.l.b16 %v3619
      %v3844 = vunpack.c.l.b16 %v3620
      %v3845 = vunpack.c.l.b16 %v3621
      %v3846 = vunpack.c.l.b16 %v3622
      %v3847 = vunpack.c.l.b16 %v3623
      %v3848 = vunpack.c.l.b16 %v3624
      %v3849 = vunpack.c.l.b16 %v3625
      %v3850 = vunpack.c.l.b16 %v3626
      %v3851 = vunpack.c.l.b16 %v3627
      %v3852 = vunpack.c.l.b16 %v3628
      %v3853 = vunpack.c.l.b16 %v3629
      %v3854 = vunpack.c.l.b16 %v3630
      %v3855 = vunpack.c.l.b16 %v3631
      %v3856 = vunpack.c.l.b16 %v3632
      %v3857 = vunpack.c.l.b16 %v3633
      %v3858 = vunpack.c.l.b16 %v3634
      %v3859 = vunpack.c.l.b16 %v3635
      %v3860 = vunpack.c.l.b16 %v3636
      %v3861 = vunpack.c.l.b16 %v3637
      %v3862 = vunpack.c.l.b16 %v3638
      %v3863 = vunpack.c.l.b16 %v3639
      %v3864 = vunpack.c.l.b16 %v3640
      %v3865 = vunpack.c.l.b16 %v3641
      %v3866 = vunpack.c.l.b16 %v3642
      %v3867 = vunpack.c.l.b16 %v3643
      %v3868 = vunpack.c.l.b16 %v3644
      %v3869 = vunpack.c.l.b16 %v3645
      %v3870 = vunpack.c.l.b16 %v3646
      %v3871 = vunpack.c.l.b16 %v3647
      %v3872 = vunpack.c.l.b16 %v3648
      %v3873 = vunpack.c.l.b16 %v3649
      %v3874 = vunpack.c.l.b16 %v3650
      %v3875 = vunpack.c.l.b16 %v3651
      %v3876 = vunpack.c.l.b16 %v3652
      %v3877 = vpack.c.b16 %v3830, %v3829
      %v3878 = vpack.c.b16 %v3832, %v3831
      %v3879 = vpack.c.b16 %v3834, %v3833
      %v3880 = vpack.c.b16 %v3836, %v3835
      %v3881 = vpack.c.b16 %v3838, %v3837
      %v3882 = vpack.c.b16 %v3840, %v3839
      %v3883 = vpack.c.b16 %v3842, %v3841
      %v3884 = vpack.c.b16 %v3844, %v3843
      %v3885 = vpack.c.b16 %v3846, %v3845
      %v3886 = vpack.c.b16 %v3848, %v3847
      %v3887 = vpack.c.b16 %v3850, %v3849
      %v3888 = vpack.c.b16 %v3852, %v3851
      %v3889 = vpack.c.b16 %v3854, %v3853
      %v3890 = vpack.c.b16 %v3856, %v3855
      %v3891 = vpack.c.b16 %v3858, %v3857
      %v3892 = vpack.c.b16 %v3860, %v3859
      %v3893 = vpack.c.b16 %v3862, %v3861
      %v3894 = vpack.c.b16 %v3864, %v3863
      %v3895 = vpack.c.b16 %v3866, %v3865
      %v3896 = vpack.c.b16 %v3868, %v3867
      %v3897 = vpack.c.b16 %v3870, %v3869
      %v3898 = vpack.c.b16 %v3872, %v3871
      %v3899 = vpack.c.b16 %v3874, %v3873
      %v3900 = vpack.c.b16 %v3876, %v3875
      %3925 = vmatpush.bf16.msra.mxu0 %v3884
      %3926 = vmatpush.bf16.msra.mxu0 %v3883
      %3927 = vmatpush.bf16.msra.mxu0 %v3882
      %3928 = vmatpush.bf16.msra.mxu0 %v3881
      %3929 = vmatpush.bf16.msra.mxu0 %v3880
      %3930 = vmatpush.bf16.msra.mxu0 %v3879
      %3931 = vmatpush.bf16.msra.mxu0 %v3878
      %3932 = vmatpush.bf16.msra.mxu0 %v3877
      %3933 = vmatmul.bf16.gmra.mxu0 %v3733
      %v3934 = vpop.f32.mrf.mxu0
      %v3935 = vadd.f32 0.0, %v3934
      %v3936 = vpop.f32.mrf.mxu0
      %v3937 = vadd.f32 0.0, %v3936
      %3938 = vmatmul.bf16.gmra.mxu0 %v3736
      %v3939 = vpop.f32.mrf.mxu0
      %v3940 = vadd.f32 0.0, %v3939
      %v3941 = vpop.f32.mrf.mxu0
      %v3942 = vadd.f32 0.0, %v3941
      %3943 = vmatmul.bf16.gmra.mxu0 %v3739
      %v3944 = vpop.f32.mrf.mxu0
      %v3945 = vadd.f32 0.0, %v3944
      %v3946 = vpop.f32.mrf.mxu0
      %v3947 = vadd.f32 0.0, %v3946
      %3948 = vmatmul.bf16.gmra.mxu0 %v3742
      %v3949 = vpop.f32.mrf.mxu0
      %v3950 = vadd.f32 0.0, %v3949
      %v3951 = vpop.f32.mrf.mxu0
      %v3952 = vadd.f32 0.0, %v3951
      %3953 = vmatmul.bf16.gmra.mxu0 %v3745
      %v3954 = vpop.f32.mrf.mxu0
      %v3955 = vadd.f32 0.0, %v3954
      %v3956 = vpop.f32.mrf.mxu0
      %v3957 = vadd.f32 0.0, %v3956
      %3958 = vmatmul.bf16.gmra.mxu0 %v3748
      %v3959 = vpop.f32.mrf.mxu0
      %v3960 = vadd.f32 0.0, %v3959
      %v3961 = vpop.f32.mrf.mxu0
      %v3962 = vadd.f32 0.0, %v3961
      %3963 = vmatmul.bf16.gmra.mxu0 %v3751
      %v3964 = vpop.f32.mrf.mxu0
      %v3965 = vadd.f32 0.0, %v3964
      %v3966 = vpop.f32.mrf.mxu0
      %v3967 = vadd.f32 0.0, %v3966
      %3968 = vmatmul.bf16.gmra.mxu0 %v3754
      %v3969 = vpop.f32.mrf.mxu0
      %v3970 = vadd.f32 0.0, %v3969
      %v3971 = vpop.f32.mrf.mxu0
      %v3972 = vadd.f32 0.0, %v3971
      %3973 = vdwg.mxu0
      %3974 = vmatpush.bf16.msra.mxu0 %v3892
      %3975 = vmatpush.bf16.msra.mxu0 %v3891
      %3976 = vmatpush.bf16.msra.mxu0 %v3890
      %3977 = vmatpush.bf16.msra.mxu0 %v3889
      %3978 = vmatpush.bf16.msra.mxu0 %v3888
      %3979 = vmatpush.bf16.msra.mxu0 %v3887
      %3980 = vmatpush.bf16.msra.mxu0 %v3886
      %3981 = vmatpush.bf16.msra.mxu0 %v3885
      %3982 = vmatmul.bf16.gmra.mxu0 %v3734
      %v3983 = vpop.f32.mrf.mxu0
      %v3984 = vadd.f32 %v3935, %v3983
      %v3985 = vpop.f32.mrf.mxu0
      %v3986 = vadd.f32 %v3937, %v3985
      %3987 = vmatmul.bf16.gmra.mxu0 %v3737
      %v3988 = vpop.f32.mrf.mxu0
      %v3989 = vadd.f32 %v3940, %v3988
      %v3990 = vpop.f32.mrf.mxu0
      %v3991 = vadd.f32 %v3942, %v3990
      %3992 = vmatmul.bf16.gmra.mxu0 %v3740
      %v3993 = vpop.f32.mrf.mxu0
      %v3994 = vadd.f32 %v3945, %v3993
      %v3995 = vpop.f32.mrf.mxu0
      %v3996 = vadd.f32 %v3947, %v3995
      %3997 = vmatmul.bf16.gmra.mxu0 %v3743
      %v3998 = vpop.f32.mrf.mxu0
      %v3999 = vadd.f32 %v3950, %v3998
      %v4000 = vpop.f32.mrf.mxu0
      %v4001 = vadd.f32 %v3952, %v4000
      %4002 = vmatmul.bf16.gmra.mxu0 %v3746
      %v4003 = vpop.f32.mrf.mxu0
      %v4004 = vadd.f32 %v3955, %v4003
      %v4005 = vpop.f32.mrf.mxu0
      %v4006 = vadd.f32 %v3957, %v4005
      %4007 = vmatmul.bf16.gmra.mxu0 %v3749
      %v4008 = vpop.f32.mrf.mxu0
      %v4009 = vadd.f32 %v3960, %v4008
      %v4010 = vpop.f32.mrf.mxu0
      %v4011 = vadd.f32 %v3962, %v4010
      %4012 = vmatmul.bf16.gmra.mxu0 %v3752
      %v4013 = vpop.f32.mrf.mxu0
      %v4014 = vadd.f32 %v3965, %v4013
      %v4015 = vpop.f32.mrf.mxu0
      %v4016 = vadd.f32 %v3967, %v4015
      %4017 = vmatmul.bf16.gmra.mxu0 %v3755
      %v4018 = vpop.f32.mrf.mxu0
      %v4019 = vadd.f32 %v3970, %v4018
      %v4020 = vpop.f32.mrf.mxu0
      %v4021 = vadd.f32 %v3972, %v4020
      %4022 = vdwg.mxu0
      %4023 = vmatpush.bf16.msra.mxu0 %v3900
      %4024 = vmatpush.bf16.msra.mxu0 %v3899
      %4025 = vmatpush.bf16.msra.mxu0 %v3898
      %4026 = vmatpush.bf16.msra.mxu0 %v3897
      %4027 = vmatpush.bf16.msra.mxu0 %v3896
      %4028 = vmatpush.bf16.msra.mxu0 %v3895
      %4029 = vmatpush.bf16.msra.mxu0 %v3894
      %4030 = vmatpush.bf16.msra.mxu0 %v3893
      %4031 = vmatmul.bf16.gmra.mxu0 %v3735
      %v4032 = vpop.f32.mrf.mxu0
      %v4033 = vadd.f32 %v3984, %v4032
      %v4034 = vpop.f32.mrf.mxu0
      %v4035 = vadd.f32 %v3986, %v4034
      %4036 = vmatmul.bf16.gmra.mxu0 %v3738
      %v4037 = vpop.f32.mrf.mxu0
      %v4038 = vadd.f32 %v3989, %v4037
      %v4039 = vpop.f32.mrf.mxu0
      %v4040 = vadd.f32 %v3991, %v4039
      %4041 = vmatmul.bf16.gmra.mxu0 %v3741
      %v4042 = vpop.f32.mrf.mxu0
      %v4043 = vadd.f32 %v3994, %v4042
      %v4044 = vpop.f32.mrf.mxu0
      %v4045 = vadd.f32 %v3996, %v4044
      %4046 = vmatmul.bf16.gmra.mxu0 %v3744
      %v4047 = vpop.f32.mrf.mxu0
      %v4048 = vadd.f32 %v3999, %v4047
      %v4049 = vpop.f32.mrf.mxu0
      %v4050 = vadd.f32 %v4001, %v4049
      %4051 = vmatmul.bf16.gmra.mxu0 %v3747
      %v4052 = vpop.f32.mrf.mxu0
      %v4053 = vadd.f32 %v4004, %v4052
      %v4054 = vpop.f32.mrf.mxu0
      %v4055 = vadd.f32 %v4006, %v4054
      %4056 = vmatmul.bf16.gmra.mxu0 %v3750
      %v4057 = vpop.f32.mrf.mxu0
      %v4058 = vadd.f32 %v4009, %v4057
      %v4059 = vpop.f32.mrf.mxu0
      %v4060 = vadd.f32 %v4011, %v4059
      %4061 = vmatmul.bf16.gmra.mxu0 %v3753
      %v4062 = vpop.f32.mrf.mxu0
      %v4063 = vadd.f32 %v4014, %v4062
      %v4064 = vpop.f32.mrf.mxu0
      %v4065 = vadd.f32 %v4016, %v4064
      %4066 = vmatmul.bf16.gmra.mxu0 %v3756
      %v4067 = vpop.f32.mrf.mxu0
      %v4068 = vadd.f32 %v4019, %v4067
      %v4069 = vpop.f32.mrf.mxu0
      %v4070 = vadd.f32 %v4021, %v4069
      %4071 = vdwg.mxu0
      %v4072 = vadd.f32 %v3533, %v4033
      %v4073 = vadd.f32 %v3535, %v4035
      %v4074 = vadd.f32 %v3538, %v4038
      %v4075 = vadd.f32 %v3540, %v4040
      %v4076 = vadd.f32 %v3543, %v4043
      %v4077 = vadd.f32 %v3545, %v4045
      %v4078 = vadd.f32 %v3548, %v4048
      %v4079 = vadd.f32 %v3550, %v4050
      %v4080 = vadd.f32 %v3553, %v4053
      %v4081 = vadd.f32 %v3555, %v4055
      %v4082 = vadd.f32 %v3558, %v4058
      %v4083 = vadd.f32 %v3560, %v4060
      %v4084 = vadd.f32 %v3563, %v4063
      %v4085 = vadd.f32 %v3565, %v4065
      %v4086 = vadd.f32 %v3568, %v4068
      %v4087 = vadd.f32 %v3570, %v4070
      %v4088 = vpack.c.bf16 %v4072, %v4072
      %v4089 = vpack.c.bf16 %v4073, %v4073
      %v4090 = vpack.c.bf16 %v4074, %v4074
      %v4091 = vpack.c.bf16 %v4075, %v4075
      %v4092 = vpack.c.bf16 %v4076, %v4076
      %v4093 = vpack.c.bf16 %v4077, %v4077
      %v4094 = vpack.c.bf16 %v4078, %v4078
      %v4095 = vpack.c.bf16 %v4079, %v4079
      %v4096 = vpack.c.bf16 %v4080, %v4080
      %v4097 = vpack.c.bf16 %v4081, %v4081
      %v4098 = vpack.c.bf16 %v4082, %v4082
      %v4099 = vpack.c.bf16 %v4083, %v4083
      %v4100 = vpack.c.bf16 %v4084, %v4084
      %v4101 = vpack.c.bf16 %v4085, %v4085
      %v4102 = vpack.c.bf16 %v4086, %v4086
      %v4103 = vpack.c.bf16 %v4087, %v4087
      %s4104 = scalar_lea.vmem %s197, 64
      %4105 = vst [vmem:[%s4104] sm:$0xf] %v4088
      %4106 = vst [vmem:[%s4104 + $0x4] sm:$0xf] %v4089
      %4107 = vst [vmem:[%s4104 + $0x8] sm:$0xf] %v4090
      %4108 = vst [vmem:[%s4104 + $0xc] sm:$0xf] %v4091
      %4109 = vst [vmem:[%s4104 + $0x10] sm:$0xf] %v4092
      %4110 = vst [vmem:[%s4104 + $0x14] sm:$0xf] %v4093
      %4111 = vst [vmem:[%s4104 + $0x18] sm:$0xf] %v4094
      %4112 = vst [vmem:[%s4104 + $0x1c] sm:$0xf] %v4095
      %4113 = vst [vmem:[%s4104 + $0x20] sm:$0xf] %v4096
      %4114 = vst [vmem:[%s4104 + $0x24] sm:$0xf] %v4097
      %4115 = vst [vmem:[%s4104 + $0x28] sm:$0xf] %v4098
      %4116 = vst [vmem:[%s4104 + $0x2c] sm:$0xf] %v4099
      %4117 = vst [vmem:[%s4104 + $0x30] sm:$0xf] %v4100
      %4118 = vst [vmem:[%s4104 + $0x34] sm:$0xf] %v4101
      %4119 = vst [vmem:[%s4104 + $0x38] sm:$0xf] %v4102
      %4120 = vst [vmem:[%s4104 + $0x3c] sm:$0xf] %v4103
      %p4121 = scmp.lt.s32.totalorder %s15, 1
      %s4122 = scalar_select %p4121, %s15, 1
      %s4123 = smul.addr %s4122, 32
      %s4124 = smul.addr %s4123, 4
      %s4125 = scalar_lea.vmem %s4, %s4124
      // Predicated region
      $region37: #{dense_layer_forward.3} parent=35 // pred_check
        %p4126 = pneg %p122
      $region38: #{dense_layer_forward.3} parent=35 // pred_check_branch
        %4128 = sbr.rel (%p4126) target = $region40
      $region39: #{dense_layer_forward.3} parent=35 // pred_region
        _
      $region40: #{dense_layer_forward.3} parent=35 // pred_fallthru
        _
    $region36: #{dense_layer_forward.3} parent=5 // pred_fallthru
      _
    %p4129 = scmp.le.s32.totalorder 2, %s10
    // Predicated region
    $region41: #{dense_layer_forward.3} parent=5 // pred_check
      %p4130 = pneg %p4129
    $region42: #{dense_layer_forward.3} parent=5 // pred_check_branch
      %4132 = sbr.rel (%p4130) target = $region44
    $region43: #{dense_layer_forward.3} parent=5 // pred_region
      %s4133 = ssub.s32 %s10, 2
      // Predicated region
      $region45: #{dense_layer_forward.3} parent=43 // pred_check
        %p4134 = pneg %p128
      $region46: #{dense_layer_forward.3} parent=43 // pred_check_branch
        %4136 = sbr.rel (%p4134) target = $region48
      $region47: #{dense_layer_forward.3} parent=43 // pred_region
        %p4137 = scmp.lt.s32.totalorder %s16, 1
        %s4138 = scalar_select %p4137, %s16, 1
        %s4139 = smul.addr %s4138, 32
        %s4140 = smul.addr %s4139, 4
        %s4141 = scalar_lea.vmem %s4, %s4140
      $region48: #{dense_layer_forward.3} parent=43 // pred_fallthru
        _
    $region44: #{dense_layer_forward.3} parent=5 // pred_fallthru
      _
  $region6: #{dense_layer_forward.3} parent=0 // loop_footer
    %s14 = sadd.s32 1, %s10
  $region7: #{dense_layer_forward.3} parent=0 // loop_footer_branch
    %9 = sbr.rel target = $region3
  $region8: #{dense_layer_forward.3} parent=0 // loop_exit
    _

</llo_original>
